<compile_context>
chip_gen: v5e
topology: v5e:2x2
jax: 0.10.0
libtpu: 0.0.40
codegen_flags: <defaults>
</compile_context>

<pallas_src>
import functools

import jax
import jax.numpy as jnp
from jax import lax
from jax.experimental import pallas as pl
from jax.experimental.pallas import tpu as pltpu


def _round_up(n, m):
    return ((n + m - 1) // m) * m


def _lstm_recurrence_kernel(gx1_ref,     # (T, bb, 4*Hp) precomputed x_t @ W_ih1 + b1
                            whh1_ref,    # (Hp, 4*Hp)
                            wih2_ref,    # (Hp, 4*Ep)
                            whh2_ref,    # (Ep, 4*Ep)
                            b2_ref,      # (1, 4*Ep)  b_ih2 + b_hh2, lane-padded
                            out_ref):    # (bb, Ep)   final h1 (lane-padded)
    T = gx1_ref.shape[0]
    bb = out_ref.shape[0]
    Hp = whh1_ref.shape[0]
    Ep = whh2_ref.shape[0]

    # Hoist the (1,4Ep)->(bb,4Ep) bias broadcast out of the recurrence.
    b2 = jnp.broadcast_to(b2_ref[...], (bb, 4 * Ep))

    def step(t, carry):
        h0, c0, h1, c1 = carry

        # ---- layer 1: only the recurrent matmul is left on the serial path ----
        gates1 = gx1_ref[t] + jnp.dot(h0, whh1_ref[...],
                                      preferred_element_type=jnp.float32)
        # Hp is a multiple of 128 -> every gate slice is a full-vreg slab.
        i1 = jax.nn.sigmoid(gates1[:, 0 * Hp:1 * Hp])
        f1 = jax.nn.sigmoid(gates1[:, 1 * Hp:2 * Hp])
        g1 = jnp.tanh(gates1[:, 2 * Hp:3 * Hp])
        o1 = jax.nn.sigmoid(gates1[:, 3 * Hp:4 * Hp])
        c0 = f1 * c0 + i1 * g1
        h0 = o1 * jnp.tanh(c0)

        # ---- layer 2: LSTMCell(hidden_dim -> embedding_dim), fed by h0 ----
        gates2 = (jnp.dot(h0, wih2_ref[...], preferred_element_type=jnp.float32)
                  + jnp.dot(h1, whh2_ref[...], preferred_element_type=jnp.float32)
                  + b2)
        i2 = jax.nn.sigmoid(gates2[:, 0 * Ep:1 * Ep])
        f2 = jax.nn.sigmoid(gates2[:, 1 * Ep:2 * Ep])
        g2 = jnp.tanh(gates2[:, 2 * Ep:3 * Ep])
        o2 = jax.nn.sigmoid(gates2[:, 3 * Ep:4 * Ep])
        c1 = f2 * c1 + i2 * g2
        h1 = o2 * jnp.tanh(c1)
        return h0, c0, h1, c1

    zh = jnp.zeros((bb, Hp), jnp.float32)
    ze = jnp.zeros((bb, Ep), jnp.float32)
    _, _, h1, _ = lax.fori_loop(0, T, step, (zh, zh, ze, ze), unroll=True)

    # Ep is a multiple of 128 -> lane-dense (unmasked) store.  Also writes even
    # for T == 0 (returns the zero initial h1, matching the PyTorch module).
    out_ref[...] = h1.astype(out_ref.dtype)


def _pad_gate_weight(w, out_dim, out_pad, in_pad=None):
    """(in, 4*out) -> (in_pad, 4*out_pad): each gate block zero-padded on lanes,
    extra input rows zero-padded so padded state lanes never contribute."""
    in_dim = w.shape[0]
    if in_pad is None:
        in_pad = in_dim
    w4 = w.reshape(in_dim, 4, out_dim)
    w4 = jnp.pad(w4, ((0, in_pad - in_dim), (0, 0), (0, out_pad - out_dim)))
    return w4.reshape(in_pad, 4 * out_pad)


def lstm_encoder_pallas(time_series, params, *, hidden_dim, embedding_dim, step,
                        batch_block=None):
    """time_series: (batch, step, input_dim) float32 -> (batch, embedding_dim)."""
    B, T, F = time_series.shape
    assert T == step
    H, E = hidden_dim, embedding_dim
    Hp = _round_up(H, 128)
    Ep = _round_up(E, 128)

    wih1, whh1, b1, wih2, whh2, b2 = params

    # Lane-pad each gate block to a multiple of 128.
    wih1_p = _pad_gate_weight(wih1, H, Hp)              # (F,  4Hp)
    b1_p   = _pad_gate_weight(b1,   H, Hp)              # (1,  4Hp)
    whh1_p = _pad_gate_weight(whh1, H, Hp, in_pad=Hp)   # (Hp, 4Hp)
    wih2_p = _pad_gate_weight(wih2, E, Ep, in_pad=Hp)   # (Hp, 4Ep)
    whh2_p = _pad_gate_weight(whh2, E, Ep, in_pad=Ep)   # (Ep, 4Ep)
    b2_p   = _pad_gate_weight(b2,   E, Ep)              # (1,  4Ep)

    # Non-recurrent layer-1 input projection, done once as a single matmul.
    # Output order 'tbg' folds the (B,T,F)->(T,B,.) transpose into the contraction.
    gx1 = jnp.einsum('btf,fg->tbg', time_series, wih1_p,
                     precision=lax.Precision.HIGHEST) + b1_p        # (T, B, 4Hp)

    if batch_block is None:
        batch_block = B          # small batches: single kernel invocation, grid=(1,)
    assert B % batch_block == 0
    nb = B // batch_block

    grid_spec = pltpu.PrefetchScalarGridSpec(
        num_scalar_prefetch=0,
        grid=(nb,),
        in_specs=[
            pl.BlockSpec((T, batch_block, 4 * Hp), lambda b: (0, b, 0)),
            pl.BlockSpec((Hp, 4 * Hp), lambda b: (0, 0)),
            pl.BlockSpec((Hp, 4 * Ep), lambda b: (0, 0)),
            pl.BlockSpec((Ep, 4 * Ep), lambda b: (0, 0)),
            pl.BlockSpec((1, 4 * Ep), lambda b: (0, 0)),
        ],
        out_specs=pl.BlockSpec((batch_block, Ep), lambda b: (b, 0)),
    )

    out_padded = pl.pallas_call(
        _lstm_recurrence_kernel,
        out_shape=jax.ShapeDtypeStruct((B, Ep), jnp.float32),
        grid_spec=grid_spec,
        compiler_params=pltpu.CompilerParams(
            # Batch tiles are independent -> "parallel" (dual-TC sharding on v7x).
            # The inherently serial time axis lives inside the kernel body.
            dimension_semantics=("parallel",)),
    )(gx1, whh1_p, wih2_p, whh2_p, b2_p)

    return out_padded[:, :E]     # drop lane padding (padded lanes are exactly zero)


def init_params(key, input_dim, hidden_dim, embedding_dim):
    """Deterministic init mirroring nn.LSTMCell shapes.

    PyTorch stores W_ih: (4*out, in), W_hh: (4*out, out), b_ih/b_hh: (4*out,).
    We keep them pre-transposed as (in, 4*out) and fold the two biases together.
    """
    k = jax.random.split(key, 6)
    s1 = 1.0 / jnp.sqrt(hidden_dim)
    s2 = 1.0 / jnp.sqrt(embedding_dim)
    wih1 = jax.random.uniform(k[0], (input_dim, 4 * hidden_dim), jnp.float32, -s1, s1)
    whh1 = jax.random.uniform(k[1], (hidden_dim, 4 * hidden_dim), jnp.float32, -s1, s1)
    b1 = jax.random.uniform(k[2], (1, 4 * hidden_dim), jnp.float32, -s1, s1) * 2.0
    wih2 = jax.random.uniform(k[3], (hidden_dim, 4 * embedding_dim), jnp.float32, -s2, s2)
    whh2 = jax.random.uniform(k[4], (embedding_dim, 4 * embedding_dim), jnp.float32, -s2, s2)
    b2 = jax.random.uniform(k[5], (1, 4 * embedding_dim), jnp.float32, -s2, s2) * 2.0
    return (wih1, whh1, b1, wih2, whh2, b2)


def lstm_encoder_ref(time_series, params, *, hidden_dim, embedding_dim, step):
    """Pure-JAX reference of the PyTorch forward (for verification)."""
    wih1, whh1, b1, wih2, whh2, b2 = params
    B = time_series.shape[0]
    H, E = hidden_dim, embedding_dim

    def cell(x, h, c, wih, whh, b, n):
        g = (jnp.dot(x, wih, precision=lax.Precision.HIGHEST)
             + jnp.dot(h, whh, precision=lax.Precision.HIGHEST) + b)
        i = jax.nn.sigmoid(g[:, 0 * n:1 * n])
        f = jax.nn.sigmoid(g[:, 1 * n:2 * n])
        gg = jnp.tanh(g[:, 2 * n:3 * n])
        o = jax.nn.sigmoid(g[:, 3 * n:4 * n])
        c = f * c + i * gg
        h = o * jnp.tanh(c)
        return h, c

    h0 = jnp.zeros((B, H), jnp.float32)
    c0 = jnp.zeros((B, H), jnp.float32)
    h1 = jnp.zeros((B, E), jnp.float32)
    c1 = jnp.zeros((B, E), jnp.float32)
    for t in range(step):
        h0, c0 = cell(time_series[:, t, :], h0, c0, wih1, whh1, b1, H)
        h1, c1 = cell(h0, h1, c1, wih2, whh2, b2, E)
    return h1


if __name__ == "__main__":
    # Small shapes consistent with the module's forward (module defaults:
    # input_dim=11, hidden_dim=256, embedding_dim=24, step=5; batch kept small).
    batch = 8
    input_dim = 11
    hidden_dim = 256
    embedding_dim = 24
    step = 5

    key = jax.random.PRNGKey(0)
    k_x, k_p = jax.random.split(key)
    x = jax.random.normal(k_x, (batch, step, input_dim), jnp.float32)   # (B, T, F)
    params = init_params(k_p, input_dim, hidden_dim, embedding_dim)

    run = jax.jit(functools.partial(lstm_encoder_pallas,
                                    hidden_dim=hidden_dim,
                                    embedding_dim=embedding_dim,
                                    step=step))
    out = jax.block_until_ready(run(x, params))

    ref = lstm_encoder_ref(x, params,
                           hidden_dim=hidden_dim,
                           embedding_dim=embedding_dim,
                           step=step)
    assert out.shape == (batch, embedding_dim)
    max_err = float(jnp.max(jnp.abs(out - ref)))
    assert max_err < 1e-3, f"mismatch vs reference: max abs err {max_err}"
    print("KERNEL_OK")
</pallas_src>

<mosaic_0001>
module attributes {stable_mosaic.version = 11 : i64} {
  func.func @_lstm_recurrence_kernel(%arg0: i32, %arg1: memref<5x8x1024xf32, #tpu.memory_space<vmem>>, %arg2: memref<256x1024xf32, #tpu.memory_space<vmem>>, %arg3: memref<256x512xf32, #tpu.memory_space<vmem>>, %arg4: memref<128x512xf32, #tpu.memory_space<vmem>>, %arg5: memref<1x512xf32, #tpu.memory_space<vmem>>, %arg6: memref<8x128xf32, #tpu.memory_space<vmem>>) attributes {dimension_semantics = [#tpu.dimension_semantics<parallel>], iteration_bounds = array<i64: 1>, scalar_prefetch = 0 : i64, scratch_operands = 0 : i64, tpu.core_type = #tpu.core_type<tc>, window_params = [{transform_indices = @transform_0, window_bounds = array<i64: 5, 8, 1024>}, {pipeline_mode = #tpu.pipeline_mode<synchronous>, transform_indices = @transform_1, window_bounds = array<i64: 256, 1024>}, {pipeline_mode = #tpu.pipeline_mode<synchronous>, transform_indices = @transform_2, window_bounds = array<i64: 256, 512>}, {pipeline_mode = #tpu.pipeline_mode<synchronous>, transform_indices = @transform_3, window_bounds = array<i64: 128, 512>}, {pipeline_mode = #tpu.pipeline_mode<synchronous>, transform_indices = @transform_4, window_bounds = array<i64: 1, 512>}, {transform_indices = @transform_5, window_bounds = array<i64: 8, 128>}]} {
    %c0 = arith.constant 0 : index
    %c0_0 = arith.constant 0 : index
    %0 = vector.load %arg5[%c0, %c0_0] : memref<1x512xf32, #tpu.memory_space<vmem>>, vector<1x512xf32>
    %1 = vector.shape_cast %0 : vector<1x512xf32> to vector<1x512xf32>
    %2 = vector.broadcast %1 : vector<1x512xf32> to vector<8x512xf32>
    %cst = arith.constant 0.000000e+00 : f32
    %3 = vector.broadcast %cst : f32 to vector<8x256xf32>
    %cst_1 = arith.constant 0.000000e+00 : f32
    %4 = vector.broadcast %cst_1 : f32 to vector<8x128xf32>
    %c0_i32 = arith.constant 0 : i32
    %5 = arith.index_cast %c0_i32 : i32 to index
    %c0_2 = arith.constant 0 : index
    %c0_3 = arith.constant 0 : index
    %6 = vector.load %arg1[%5, %c0_2, %c0_3] : memref<5x8x1024xf32, #tpu.memory_space<vmem>>, vector<1x8x1024xf32>
    %7 = vector.shape_cast %6 : vector<1x8x1024xf32> to vector<8x1024xf32>
    %c0_4 = arith.constant 0 : index
    %c0_5 = arith.constant 0 : index
    %8 = vector.load %arg2[%c0_4, %c0_5] : memref<256x1024xf32, #tpu.memory_space<vmem>>, vector<256x1024xf32>
    %cst_6 = arith.constant dense<0.000000e+00> : vector<8x1024xf32>
    %9 = tpu.matmul %3, %8, %cst_6 {dimension_numbers = #tpu.dot_dimension_numbers<[1], [0], [0], [1], [0, 0, 1, 1], [], []>} : vector<8x256xf32>, vector<256x1024xf32>, vector<8x1024xf32> -> vector<8x1024xf32>
    %10 = arith.addf %7, %9 : vector<8x1024xf32>
    %11 = vector.extract_strided_slice %10 {offsets = [0, 0], sizes = [8, 256], strides = [1, 1]} : vector<8x1024xf32> to vector<8x256xf32>
    %12 = arith.negf %11 : vector<8x256xf32>
    %13 = math.exp %12 : vector<8x256xf32>
    %cst_7 = arith.constant 1.000000e+00 : f32
    %14 = vector.broadcast %cst_7 : f32 to vector<8x256xf32>
    %15 = arith.addf %14, %13 : vector<8x256xf32>
    %16 = arith.divf %14, %15 : vector<8x256xf32>
    %17 = vector.extract_strided_slice %10 {offsets = [0, 256], sizes = [8, 256], strides = [1, 1]} : vector<8x1024xf32> to vector<8x256xf32>
    %18 = arith.negf %17 : vector<8x256xf32>
    %19 = math.exp %18 : vector<8x256xf32>
    %cst_8 = arith.constant 1.000000e+00 : f32
    %20 = vector.broadcast %cst_8 : f32 to vector<8x256xf32>
    %21 = arith.addf %20, %19 : vector<8x256xf32>
    %22 = arith.divf %20, %21 : vector<8x256xf32>
    %23 = vector.extract_strided_slice %10 {offsets = [0, 512], sizes = [8, 256], strides = [1, 1]} : vector<8x1024xf32> to vector<8x256xf32>
    %24 = math.tanh %23 : vector<8x256xf32>
    %25 = vector.extract_strided_slice %10 {offsets = [0, 768], sizes = [8, 256], strides = [1, 1]} : vector<8x1024xf32> to vector<8x256xf32>
    %26 = arith.negf %25 : vector<8x256xf32>
    %27 = math.exp %26 : vector<8x256xf32>
    %cst_9 = arith.constant 1.000000e+00 : f32
    %28 = vector.broadcast %cst_9 : f32 to vector<8x256xf32>
    %29 = arith.addf %28, %27 : vector<8x256xf32>
    %30 = arith.divf %28, %29 : vector<8x256xf32>
    %31 = arith.mulf %22, %3 : vector<8x256xf32>
    %32 = arith.mulf %16, %24 : vector<8x256xf32>
    %33 = arith.addf %31, %32 : vector<8x256xf32>
    %34 = math.tanh %33 : vector<8x256xf32>
    %35 = arith.mulf %30, %34 : vector<8x256xf32>
    %c0_10 = arith.constant 0 : index
    %c0_11 = arith.constant 0 : index
    %36 = vector.load %arg3[%c0_10, %c0_11] : memref<256x512xf32, #tpu.memory_space<vmem>>, vector<256x512xf32>
    %cst_12 = arith.constant dense<0.000000e+00> : vector<8x512xf32>
    %37 = tpu.matmul %35, %36, %cst_12 {dimension_numbers = #tpu.dot_dimension_numbers<[1], [0], [0], [1], [0, 0, 1, 1], [], []>} : vector<8x256xf32>, vector<256x512xf32>, vector<8x512xf32> -> vector<8x512xf32>
    %c0_13 = arith.constant 0 : index
    %c0_14 = arith.constant 0 : index
    %38 = vector.load %arg4[%c0_13, %c0_14] : memref<128x512xf32, #tpu.memory_space<vmem>>, vector<128x512xf32>
    %cst_15 = arith.constant dense<0.000000e+00> : vector<8x512xf32>
    %39 = tpu.matmul %4, %38, %cst_15 {dimension_numbers = #tpu.dot_dimension_numbers<[1], [0], [0], [1], [0, 0, 1, 1], [], []>} : vector<8x128xf32>, vector<128x512xf32>, vector<8x512xf32> -> vector<8x512xf32>
    %40 = arith.addf %37, %39 : vector<8x512xf32>
    %41 = arith.addf %40, %2 : vector<8x512xf32>
    %42 = vector.extract_strided_slice %41 {offsets = [0, 0], sizes = [8, 128], strides = [1, 1]} : vector<8x512xf32> to vector<8x128xf32>
    %43 = arith.negf %42 : vector<8x128xf32>
    %44 = math.exp %43 : vector<8x128xf32>
    %cst_16 = arith.constant 1.000000e+00 : f32
    %45 = vector.broadcast %cst_16 : f32 to vector<8x128xf32>
    %46 = arith.addf %45, %44 : vector<8x128xf32>
    %47 = arith.divf %45, %46 : vector<8x128xf32>
    %48 = vector.extract_strided_slice %41 {offsets = [0, 128], sizes = [8, 128], strides = [1, 1]} : vector<8x512xf32> to vector<8x128xf32>
    %49 = arith.negf %48 : vector<8x128xf32>
    %50 = math.exp %49 : vector<8x128xf32>
    %cst_17 = arith.constant 1.000000e+00 : f32
    %51 = vector.broadcast %cst_17 : f32 to vector<8x128xf32>
    %52 = arith.addf %51, %50 : vector<8x128xf32>
    %53 = arith.divf %51, %52 : vector<8x128xf32>
    %54 = vector.extract_strided_slice %41 {offsets = [0, 256], sizes = [8, 128], strides = [1, 1]} : vector<8x512xf32> to vector<8x128xf32>
    %55 = math.tanh %54 : vector<8x128xf32>
    %56 = vector.extract_strided_slice %41 {offsets = [0, 384], sizes = [8, 128], strides = [1, 1]} : vector<8x512xf32> to vector<8x128xf32>
    %57 = arith.negf %56 : vector<8x128xf32>
    %58 = math.exp %57 : vector<8x128xf32>
    %cst_18 = arith.constant 1.000000e+00 : f32
    %59 = vector.broadcast %cst_18 : f32 to vector<8x128xf32>
    %60 = arith.addf %59, %58 : vector<8x128xf32>
    %61 = arith.divf %59, %60 : vector<8x128xf32>
    %62 = arith.mulf %53, %4 : vector<8x128xf32>
    %63 = arith.mulf %47, %55 : vector<8x128xf32>
    %64 = arith.addf %62, %63 : vector<8x128xf32>
    %65 = math.tanh %64 : vector<8x128xf32>
    %66 = arith.mulf %61, %65 : vector<8x128xf32>
    %c1_i32 = arith.constant 1 : i32
    %67 = arith.index_cast %c1_i32 : i32 to index
    %c0_19 = arith.constant 0 : index
    %c0_20 = arith.constant 0 : index
    %68 = vector.load %arg1[%67, %c0_19, %c0_20] : memref<5x8x1024xf32, #tpu.memory_space<vmem>>, vector<1x8x1024xf32>
    %69 = vector.shape_cast %68 : vector<1x8x1024xf32> to vector<8x1024xf32>
    %c0_21 = arith.constant 0 : index
    %c0_22 = arith.constant 0 : index
    %70 = vector.load %arg2[%c0_21, %c0_22] : memref<256x1024xf32, #tpu.memory_space<vmem>>, vector<256x1024xf32>
    %cst_23 = arith.constant dense<0.000000e+00> : vector<8x1024xf32>
    %71 = tpu.matmul %35, %70, %cst_23 {dimension_numbers = #tpu.dot_dimension_numbers<[1], [0], [0], [1], [0, 0, 1, 1], [], []>} : vector<8x256xf32>, vector<256x1024xf32>, vector<8x1024xf32> -> vector<8x1024xf32>
    %72 = arith.addf %69, %71 : vector<8x1024xf32>
    %73 = vector.extract_strided_slice %72 {offsets = [0, 0], sizes = [8, 256], strides = [1, 1]} : vector<8x1024xf32> to vector<8x256xf32>
    %74 = arith.negf %73 : vector<8x256xf32>
    %75 = math.exp %74 : vector<8x256xf32>
    %cst_24 = arith.constant 1.000000e+00 : f32
    %76 = vector.broadcast %cst_24 : f32 to vector<8x256xf32>
    %77 = arith.addf %76, %75 : vector<8x256xf32>
    %78 = arith.divf %76, %77 : vector<8x256xf32>
    %79 = vector.extract_strided_slice %72 {offsets = [0, 256], sizes = [8, 256], strides = [1, 1]} : vector<8x1024xf32> to vector<8x256xf32>
    %80 = arith.negf %79 : vector<8x256xf32>
    %81 = math.exp %80 : vector<8x256xf32>
    %cst_25 = arith.constant 1.000000e+00 : f32
    %82 = vector.broadcast %cst_25 : f32 to vector<8x256xf32>
    %83 = arith.addf %82, %81 : vector<8x256xf32>
    %84 = arith.divf %82, %83 : vector<8x256xf32>
    %85 = vector.extract_strided_slice %72 {offsets = [0, 512], sizes = [8, 256], strides = [1, 1]} : vector<8x1024xf32> to vector<8x256xf32>
    %86 = math.tanh %85 : vector<8x256xf32>
    %87 = vector.extract_strided_slice %72 {offsets = [0, 768], sizes = [8, 256], strides = [1, 1]} : vector<8x1024xf32> to vector<8x256xf32>
    %88 = arith.negf %87 : vector<8x256xf32>
    %89 = math.exp %88 : vector<8x256xf32>
    %cst_26 = arith.constant 1.000000e+00 : f32
    %90 = vector.broadcast %cst_26 : f32 to vector<8x256xf32>
    %91 = arith.addf %90, %89 : vector<8x256xf32>
    %92 = arith.divf %90, %91 : vector<8x256xf32>
    %93 = arith.mulf %84, %33 : vector<8x256xf32>
    %94 = arith.mulf %78, %86 : vector<8x256xf32>
    %95 = arith.addf %93, %94 : vector<8x256xf32>
    %96 = math.tanh %95 : vector<8x256xf32>
    %97 = arith.mulf %92, %96 : vector<8x256xf32>
    %c0_27 = arith.constant 0 : index
    %c0_28 = arith.constant 0 : index
    %98 = vector.load %arg3[%c0_27, %c0_28] : memref<256x512xf32, #tpu.memory_space<vmem>>, vector<256x512xf32>
    %cst_29 = arith.constant dense<0.000000e+00> : vector<8x512xf32>
    %99 = tpu.matmul %97, %98, %cst_29 {dimension_numbers = #tpu.dot_dimension_numbers<[1], [0], [0], [1], [0, 0, 1, 1], [], []>} : vector<8x256xf32>, vector<256x512xf32>, vector<8x512xf32> -> vector<8x512xf32>
    %c0_30 = arith.constant 0 : index
    %c0_31 = arith.constant 0 : index
    %100 = vector.load %arg4[%c0_30, %c0_31] : memref<128x512xf32, #tpu.memory_space<vmem>>, vector<128x512xf32>
    %cst_32 = arith.constant dense<0.000000e+00> : vector<8x512xf32>
    %101 = tpu.matmul %66, %100, %cst_32 {dimension_numbers = #tpu.dot_dimension_numbers<[1], [0], [0], [1], [0, 0, 1, 1], [], []>} : vector<8x128xf32>, vector<128x512xf32>, vector<8x512xf32> -> vector<8x512xf32>
    %102 = arith.addf %99, %101 : vector<8x512xf32>
    %103 = arith.addf %102, %2 : vector<8x512xf32>
    %104 = vector.extract_strided_slice %103 {offsets = [0, 0], sizes = [8, 128], strides = [1, 1]} : vector<8x512xf32> to vector<8x128xf32>
    %105 = arith.negf %104 : vector<8x128xf32>
    %106 = math.exp %105 : vector<8x128xf32>
    %cst_33 = arith.constant 1.000000e+00 : f32
    %107 = vector.broadcast %cst_33 : f32 to vector<8x128xf32>
    %108 = arith.addf %107, %106 : vector<8x128xf32>
    %109 = arith.divf %107, %108 : vector<8x128xf32>
    %110 = vector.extract_strided_slice %103 {offsets = [0, 128], sizes = [8, 128], strides = [1, 1]} : vector<8x512xf32> to vector<8x128xf32>
    %111 = arith.negf %110 : vector<8x128xf32>
    %112 = math.exp %111 : vector<8x128xf32>
    %cst_34 = arith.constant 1.000000e+00 : f32
    %113 = vector.broadcast %cst_34 : f32 to vector<8x128xf32>
    %114 = arith.addf %113, %112 : vector<8x128xf32>
    %115 = arith.divf %113, %114 : vector<8x128xf32>
    %116 = vector.extract_strided_slice %103 {offsets = [0, 256], sizes = [8, 128], strides = [1, 1]} : vector<8x512xf32> to vector<8x128xf32>
    %117 = math.tanh %116 : vector<8x128xf32>
    %118 = vector.extract_strided_slice %103 {offsets = [0, 384], sizes = [8, 128], strides = [1, 1]} : vector<8x512xf32> to vector<8x128xf32>
    %119 = arith.negf %118 : vector<8x128xf32>
    %120 = math.exp %119 : vector<8x128xf32>
    %cst_35 = arith.constant 1.000000e+00 : f32
    %121 = vector.broadcast %cst_35 : f32 to vector<8x128xf32>
    %122 = arith.addf %121, %120 : vector<8x128xf32>
    %123 = arith.divf %121, %122 : vector<8x128xf32>
    %124 = arith.mulf %115, %64 : vector<8x128xf32>
    %125 = arith.mulf %109, %117 : vector<8x128xf32>
    %126 = arith.addf %124, %125 : vector<8x128xf32>
    %127 = math.tanh %126 : vector<8x128xf32>
    %128 = arith.mulf %123, %127 : vector<8x128xf32>
    %c2_i32 = arith.constant 2 : i32
    %129 = arith.index_cast %c2_i32 : i32 to index
    %c0_36 = arith.constant 0 : index
    %c0_37 = arith.constant 0 : index
    %130 = vector.load %arg1[%129, %c0_36, %c0_37] : memref<5x8x1024xf32, #tpu.memory_space<vmem>>, vector<1x8x1024xf32>
    %131 = vector.shape_cast %130 : vector<1x8x1024xf32> to vector<8x1024xf32>
    %c0_38 = arith.constant 0 : index
    %c0_39 = arith.constant 0 : index
    %132 = vector.load %arg2[%c0_38, %c0_39] : memref<256x1024xf32, #tpu.memory_space<vmem>>, vector<256x1024xf32>
    %cst_40 = arith.constant dense<0.000000e+00> : vector<8x1024xf32>
    %133 = tpu.matmul %97, %132, %cst_40 {dimension_numbers = #tpu.dot_dimension_numbers<[1], [0], [0], [1], [0, 0, 1, 1], [], []>} : vector<8x256xf32>, vector<256x1024xf32>, vector<8x1024xf32> -> vector<8x1024xf32>
    %134 = arith.addf %131, %133 : vector<8x1024xf32>
    %135 = vector.extract_strided_slice %134 {offsets = [0, 0], sizes = [8, 256], strides = [1, 1]} : vector<8x1024xf32> to vector<8x256xf32>
    %136 = arith.negf %135 : vector<8x256xf32>
    %137 = math.exp %136 : vector<8x256xf32>
    %cst_41 = arith.constant 1.000000e+00 : f32
    %138 = vector.broadcast %cst_41 : f32 to vector<8x256xf32>
    %139 = arith.addf %138, %137 : vector<8x256xf32>
    %140 = arith.divf %138, %139 : vector<8x256xf32>
    %141 = vector.extract_strided_slice %134 {offsets = [0, 256], sizes = [8, 256], strides = [1, 1]} : vector<8x1024xf32> to vector<8x256xf32>
    %142 = arith.negf %141 : vector<8x256xf32>
    %143 = math.exp %142 : vector<8x256xf32>
    %cst_42 = arith.constant 1.000000e+00 : f32
    %144 = vector.broadcast %cst_42 : f32 to vector<8x256xf32>
    %145 = arith.addf %144, %143 : vector<8x256xf32>
    %146 = arith.divf %144, %145 : vector<8x256xf32>
    %147 = vector.extract_strided_slice %134 {offsets = [0, 512], sizes = [8, 256], strides = [1, 1]} : vector<8x1024xf32> to vector<8x256xf32>
    %148 = math.tanh %147 : vector<8x256xf32>
    %149 = vector.extract_strided_slice %134 {offsets = [0, 768], sizes = [8, 256], strides = [1, 1]} : vector<8x1024xf32> to vector<8x256xf32>
    %150 = arith.negf %149 : vector<8x256xf32>
    %151 = math.exp %150 : vector<8x256xf32>
    %cst_43 = arith.constant 1.000000e+00 : f32
    %152 = vector.broadcast %cst_43 : f32 to vector<8x256xf32>
    %153 = arith.addf %152, %151 : vector<8x256xf32>
    %154 = arith.divf %152, %153 : vector<8x256xf32>
    %155 = arith.mulf %146, %95 : vector<8x256xf32>
    %156 = arith.mulf %140, %148 : vector<8x256xf32>
    %157 = arith.addf %155, %156 : vector<8x256xf32>
    %158 = math.tanh %157 : vector<8x256xf32>
    %159 = arith.mulf %154, %158 : vector<8x256xf32>
    %c0_44 = arith.constant 0 : index
    %c0_45 = arith.constant 0 : index
    %160 = vector.load %arg3[%c0_44, %c0_45] : memref<256x512xf32, #tpu.memory_space<vmem>>, vector<256x512xf32>
    %cst_46 = arith.constant dense<0.000000e+00> : vector<8x512xf32>
    %161 = tpu.matmul %159, %160, %cst_46 {dimension_numbers = #tpu.dot_dimension_numbers<[1], [0], [0], [1], [0, 0, 1, 1], [], []>} : vector<8x256xf32>, vector<256x512xf32>, vector<8x512xf32> -> vector<8x512xf32>
    %c0_47 = arith.constant 0 : index
    %c0_48 = arith.constant 0 : index
    %162 = vector.load %arg4[%c0_47, %c0_48] : memref<128x512xf32, #tpu.memory_space<vmem>>, vector<128x512xf32>
    %cst_49 = arith.constant dense<0.000000e+00> : vector<8x512xf32>
    %163 = tpu.matmul %128, %162, %cst_49 {dimension_numbers = #tpu.dot_dimension_numbers<[1], [0], [0], [1], [0, 0, 1, 1], [], []>} : vector<8x128xf32>, vector<128x512xf32>, vector<8x512xf32> -> vector<8x512xf32>
    %164 = arith.addf %161, %163 : vector<8x512xf32>
    %165 = arith.addf %164, %2 : vector<8x512xf32>
    %166 = vector.extract_strided_slice %165 {offsets = [0, 0], sizes = [8, 128], strides = [1, 1]} : vector<8x512xf32> to vector<8x128xf32>
    %167 = arith.negf %166 : vector<8x128xf32>
    %168 = math.exp %167 : vector<8x128xf32>
    %cst_50 = arith.constant 1.000000e+00 : f32
    %169 = vector.broadcast %cst_50 : f32 to vector<8x128xf32>
    %170 = arith.addf %169, %168 : vector<8x128xf32>
    %171 = arith.divf %169, %170 : vector<8x128xf32>
    %172 = vector.extract_strided_slice %165 {offsets = [0, 128], sizes = [8, 128], strides = [1, 1]} : vector<8x512xf32> to vector<8x128xf32>
    %173 = arith.negf %172 : vector<8x128xf32>
    %174 = math.exp %173 : vector<8x128xf32>
    %cst_51 = arith.constant 1.000000e+00 : f32
    %175 = vector.broadcast %cst_51 : f32 to vector<8x128xf32>
    %176 = arith.addf %175, %174 : vector<8x128xf32>
    %177 = arith.divf %175, %176 : vector<8x128xf32>
    %178 = vector.extract_strided_slice %165 {offsets = [0, 256], sizes = [8, 128], strides = [1, 1]} : vector<8x512xf32> to vector<8x128xf32>
    %179 = math.tanh %178 : vector<8x128xf32>
    %180 = vector.extract_strided_slice %165 {offsets = [0, 384], sizes = [8, 128], strides = [1, 1]} : vector<8x512xf32> to vector<8x128xf32>
    %181 = arith.negf %180 : vector<8x128xf32>
    %182 = math.exp %181 : vector<8x128xf32>
    %cst_52 = arith.constant 1.000000e+00 : f32
    %183 = vector.broadcast %cst_52 : f32 to vector<8x128xf32>
    %184 = arith.addf %183, %182 : vector<8x128xf32>
    %185 = arith.divf %183, %184 : vector<8x128xf32>
    %186 = arith.mulf %177, %126 : vector<8x128xf32>
    %187 = arith.mulf %171, %179 : vector<8x128xf32>
    %188 = arith.addf %186, %187 : vector<8x128xf32>
    %189 = math.tanh %188 : vector<8x128xf32>
    %190 = arith.mulf %185, %189 : vector<8x128xf32>
    %c3_i32 = arith.constant 3 : i32
    %191 = arith.index_cast %c3_i32 : i32 to index
    %c0_53 = arith.constant 0 : index
    %c0_54 = arith.constant 0 : index
    %192 = vector.load %arg1[%191, %c0_53, %c0_54] : memref<5x8x1024xf32, #tpu.memory_space<vmem>>, vector<1x8x1024xf32>
    %193 = vector.shape_cast %192 : vector<1x8x1024xf32> to vector<8x1024xf32>
    %c0_55 = arith.constant 0 : index
    %c0_56 = arith.constant 0 : index
    %194 = vector.load %arg2[%c0_55, %c0_56] : memref<256x1024xf32, #tpu.memory_space<vmem>>, vector<256x1024xf32>
    %cst_57 = arith.constant dense<0.000000e+00> : vector<8x1024xf32>
    %195 = tpu.matmul %159, %194, %cst_57 {dimension_numbers = #tpu.dot_dimension_numbers<[1], [0], [0], [1], [0, 0, 1, 1], [], []>} : vector<8x256xf32>, vector<256x1024xf32>, vector<8x1024xf32> -> vector<8x1024xf32>
    %196 = arith.addf %193, %195 : vector<8x1024xf32>
    %197 = vector.extract_strided_slice %196 {offsets = [0, 0], sizes = [8, 256], strides = [1, 1]} : vector<8x1024xf32> to vector<8x256xf32>
    %198 = arith.negf %197 : vector<8x256xf32>
    %199 = math.exp %198 : vector<8x256xf32>
    %cst_58 = arith.constant 1.000000e+00 : f32
    %200 = vector.broadcast %cst_58 : f32 to vector<8x256xf32>
    %201 = arith.addf %200, %199 : vector<8x256xf32>
    %202 = arith.divf %200, %201 : vector<8x256xf32>
    %203 = vector.extract_strided_slice %196 {offsets = [0, 256], sizes = [8, 256], strides = [1, 1]} : vector<8x1024xf32> to vector<8x256xf32>
    %204 = arith.negf %203 : vector<8x256xf32>
    %205 = math.exp %204 : vector<8x256xf32>
    %cst_59 = arith.constant 1.000000e+00 : f32
    %206 = vector.broadcast %cst_59 : f32 to vector<8x256xf32>
    %207 = arith.addf %206, %205 : vector<8x256xf32>
    %208 = arith.divf %206, %207 : vector<8x256xf32>
    %209 = vector.extract_strided_slice %196 {offsets = [0, 512], sizes = [8, 256], strides = [1, 1]} : vector<8x1024xf32> to vector<8x256xf32>
    %210 = math.tanh %209 : vector<8x256xf32>
    %211 = vector.extract_strided_slice %196 {offsets = [0, 768], sizes = [8, 256], strides = [1, 1]} : vector<8x1024xf32> to vector<8x256xf32>
    %212 = arith.negf %211 : vector<8x256xf32>
    %213 = math.exp %212 : vector<8x256xf32>
    %cst_60 = arith.constant 1.000000e+00 : f32
    %214 = vector.broadcast %cst_60 : f32 to vector<8x256xf32>
    %215 = arith.addf %214, %213 : vector<8x256xf32>
    %216 = arith.divf %214, %215 : vector<8x256xf32>
    %217 = arith.mulf %208, %157 : vector<8x256xf32>
    %218 = arith.mulf %202, %210 : vector<8x256xf32>
    %219 = arith.addf %217, %218 : vector<8x256xf32>
    %220 = math.tanh %219 : vector<8x256xf32>
    %221 = arith.mulf %216, %220 : vector<8x256xf32>
    %c0_61 = arith.constant 0 : index
    %c0_62 = arith.constant 0 : index
    %222 = vector.load %arg3[%c0_61, %c0_62] : memref<256x512xf32, #tpu.memory_space<vmem>>, vector<256x512xf32>
    %cst_63 = arith.constant dense<0.000000e+00> : vector<8x512xf32>
    %223 = tpu.matmul %221, %222, %cst_63 {dimension_numbers = #tpu.dot_dimension_numbers<[1], [0], [0], [1], [0, 0, 1, 1], [], []>} : vector<8x256xf32>, vector<256x512xf32>, vector<8x512xf32> -> vector<8x512xf32>
    %c0_64 = arith.constant 0 : index
    %c0_65 = arith.constant 0 : index
    %224 = vector.load %arg4[%c0_64, %c0_65] : memref<128x512xf32, #tpu.memory_space<vmem>>, vector<128x512xf32>
    %cst_66 = arith.constant dense<0.000000e+00> : vector<8x512xf32>
    %225 = tpu.matmul %190, %224, %cst_66 {dimension_numbers = #tpu.dot_dimension_numbers<[1], [0], [0], [1], [0, 0, 1, 1], [], []>} : vector<8x128xf32>, vector<128x512xf32>, vector<8x512xf32> -> vector<8x512xf32>
    %226 = arith.addf %223, %225 : vector<8x512xf32>
    %227 = arith.addf %226, %2 : vector<8x512xf32>
    %228 = vector.extract_strided_slice %227 {offsets = [0, 0], sizes = [8, 128], strides = [1, 1]} : vector<8x512xf32> to vector<8x128xf32>
    %229 = arith.negf %228 : vector<8x128xf32>
    %230 = math.exp %229 : vector<8x128xf32>
    %cst_67 = arith.constant 1.000000e+00 : f32
    %231 = vector.broadcast %cst_67 : f32 to vector<8x128xf32>
    %232 = arith.addf %231, %230 : vector<8x128xf32>
    %233 = arith.divf %231, %232 : vector<8x128xf32>
    %234 = vector.extract_strided_slice %227 {offsets = [0, 128], sizes = [8, 128], strides = [1, 1]} : vector<8x512xf32> to vector<8x128xf32>
    %235 = arith.negf %234 : vector<8x128xf32>
    %236 = math.exp %235 : vector<8x128xf32>
    %cst_68 = arith.constant 1.000000e+00 : f32
    %237 = vector.broadcast %cst_68 : f32 to vector<8x128xf32>
    %238 = arith.addf %237, %236 : vector<8x128xf32>
    %239 = arith.divf %237, %238 : vector<8x128xf32>
    %240 = vector.extract_strided_slice %227 {offsets = [0, 256], sizes = [8, 128], strides = [1, 1]} : vector<8x512xf32> to vector<8x128xf32>
    %241 = math.tanh %240 : vector<8x128xf32>
    %242 = vector.extract_strided_slice %227 {offsets = [0, 384], sizes = [8, 128], strides = [1, 1]} : vector<8x512xf32> to vector<8x128xf32>
    %243 = arith.negf %242 : vector<8x128xf32>
    %244 = math.exp %243 : vector<8x128xf32>
    %cst_69 = arith.constant 1.000000e+00 : f32
    %245 = vector.broadcast %cst_69 : f32 to vector<8x128xf32>
    %246 = arith.addf %245, %244 : vector<8x128xf32>
    %247 = arith.divf %245, %246 : vector<8x128xf32>
    %248 = arith.mulf %239, %188 : vector<8x128xf32>
    %249 = arith.mulf %233, %241 : vector<8x128xf32>
    %250 = arith.addf %248, %249 : vector<8x128xf32>
    %251 = math.tanh %250 : vector<8x128xf32>
    %252 = arith.mulf %247, %251 : vector<8x128xf32>
    %c4_i32 = arith.constant 4 : i32
    %253 = arith.index_cast %c4_i32 : i32 to index
    %c0_70 = arith.constant 0 : index
    %c0_71 = arith.constant 0 : index
    %254 = vector.load %arg1[%253, %c0_70, %c0_71] : memref<5x8x1024xf32, #tpu.memory_space<vmem>>, vector<1x8x1024xf32>
    %255 = vector.shape_cast %254 : vector<1x8x1024xf32> to vector<8x1024xf32>
    %c0_72 = arith.constant 0 : index
    %c0_73 = arith.constant 0 : index
    %256 = vector.load %arg2[%c0_72, %c0_73] : memref<256x1024xf32, #tpu.memory_space<vmem>>, vector<256x1024xf32>
    %cst_74 = arith.constant dense<0.000000e+00> : vector<8x1024xf32>
    %257 = tpu.matmul %221, %256, %cst_74 {dimension_numbers = #tpu.dot_dimension_numbers<[1], [0], [0], [1], [0, 0, 1, 1], [], []>} : vector<8x256xf32>, vector<256x1024xf32>, vector<8x1024xf32> -> vector<8x1024xf32>
    %258 = arith.addf %255, %257 : vector<8x1024xf32>
    %259 = vector.extract_strided_slice %258 {offsets = [0, 0], sizes = [8, 256], strides = [1, 1]} : vector<8x1024xf32> to vector<8x256xf32>
    %260 = arith.negf %259 : vector<8x256xf32>
    %261 = math.exp %260 : vector<8x256xf32>
    %cst_75 = arith.constant 1.000000e+00 : f32
    %262 = vector.broadcast %cst_75 : f32 to vector<8x256xf32>
    %263 = arith.addf %262, %261 : vector<8x256xf32>
    %264 = arith.divf %262, %263 : vector<8x256xf32>
    %265 = vector.extract_strided_slice %258 {offsets = [0, 256], sizes = [8, 256], strides = [1, 1]} : vector<8x1024xf32> to vector<8x256xf32>
    %266 = arith.negf %265 : vector<8x256xf32>
    %267 = math.exp %266 : vector<8x256xf32>
    %cst_76 = arith.constant 1.000000e+00 : f32
    %268 = vector.broadcast %cst_76 : f32 to vector<8x256xf32>
    %269 = arith.addf %268, %267 : vector<8x256xf32>
    %270 = arith.divf %268, %269 : vector<8x256xf32>
    %271 = vector.extract_strided_slice %258 {offsets = [0, 512], sizes = [8, 256], strides = [1, 1]} : vector<8x1024xf32> to vector<8x256xf32>
    %272 = math.tanh %271 : vector<8x256xf32>
    %273 = vector.extract_strided_slice %258 {offsets = [0, 768], sizes = [8, 256], strides = [1, 1]} : vector<8x1024xf32> to vector<8x256xf32>
    %274 = arith.negf %273 : vector<8x256xf32>
    %275 = math.exp %274 : vector<8x256xf32>
    %cst_77 = arith.constant 1.000000e+00 : f32
    %276 = vector.broadcast %cst_77 : f32 to vector<8x256xf32>
    %277 = arith.addf %276, %275 : vector<8x256xf32>
    %278 = arith.divf %276, %277 : vector<8x256xf32>
    %279 = arith.mulf %270, %219 : vector<8x256xf32>
    %280 = arith.mulf %264, %272 : vector<8x256xf32>
    %281 = arith.addf %279, %280 : vector<8x256xf32>
    %282 = math.tanh %281 : vector<8x256xf32>
    %283 = arith.mulf %278, %282 : vector<8x256xf32>
    %c0_78 = arith.constant 0 : index
    %c0_79 = arith.constant 0 : index
    %284 = vector.load %arg3[%c0_78, %c0_79] : memref<256x512xf32, #tpu.memory_space<vmem>>, vector<256x512xf32>
    %cst_80 = arith.constant dense<0.000000e+00> : vector<8x512xf32>
    %285 = tpu.matmul %283, %284, %cst_80 {dimension_numbers = #tpu.dot_dimension_numbers<[1], [0], [0], [1], [0, 0, 1, 1], [], []>} : vector<8x256xf32>, vector<256x512xf32>, vector<8x512xf32> -> vector<8x512xf32>
    %c0_81 = arith.constant 0 : index
    %c0_82 = arith.constant 0 : index
    %286 = vector.load %arg4[%c0_81, %c0_82] : memref<128x512xf32, #tpu.memory_space<vmem>>, vector<128x512xf32>
    %cst_83 = arith.constant dense<0.000000e+00> : vector<8x512xf32>
    %287 = tpu.matmul %252, %286, %cst_83 {dimension_numbers = #tpu.dot_dimension_numbers<[1], [0], [0], [1], [0, 0, 1, 1], [], []>} : vector<8x128xf32>, vector<128x512xf32>, vector<8x512xf32> -> vector<8x512xf32>
    %288 = arith.addf %285, %287 : vector<8x512xf32>
    %289 = arith.addf %288, %2 : vector<8x512xf32>
    %290 = vector.extract_strided_slice %289 {offsets = [0, 0], sizes = [8, 128], strides = [1, 1]} : vector<8x512xf32> to vector<8x128xf32>
    %291 = arith.negf %290 : vector<8x128xf32>
    %292 = math.exp %291 : vector<8x128xf32>
    %cst_84 = arith.constant 1.000000e+00 : f32
    %293 = vector.broadcast %cst_84 : f32 to vector<8x128xf32>
    %294 = arith.addf %293, %292 : vector<8x128xf32>
    %295 = arith.divf %293, %294 : vector<8x128xf32>
    %296 = vector.extract_strided_slice %289 {offsets = [0, 128], sizes = [8, 128], strides = [1, 1]} : vector<8x512xf32> to vector<8x128xf32>
    %297 = arith.negf %296 : vector<8x128xf32>
    %298 = math.exp %297 : vector<8x128xf32>
    %cst_85 = arith.constant 1.000000e+00 : f32
    %299 = vector.broadcast %cst_85 : f32 to vector<8x128xf32>
    %300 = arith.addf %299, %298 : vector<8x128xf32>
    %301 = arith.divf %299, %300 : vector<8x128xf32>
    %302 = vector.extract_strided_slice %289 {offsets = [0, 256], sizes = [8, 128], strides = [1, 1]} : vector<8x512xf32> to vector<8x128xf32>
    %303 = math.tanh %302 : vector<8x128xf32>
    %304 = vector.extract_strided_slice %289 {offsets = [0, 384], sizes = [8, 128], strides = [1, 1]} : vector<8x512xf32> to vector<8x128xf32>
    %305 = arith.negf %304 : vector<8x128xf32>
    %306 = math.exp %305 : vector<8x128xf32>
    %cst_86 = arith.constant 1.000000e+00 : f32
    %307 = vector.broadcast %cst_86 : f32 to vector<8x128xf32>
    %308 = arith.addf %307, %306 : vector<8x128xf32>
    %309 = arith.divf %307, %308 : vector<8x128xf32>
    %310 = arith.mulf %301, %250 : vector<8x128xf32>
    %311 = arith.mulf %295, %303 : vector<8x128xf32>
    %312 = arith.addf %310, %311 : vector<8x128xf32>
    %313 = math.tanh %312 : vector<8x128xf32>
    %314 = arith.mulf %309, %313 : vector<8x128xf32>
    %c5_i32 = arith.constant 5 : i32
    %c0_87 = arith.constant 0 : index
    %c0_88 = arith.constant 0 : index
    %315 = vector.load %arg6[%c0_87, %c0_88] : memref<8x128xf32, #tpu.memory_space<vmem>>, vector<8x128xf32>
    tpu.vector_store %arg6[%c0_87, %c0_88], %314 {strides = array<i32>} : memref<8x128xf32, #tpu.memory_space<vmem>>, vector<8x128xf32>,
    return
  }
  func.func @transform_0(%arg0: i32) -> (i32, i32, i32) {
    %c0_i32 = arith.constant 0 : i32
    %c0_i32_0 = arith.constant 0 : i32
    %c0_i32_1 = arith.constant 0 : i32
    return %c0_i32, %arg0, %c0_i32_0 : i32, i32, i32
  }
  func.func @transform_1(%arg0: i32) -> (i32, i32) {
    %c0_i32 = arith.constant 0 : i32
    %c0_i32_0 = arith.constant 0 : i32
    %c0_i32_1 = arith.constant 0 : i32
    return %c0_i32, %c0_i32_0 : i32, i32
  }
  func.func @transform_2(%arg0: i32) -> (i32, i32) {
    %c0_i32 = arith.constant 0 : i32
    %c0_i32_0 = arith.constant 0 : i32
    %c0_i32_1 = arith.constant 0 : i32
    return %c0_i32, %c0_i32_0 : i32, i32
  }
  func.func @transform_3(%arg0: i32) -> (i32, i32) {
    %c0_i32 = arith.constant 0 : i32
    %c0_i32_0 = arith.constant 0 : i32
    %c0_i32_1 = arith.constant 0 : i32
    return %c0_i32, %c0_i32_0 : i32, i32
  }
  func.func @transform_4(%arg0: i32) -> (i32, i32) {
    %c0_i32 = arith.constant 0 : i32
    %c0_i32_0 = arith.constant 0 : i32
    %c0_i32_1 = arith.constant 0 : i32
    return %c0_i32, %c0_i32_0 : i32, i32
  }
  func.func @transform_5(%arg0: i32) -> (i32, i32) {
    %c0_i32 = arith.constant 0 : i32
    %c0_i32_0 = arith.constant 0 : i32
    return %arg0, %c0_i32 : i32, i32
  }
}

</mosaic_0001>

<llo_original>
// kernel: lstm_encoder_pallas.1
$region0: #{lstm_encoder_pallas.1}
  #allocation0 [shape = 'u32[]', space=smem, size = 0x4, offset = 0x4, fixed_abs, tag = 'smem constant byte address 0x4 - core index']
  #allocation1 [shape = 'u32[72,128]{1,0:T(1,128)}', space=vmem, size = 0x9000, scoped, tag = 'internal scratch']
  %s0 = inlined_call_operand.vmem [shape: f32[5,8,1024], index: 0, kind: input, shape index: {}]
  %s1 = inlined_call_operand.vmem [shape: f32[256,1024], index: 1, kind: input, shape index: {}]
  %s2 = inlined_call_operand.vmem [shape: f32[256,512], index: 2, kind: input, shape index: {}]
  %s3 = inlined_call_operand.vmem [shape: f32[128,512], index: 3, kind: input, shape index: {}]
  %s4 = inlined_call_operand.vmem [shape: f32[1,512], index: 4, kind: input, shape index: {}]
  %s5 = inlined_call_operand.hbm [shape: f32[8,128], index: 5, kind: output, shape index: {}]
  %s6 = sld [smem:[#allocation0]]
  $region30: #{lstm_encoder_pallas.1} parent=0
    _
  %s8 = ssub.s32 1, %s6
  %s9 = scalar_select 0, %s8, %s6
  $region1: #{lstm_encoder_pallas.1} parent=0
    #allocation2 [shape = 'u8[4096]{0}', space=vmem, size = 0x1000, scoped, tag = 'output window, operand 0, single buffered']
    #allocation3 [shape = 's32[1]{0}', space=sflag, size = 0x4, scoped, tag = 'scoped memory for lstm_encoder_pallas.1']
    %10 = vsyncpa [#allocation3], 0
    // Predicated region
    $region2: #{lstm_encoder_pallas.1} parent=1 // pred_check
      _
    $region3: #{lstm_encoder_pallas.1} parent=1 // pred_check_branch
      %12 = sbr.rel (0) target = $region5
    $region4: #{lstm_encoder_pallas.1} parent=1 // pred_region
      _
    $region5: #{lstm_encoder_pallas.1} parent=1 // pred_fallthru
      _
    // Predicated region
    $region6: #{lstm_encoder_pallas.1} parent=1 // pred_check
      _
    $region7: #{lstm_encoder_pallas.1} parent=1 // pred_check_branch
      %14 = sbr.rel (0) target = $region9
    $region8: #{lstm_encoder_pallas.1} parent=1 // pred_region
      _
    $region9: #{lstm_encoder_pallas.1} parent=1 // pred_fallthru
      _
    // Predicated region
    $region10: #{lstm_encoder_pallas.1} parent=1 // pred_check
      _
    $region11: #{lstm_encoder_pallas.1} parent=1 // pred_check_branch
      %16 = sbr.rel (0) target = $region13
    $region12: #{lstm_encoder_pallas.1} parent=1 // pred_region
      _
    $region13: #{lstm_encoder_pallas.1} parent=1 // pred_fallthru
      _
    // Predicated region
    $region14: #{lstm_encoder_pallas.1} parent=1 // pred_check
      _
    $region15: #{lstm_encoder_pallas.1} parent=1 // pred_check_branch
      %18 = sbr.rel (0) target = $region17
    $region16: #{lstm_encoder_pallas.1} parent=1 // pred_region
      _
    $region17: #{lstm_encoder_pallas.1} parent=1 // pred_fallthru
      _
    // Predicated region
    $region18: #{lstm_encoder_pallas.1} parent=1 // pred_check
      _
    $region19: #{lstm_encoder_pallas.1} parent=1 // pred_check_branch
      %20 = sbr.rel (0) target = $region21
    $region20: #{lstm_encoder_pallas.1} parent=1 // pred_region
      _
    $region21: #{lstm_encoder_pallas.1} parent=1 // pred_fallthru
      _
    %v21 = vld [vmem:[%s4] sm:$0xf]
    %v23 = vperm.slane %v21, 0
    %v24 = vperm.slane %v21, 1
    %v25 = vperm.slane %v21, 2
    %v26 = vperm.slane %v21, 3
    %v31 = vld [vmem:[%s0] sm:$0xff]
    %v32 = vld [vmem:[%s0 + $0x8] sm:$0xff]
    %v33 = vld [vmem:[%s0 + $0x10] sm:$0xff]
    %v34 = vld [vmem:[%s0 + $0x18] sm:$0xff]
    %v35 = vld [vmem:[%s0 + $0x20] sm:$0xff]
    %v36 = vld [vmem:[%s0 + $0x28] sm:$0xff]
    %v37 = vld [vmem:[%s0 + $0x30] sm:$0xff]
    %v38 = vld [vmem:[%s0 + $0x38] sm:$0xff]
    %v39 = vld [vmem:[%s1] sm:$0xff]
    %v40 = vld [vmem:[%s1 + $0x8] sm:$0xff]
    %v41 = vld [vmem:[%s1 + $0x10] sm:$0xff]
    %v42 = vld [vmem:[%s1 + $0x18] sm:$0xff]
    %v43 = vld [vmem:[%s1 + $0x20] sm:$0xff]
    %v44 = vld [vmem:[%s1 + $0x28] sm:$0xff]
    %v45 = vld [vmem:[%s1 + $0x30] sm:$0xff]
    %v46 = vld [vmem:[%s1 + $0x38] sm:$0xff]
    %v47 = vld [vmem:[%s1 + $0x40] sm:$0xff]
    %v48 = vld [vmem:[%s1 + $0x48] sm:$0xff]
    %v49 = vld [vmem:[%s1 + $0x50] sm:$0xff]
    %v50 = vld [vmem:[%s1 + $0x58] sm:$0xff]
    %v51 = vld [vmem:[%s1 + $0x60] sm:$0xff]
    %v52 = vld [vmem:[%s1 + $0x68] sm:$0xff]
    %v53 = vld [vmem:[%s1 + $0x70] sm:$0xff]
    %v54 = vld [vmem:[%s1 + $0x78] sm:$0xff]
    %v55 = vld [vmem:[%s1 + $0x80] sm:$0xff]
    %v56 = vld [vmem:[%s1 + $0x88] sm:$0xff]
    %v57 = vld [vmem:[%s1 + $0x90] sm:$0xff]
    %v58 = vld [vmem:[%s1 + $0x98] sm:$0xff]
    %v59 = vld [vmem:[%s1 + $0xa0] sm:$0xff]
    %v60 = vld [vmem:[%s1 + $0xa8] sm:$0xff]
    %v61 = vld [vmem:[%s1 + $0xb0] sm:$0xff]
    %v62 = vld [vmem:[%s1 + $0xb8] sm:$0xff]
    %v63 = vld [vmem:[%s1 + $0xc0] sm:$0xff]
    %v64 = vld [vmem:[%s1 + $0xc8] sm:$0xff]
    %v65 = vld [vmem:[%s1 + $0xd0] sm:$0xff]
    %v66 = vld [vmem:[%s1 + $0xd8] sm:$0xff]
    %v67 = vld [vmem:[%s1 + $0xe0] sm:$0xff]
    %v68 = vld [vmem:[%s1 + $0xe8] sm:$0xff]
    %v69 = vld [vmem:[%s1 + $0xf0] sm:$0xff]
    %v70 = vld [vmem:[%s1 + $0xf8] sm:$0xff]
    %v71 = vld [vmem:[%s1 + $0x100] sm:$0xff]
    %v72 = vld [vmem:[%s1 + $0x108] sm:$0xff]
    %v73 = vld [vmem:[%s1 + $0x110] sm:$0xff]
    %v74 = vld [vmem:[%s1 + $0x118] sm:$0xff]
    %v75 = vld [vmem:[%s1 + $0x120] sm:$0xff]
    %v76 = vld [vmem:[%s1 + $0x128] sm:$0xff]
    %v77 = vld [vmem:[%s1 + $0x130] sm:$0xff]
    %v78 = vld [vmem:[%s1 + $0x138] sm:$0xff]
    %v79 = vld [vmem:[%s1 + $0x140] sm:$0xff]
    %v80 = vld [vmem:[%s1 + $0x148] sm:$0xff]
    %v81 = vld [vmem:[%s1 + $0x150] sm:$0xff]
    %v82 = vld [vmem:[%s1 + $0x158] sm:$0xff]
    %v83 = vld [vmem:[%s1 + $0x160] sm:$0xff]
    %v84 = vld [vmem:[%s1 + $0x168] sm:$0xff]
    %v85 = vld [vmem:[%s1 + $0x170] sm:$0xff]
    %v86 = vld [vmem:[%s1 + $0x178] sm:$0xff]
    %v87 = vld [vmem:[%s1 + $0x180] sm:$0xff]
    %v88 = vld [vmem:[%s1 + $0x188] sm:$0xff]
    %v89 = vld [vmem:[%s1 + $0x190] sm:$0xff]
    %v90 = vld [vmem:[%s1 + $0x198] sm:$0xff]
    %v91 = vld [vmem:[%s1 + $0x1a0] sm:$0xff]
    %v92 = vld [vmem:[%s1 + $0x1a8] sm:$0xff]
    %v93 = vld [vmem:[%s1 + $0x1b0] sm:$0xff]
    %v94 = vld [vmem:[%s1 + $0x1b8] sm:$0xff]
    %v95 = vld [vmem:[%s1 + $0x1c0] sm:$0xff]
    %v96 = vld [vmem:[%s1 + $0x1c8] sm:$0xff]
    %v97 = vld [vmem:[%s1 + $0x1d0] sm:$0xff]
    %v98 = vld [vmem:[%s1 + $0x1d8] sm:$0xff]
    %v99 = vld [vmem:[%s1 + $0x1e0] sm:$0xff]
    %v100 = vld [vmem:[%s1 + $0x1e8] sm:$0xff]
    %v101 = vld [vmem:[%s1 + $0x1f0] sm:$0xff]
    %v102 = vld [vmem:[%s1 + $0x1f8] sm:$0xff]
    %v103 = vld [vmem:[%s1 + $0x200] sm:$0xff]
    %v104 = vld [vmem:[%s1 + $0x208] sm:$0xff]
    %v105 = vld [vmem:[%s1 + $0x210] sm:$0xff]
    %v106 = vld [vmem:[%s1 + $0x218] sm:$0xff]
    %v107 = vld [vmem:[%s1 + $0x220] sm:$0xff]
    %v108 = vld [vmem:[%s1 + $0x228] sm:$0xff]
    %v109 = vld [vmem:[%s1 + $0x230] sm:$0xff]
    %v110 = vld [vmem:[%s1 + $0x238] sm:$0xff]
    %v111 = vld [vmem:[%s1 + $0x240] sm:$0xff]
    %v112 = vld [vmem:[%s1 + $0x248] sm:$0xff]
    %v113 = vld [vmem:[%s1 + $0x250] sm:$0xff]
    %v114 = vld [vmem:[%s1 + $0x258] sm:$0xff]
    %v115 = vld [vmem:[%s1 + $0x260] sm:$0xff]
    %v116 = vld [vmem:[%s1 + $0x268] sm:$0xff]
    %v117 = vld [vmem:[%s1 + $0x270] sm:$0xff]
    %v118 = vld [vmem:[%s1 + $0x278] sm:$0xff]
    %v119 = vld [vmem:[%s1 + $0x280] sm:$0xff]
    %v120 = vld [vmem:[%s1 + $0x288] sm:$0xff]
    %v121 = vld [vmem:[%s1 + $0x290] sm:$0xff]
    %v122 = vld [vmem:[%s1 + $0x298] sm:$0xff]
    %v123 = vld [vmem:[%s1 + $0x2a0] sm:$0xff]
    %v124 = vld [vmem:[%s1 + $0x2a8] sm:$0xff]
    %v125 = vld [vmem:[%s1 + $0x2b0] sm:$0xff]
    %v126 = vld [vmem:[%s1 + $0x2b8] sm:$0xff]
    %v127 = vld [vmem:[%s1 + $0x2c0] sm:$0xff]
    %v128 = vld [vmem:[%s1 + $0x2c8] sm:$0xff]
    %v129 = vld [vmem:[%s1 + $0x2d0] sm:$0xff]
    %v130 = vld [vmem:[%s1 + $0x2d8] sm:$0xff]
    %v131 = vld [vmem:[%s1 + $0x2e0] sm:$0xff]
    %v132 = vld [vmem:[%s1 + $0x2e8] sm:$0xff]
    %v133 = vld [vmem:[%s1 + $0x2f0] sm:$0xff]
    %v134 = vld [vmem:[%s1 + $0x2f8] sm:$0xff]
    %v135 = vld [vmem:[%s1 + $0x300] sm:$0xff]
    %v136 = vld [vmem:[%s1 + $0x308] sm:$0xff]
    %v137 = vld [vmem:[%s1 + $0x310] sm:$0xff]
    %v138 = vld [vmem:[%s1 + $0x318] sm:$0xff]
    %v139 = vld [vmem:[%s1 + $0x320] sm:$0xff]
    %v140 = vld [vmem:[%s1 + $0x328] sm:$0xff]
    %v141 = vld [vmem:[%s1 + $0x330] sm:$0xff]
    %v142 = vld [vmem:[%s1 + $0x338] sm:$0xff]
    %v143 = vld [vmem:[%s1 + $0x340] sm:$0xff]
    %v144 = vld [vmem:[%s1 + $0x348] sm:$0xff]
    %v145 = vld [vmem:[%s1 + $0x350] sm:$0xff]
    %v146 = vld [vmem:[%s1 + $0x358] sm:$0xff]
    %v147 = vld [vmem:[%s1 + $0x360] sm:$0xff]
    %v148 = vld [vmem:[%s1 + $0x368] sm:$0xff]
    %v149 = vld [vmem:[%s1 + $0x370] sm:$0xff]
    %v150 = vld [vmem:[%s1 + $0x378] sm:$0xff]
    %v151 = vld [vmem:[%s1 + $0x380] sm:$0xff]
    %v152 = vld [vmem:[%s1 + $0x388] sm:$0xff]
    %v153 = vld [vmem:[%s1 + $0x390] sm:$0xff]
    %v154 = vld [vmem:[%s1 + $0x398] sm:$0xff]
    %v155 = vld [vmem:[%s1 + $0x3a0] sm:$0xff]
    %v156 = vld [vmem:[%s1 + $0x3a8] sm:$0xff]
    %v157 = vld [vmem:[%s1 + $0x3b0] sm:$0xff]
    %v158 = vld [vmem:[%s1 + $0x3b8] sm:$0xff]
    %v159 = vld [vmem:[%s1 + $0x3c0] sm:$0xff]
    %v160 = vld [vmem:[%s1 + $0x3c8] sm:$0xff]
    %v161 = vld [vmem:[%s1 + $0x3d0] sm:$0xff]
    %v162 = vld [vmem:[%s1 + $0x3d8] sm:$0xff]
    %v163 = vld [vmem:[%s1 + $0x3e0] sm:$0xff]
    %v164 = vld [vmem:[%s1 + $0x3e8] sm:$0xff]
    %v165 = vld [vmem:[%s1 + $0x3f0] sm:$0xff]
    %v166 = vld [vmem:[%s1 + $0x3f8] sm:$0xff]
    %v167 = vld [vmem:[%s1 + $0x400] sm:$0xff]
    %v168 = vld [vmem:[%s1 + $0x408] sm:$0xff]
    %v169 = vld [vmem:[%s1 + $0x410] sm:$0xff]
    %v170 = vld [vmem:[%s1 + $0x418] sm:$0xff]
    %v171 = vld [vmem:[%s1 + $0x420] sm:$0xff]
    %v172 = vld [vmem:[%s1 + $0x428] sm:$0xff]
    %v173 = vld [vmem:[%s1 + $0x430] sm:$0xff]
    %v174 = vld [vmem:[%s1 + $0x438] sm:$0xff]
    %v175 = vld [vmem:[%s1 + $0x440] sm:$0xff]
    %v176 = vld [vmem:[%s1 + $0x448] sm:$0xff]
    %v177 = vld [vmem:[%s1 + $0x450] sm:$0xff]
    %v178 = vld [vmem:[%s1 + $0x458] sm:$0xff]
    %v179 = vld [vmem:[%s1 + $0x460] sm:$0xff]
    %v180 = vld [vmem:[%s1 + $0x468] sm:$0xff]
    %v181 = vld [vmem:[%s1 + $0x470] sm:$0xff]
    %v182 = vld [vmem:[%s1 + $0x478] sm:$0xff]
    %v183 = vld [vmem:[%s1 + $0x480] sm:$0xff]
    %v184 = vld [vmem:[%s1 + $0x488] sm:$0xff]
    %v185 = vld [vmem:[%s1 + $0x490] sm:$0xff]
    %v186 = vld [vmem:[%s1 + $0x498] sm:$0xff]
    %v187 = vld [vmem:[%s1 + $0x4a0] sm:$0xff]
    %v188 = vld [vmem:[%s1 + $0x4a8] sm:$0xff]
    %v189 = vld [vmem:[%s1 + $0x4b0] sm:$0xff]
    %v190 = vld [vmem:[%s1 + $0x4b8] sm:$0xff]
    %v191 = vld [vmem:[%s1 + $0x4c0] sm:$0xff]
    %v192 = vld [vmem:[%s1 + $0x4c8] sm:$0xff]
    %v193 = vld [vmem:[%s1 + $0x4d0] sm:$0xff]
    %v194 = vld [vmem:[%s1 + $0x4d8] sm:$0xff]
    %v195 = vld [vmem:[%s1 + $0x4e0] sm:$0xff]
    %v196 = vld [vmem:[%s1 + $0x4e8] sm:$0xff]
    %v197 = vld [vmem:[%s1 + $0x4f0] sm:$0xff]
    %v198 = vld [vmem:[%s1 + $0x4f8] sm:$0xff]
    %v199 = vld [vmem:[%s1 + $0x500] sm:$0xff]
    %v200 = vld [vmem:[%s1 + $0x508] sm:$0xff]
    %v201 = vld [vmem:[%s1 + $0x510] sm:$0xff]
    %v202 = vld [vmem:[%s1 + $0x518] sm:$0xff]
    %v203 = vld [vmem:[%s1 + $0x520] sm:$0xff]
    %v204 = vld [vmem:[%s1 + $0x528] sm:$0xff]
    %v205 = vld [vmem:[%s1 + $0x530] sm:$0xff]
    %v206 = vld [vmem:[%s1 + $0x538] sm:$0xff]
    %v207 = vld [vmem:[%s1 + $0x540] sm:$0xff]
    %v208 = vld [vmem:[%s1 + $0x548] sm:$0xff]
    %v209 = vld [vmem:[%s1 + $0x550] sm:$0xff]
    %v210 = vld [vmem:[%s1 + $0x558] sm:$0xff]
    %v211 = vld [vmem:[%s1 + $0x560] sm:$0xff]
    %v212 = vld [vmem:[%s1 + $0x568] sm:$0xff]
    %v213 = vld [vmem:[%s1 + $0x570] sm:$0xff]
    %v214 = vld [vmem:[%s1 + $0x578] sm:$0xff]
    %v215 = vld [vmem:[%s1 + $0x580] sm:$0xff]
    %v216 = vld [vmem:[%s1 + $0x588] sm:$0xff]
    %v217 = vld [vmem:[%s1 + $0x590] sm:$0xff]
    %v218 = vld [vmem:[%s1 + $0x598] sm:$0xff]
    %v219 = vld [vmem:[%s1 + $0x5a0] sm:$0xff]
    %v220 = vld [vmem:[%s1 + $0x5a8] sm:$0xff]
    %v221 = vld [vmem:[%s1 + $0x5b0] sm:$0xff]
    %v222 = vld [vmem:[%s1 + $0x5b8] sm:$0xff]
    %v223 = vld [vmem:[%s1 + $0x5c0] sm:$0xff]
    %v224 = vld [vmem:[%s1 + $0x5c8] sm:$0xff]
    %v225 = vld [vmem:[%s1 + $0x5d0] sm:$0xff]
    %v226 = vld [vmem:[%s1 + $0x5d8] sm:$0xff]
    %v227 = vld [vmem:[%s1 + $0x5e0] sm:$0xff]
    %v228 = vld [vmem:[%s1 + $0x5e8] sm:$0xff]
    %v229 = vld [vmem:[%s1 + $0x5f0] sm:$0xff]
    %v230 = vld [vmem:[%s1 + $0x5f8] sm:$0xff]
    %v231 = vld [vmem:[%s1 + $0x600] sm:$0xff]
    %v232 = vld [vmem:[%s1 + $0x608] sm:$0xff]
    %v233 = vld [vmem:[%s1 + $0x610] sm:$0xff]
    %v234 = vld [vmem:[%s1 + $0x618] sm:$0xff]
    %v235 = vld [vmem:[%s1 + $0x620] sm:$0xff]
    %v236 = vld [vmem:[%s1 + $0x628] sm:$0xff]
    %v237 = vld [vmem:[%s1 + $0x630] sm:$0xff]
    %v238 = vld [vmem:[%s1 + $0x638] sm:$0xff]
    %v239 = vld [vmem:[%s1 + $0x640] sm:$0xff]
    %v240 = vld [vmem:[%s1 + $0x648] sm:$0xff]
    %v241 = vld [vmem:[%s1 + $0x650] sm:$0xff]
    %v242 = vld [vmem:[%s1 + $0x658] sm:$0xff]
    %v243 = vld [vmem:[%s1 + $0x660] sm:$0xff]
    %v244 = vld [vmem:[%s1 + $0x668] sm:$0xff]
    %v245 = vld [vmem:[%s1 + $0x670] sm:$0xff]
    %v246 = vld [vmem:[%s1 + $0x678] sm:$0xff]
    %v247 = vld [vmem:[%s1 + $0x680] sm:$0xff]
    %v248 = vld [vmem:[%s1 + $0x688] sm:$0xff]
    %v249 = vld [vmem:[%s1 + $0x690] sm:$0xff]
    %v250 = vld [vmem:[%s1 + $0x698] sm:$0xff]
    %v251 = vld [vmem:[%s1 + $0x6a0] sm:$0xff]
    %v252 = vld [vmem:[%s1 + $0x6a8] sm:$0xff]
    %v253 = vld [vmem:[%s1 + $0x6b0] sm:$0xff]
    %v254 = vld [vmem:[%s1 + $0x6b8] sm:$0xff]
    %v255 = vld [vmem:[%s1 + $0x6c0] sm:$0xff]
    %v256 = vld [vmem:[%s1 + $0x6c8] sm:$0xff]
    %v257 = vld [vmem:[%s1 + $0x6d0] sm:$0xff]
    %v258 = vld [vmem:[%s1 + $0x6d8] sm:$0xff]
    %v259 = vld [vmem:[%s1 + $0x6e0] sm:$0xff]
    %v260 = vld [vmem:[%s1 + $0x6e8] sm:$0xff]
    %v261 = vld [vmem:[%s1 + $0x6f0] sm:$0xff]
    %v262 = vld [vmem:[%s1 + $0x6f8] sm:$0xff]
    %v263 = vld [vmem:[%s1 + $0x700] sm:$0xff]
    %v264 = vld [vmem:[%s1 + $0x708] sm:$0xff]
    %v265 = vld [vmem:[%s1 + $0x710] sm:$0xff]
    %v266 = vld [vmem:[%s1 + $0x718] sm:$0xff]
    %v267 = vld [vmem:[%s1 + $0x720] sm:$0xff]
    %v268 = vld [vmem:[%s1 + $0x728] sm:$0xff]
    %v269 = vld [vmem:[%s1 + $0x730] sm:$0xff]
    %v270 = vld [vmem:[%s1 + $0x738] sm:$0xff]
    %v271 = vld [vmem:[%s1 + $0x740] sm:$0xff]
    %v272 = vld [vmem:[%s1 + $0x748] sm:$0xff]
    %v273 = vld [vmem:[%s1 + $0x750] sm:$0xff]
    %v274 = vld [vmem:[%s1 + $0x758] sm:$0xff]
    %v275 = vld [vmem:[%s1 + $0x760] sm:$0xff]
    %v276 = vld [vmem:[%s1 + $0x768] sm:$0xff]
    %v277 = vld [vmem:[%s1 + $0x770] sm:$0xff]
    %v278 = vld [vmem:[%s1 + $0x778] sm:$0xff]
    %v279 = vld [vmem:[%s1 + $0x780] sm:$0xff]
    %v280 = vld [vmem:[%s1 + $0x788] sm:$0xff]
    %v281 = vld [vmem:[%s1 + $0x790] sm:$0xff]
    %v282 = vld [vmem:[%s1 + $0x798] sm:$0xff]
    %v283 = vld [vmem:[%s1 + $0x7a0] sm:$0xff]
    %v284 = vld [vmem:[%s1 + $0x7a8] sm:$0xff]
    %v285 = vld [vmem:[%s1 + $0x7b0] sm:$0xff]
    %v286 = vld [vmem:[%s1 + $0x7b8] sm:$0xff]
    %v287 = vld [vmem:[%s1 + $0x7c0] sm:$0xff]
    %v288 = vld [vmem:[%s1 + $0x7c8] sm:$0xff]
    %v289 = vld [vmem:[%s1 + $0x7d0] sm:$0xff]
    %v290 = vld [vmem:[%s1 + $0x7d8] sm:$0xff]
    %v291 = vld [vmem:[%s1 + $0x7e0] sm:$0xff]
    %v292 = vld [vmem:[%s1 + $0x7e8] sm:$0xff]
    %v293 = vld [vmem:[%s1 + $0x7f0] sm:$0xff]
    %v294 = vld [vmem:[%s1 + $0x7f8] sm:$0xff]
    %295 = vmatpush.msra.mxu0 %v159
    %296 = vmatpush.msra.mxu0 %v151
    %297 = vmatpush.msra.mxu0 %v143
    %298 = vmatpush.msra.mxu0 %v135
    %299 = vmatpush.msra.mxu0 %v127
    %300 = vmatpush.msra.mxu0 %v119
    %301 = vmatpush.msra.mxu0 %v111
    %302 = vmatpush.msra.mxu0 %v103
    %303 = vmatpush.msra.mxu0 %v95
    %304 = vmatpush.msra.mxu0 %v87
    %305 = vmatpush.msra.mxu0 %v79
    %306 = vmatpush.msra.mxu0 %v71
    %307 = vmatpush.msra.mxu0 %v63
    %308 = vmatpush.msra.mxu0 %v55
    %309 = vmatpush.msra.mxu0 %v47
    %310 = vmatpush.msra.mxu0 %v39
    %311 = vmatmul.f32.gmra.mxu0 0.0
    %v312 = vpop.f32.mrf.mxu0
    %v313 = vadd.f32 0.0, %v312
    %314 = vdwg.mxu0
    %315 = vmatpush.msra.mxu0 %v287
    %316 = vmatpush.msra.mxu0 %v279
    %317 = vmatpush.msra.mxu0 %v271
    %318 = vmatpush.msra.mxu0 %v263
    %319 = vmatpush.msra.mxu0 %v255
    %320 = vmatpush.msra.mxu0 %v247
    %321 = vmatpush.msra.mxu0 %v239
    %322 = vmatpush.msra.mxu0 %v231
    %323 = vmatpush.msra.mxu0 %v223
    %324 = vmatpush.msra.mxu0 %v215
    %325 = vmatpush.msra.mxu0 %v207
    %326 = vmatpush.msra.mxu0 %v199
    %327 = vmatpush.msra.mxu0 %v191
    %328 = vmatpush.msra.mxu0 %v183
    %329 = vmatpush.msra.mxu0 %v175
    %330 = vmatpush.msra.mxu0 %v167
    %331 = vmatmul.f32.gmra.mxu0 0.0
    %v332 = vpop.f32.mrf.mxu0
    %v333 = vadd.f32 %v313, %v332
    %334 = vdwg.mxu0
    %335 = vmatpush.msra.mxu0 %v160
    %336 = vmatpush.msra.mxu0 %v152
    %337 = vmatpush.msra.mxu0 %v144
    %338 = vmatpush.msra.mxu0 %v136
    %339 = vmatpush.msra.mxu0 %v128
    %340 = vmatpush.msra.mxu0 %v120
    %341 = vmatpush.msra.mxu0 %v112
    %342 = vmatpush.msra.mxu0 %v104
    %343 = vmatpush.msra.mxu0 %v96
    %344 = vmatpush.msra.mxu0 %v88
    %345 = vmatpush.msra.mxu0 %v80
    %346 = vmatpush.msra.mxu0 %v72
    %347 = vmatpush.msra.mxu0 %v64
    %348 = vmatpush.msra.mxu0 %v56
    %349 = vmatpush.msra.mxu0 %v48
    %350 = vmatpush.msra.mxu0 %v40
    %351 = vmatmul.f32.gmra.mxu0 0.0
    %v352 = vpop.f32.mrf.mxu0
    %v353 = vadd.f32 0.0, %v352
    %354 = vdwg.mxu0
    %355 = vmatpush.msra.mxu0 %v288
    %356 = vmatpush.msra.mxu0 %v280
    %357 = vmatpush.msra.mxu0 %v272
    %358 = vmatpush.msra.mxu0 %v264
    %359 = vmatpush.msra.mxu0 %v256
    %360 = vmatpush.msra.mxu0 %v248
    %361 = vmatpush.msra.mxu0 %v240
    %362 = vmatpush.msra.mxu0 %v232
    %363 = vmatpush.msra.mxu0 %v224
    %364 = vmatpush.msra.mxu0 %v216
    %365 = vmatpush.msra.mxu0 %v208
    %366 = vmatpush.msra.mxu0 %v200
    %367 = vmatpush.msra.mxu0 %v192
    %368 = vmatpush.msra.mxu0 %v184
    %369 = vmatpush.msra.mxu0 %v176
    %370 = vmatpush.msra.mxu0 %v168
    %371 = vmatmul.f32.gmra.mxu0 0.0
    %v372 = vpop.f32.mrf.mxu0
    %v373 = vadd.f32 %v353, %v372
    %374 = vdwg.mxu0
    %375 = vmatpush.msra.mxu0 %v161
    %376 = vmatpush.msra.mxu0 %v153
    %377 = vmatpush.msra.mxu0 %v145
    %378 = vmatpush.msra.mxu0 %v137
    %379 = vmatpush.msra.mxu0 %v129
    %380 = vmatpush.msra.mxu0 %v121
    %381 = vmatpush.msra.mxu0 %v113
    %382 = vmatpush.msra.mxu0 %v105
    %383 = vmatpush.msra.mxu0 %v97
    %384 = vmatpush.msra.mxu0 %v89
    %385 = vmatpush.msra.mxu0 %v81
    %386 = vmatpush.msra.mxu0 %v73
    %387 = vmatpush.msra.mxu0 %v65
    %388 = vmatpush.msra.mxu0 %v57
    %389 = vmatpush.msra.mxu0 %v49
    %390 = vmatpush.msra.mxu0 %v41
    %391 = vmatmul.f32.gmra.mxu0 0.0
    %v392 = vpop.f32.mrf.mxu0
    %v393 = vadd.f32 0.0, %v392
    %394 = vdwg.mxu0
    %395 = vmatpush.msra.mxu0 %v289
    %396 = vmatpush.msra.mxu0 %v281
    %397 = vmatpush.msra.mxu0 %v273
    %398 = vmatpush.msra.mxu0 %v265
    %399 = vmatpush.msra.mxu0 %v257
    %400 = vmatpush.msra.mxu0 %v249
    %401 = vmatpush.msra.mxu0 %v241
    %402 = vmatpush.msra.mxu0 %v233
    %403 = vmatpush.msra.mxu0 %v225
    %404 = vmatpush.msra.mxu0 %v217
    %405 = vmatpush.msra.mxu0 %v209
    %406 = vmatpush.msra.mxu0 %v201
    %407 = vmatpush.msra.mxu0 %v193
    %408 = vmatpush.msra.mxu0 %v185
    %409 = vmatpush.msra.mxu0 %v177
    %410 = vmatpush.msra.mxu0 %v169
    %411 = vmatmul.f32.gmra.mxu0 0.0
    %v412 = vpop.f32.mrf.mxu0
    %v413 = vadd.f32 %v393, %v412
    %414 = vdwg.mxu0
    %415 = vmatpush.msra.mxu0 %v162
    %416 = vmatpush.msra.mxu0 %v154
    %417 = vmatpush.msra.mxu0 %v146
    %418 = vmatpush.msra.mxu0 %v138
    %419 = vmatpush.msra.mxu0 %v130
    %420 = vmatpush.msra.mxu0 %v122
    %421 = vmatpush.msra.mxu0 %v114
    %422 = vmatpush.msra.mxu0 %v106
    %423 = vmatpush.msra.mxu0 %v98
    %424 = vmatpush.msra.mxu0 %v90
    %425 = vmatpush.msra.mxu0 %v82
    %426 = vmatpush.msra.mxu0 %v74
    %427 = vmatpush.msra.mxu0 %v66
    %428 = vmatpush.msra.mxu0 %v58
    %429 = vmatpush.msra.mxu0 %v50
    %430 = vmatpush.msra.mxu0 %v42
    %431 = vmatmul.f32.gmra.mxu0 0.0
    %v432 = vpop.f32.mrf.mxu0
    %v433 = vadd.f32 0.0, %v432
    %434 = vdwg.mxu0
    %435 = vmatpush.msra.mxu0 %v290
    %436 = vmatpush.msra.mxu0 %v282
    %437 = vmatpush.msra.mxu0 %v274
    %438 = vmatpush.msra.mxu0 %v266
    %439 = vmatpush.msra.mxu0 %v258
    %440 = vmatpush.msra.mxu0 %v250
    %441 = vmatpush.msra.mxu0 %v242
    %442 = vmatpush.msra.mxu0 %v234
    %443 = vmatpush.msra.mxu0 %v226
    %444 = vmatpush.msra.mxu0 %v218
    %445 = vmatpush.msra.mxu0 %v210
    %446 = vmatpush.msra.mxu0 %v202
    %447 = vmatpush.msra.mxu0 %v194
    %448 = vmatpush.msra.mxu0 %v186
    %449 = vmatpush.msra.mxu0 %v178
    %450 = vmatpush.msra.mxu0 %v170
    %451 = vmatmul.f32.gmra.mxu0 0.0
    %v452 = vpop.f32.mrf.mxu0
    %v453 = vadd.f32 %v433, %v452
    %454 = vdwg.mxu0
    %455 = vmatpush.msra.mxu0 %v163
    %456 = vmatpush.msra.mxu0 %v155
    %457 = vmatpush.msra.mxu0 %v147
    %458 = vmatpush.msra.mxu0 %v139
    %459 = vmatpush.msra.mxu0 %v131
    %460 = vmatpush.msra.mxu0 %v123
    %461 = vmatpush.msra.mxu0 %v115
    %462 = vmatpush.msra.mxu0 %v107
    %463 = vmatpush.msra.mxu0 %v99
    %464 = vmatpush.msra.mxu0 %v91
    %465 = vmatpush.msra.mxu0 %v83
    %466 = vmatpush.msra.mxu0 %v75
    %467 = vmatpush.msra.mxu0 %v67
    %468 = vmatpush.msra.mxu0 %v59
    %469 = vmatpush.msra.mxu0 %v51
    %470 = vmatpush.msra.mxu0 %v43
    %471 = vmatmul.f32.gmra.mxu0 0.0
    %v472 = vpop.f32.mrf.mxu0
    %v473 = vadd.f32 0.0, %v472
    %474 = vdwg.mxu0
    %475 = vmatpush.msra.mxu0 %v291
    %476 = vmatpush.msra.mxu0 %v283
    %477 = vmatpush.msra.mxu0 %v275
    %478 = vmatpush.msra.mxu0 %v267
    %479 = vmatpush.msra.mxu0 %v259
    %480 = vmatpush.msra.mxu0 %v251
    %481 = vmatpush.msra.mxu0 %v243
    %482 = vmatpush.msra.mxu0 %v235
    %483 = vmatpush.msra.mxu0 %v227
    %484 = vmatpush.msra.mxu0 %v219
    %485 = vmatpush.msra.mxu0 %v211
    %486 = vmatpush.msra.mxu0 %v203
    %487 = vmatpush.msra.mxu0 %v195
    %488 = vmatpush.msra.mxu0 %v187
    %489 = vmatpush.msra.mxu0 %v179
    %490 = vmatpush.msra.mxu0 %v171
    %491 = vmatmul.f32.gmra.mxu0 0.0
    %v492 = vpop.f32.mrf.mxu0
    %v493 = vadd.f32 %v473, %v492
    %494 = vdwg.mxu0
    %495 = vmatpush.msra.mxu0 %v164
    %496 = vmatpush.msra.mxu0 %v156
    %497 = vmatpush.msra.mxu0 %v148
    %498 = vmatpush.msra.mxu0 %v140
    %499 = vmatpush.msra.mxu0 %v132
    %500 = vmatpush.msra.mxu0 %v124
    %501 = vmatpush.msra.mxu0 %v116
    %502 = vmatpush.msra.mxu0 %v108
    %503 = vmatpush.msra.mxu0 %v100
    %504 = vmatpush.msra.mxu0 %v92
    %505 = vmatpush.msra.mxu0 %v84
    %506 = vmatpush.msra.mxu0 %v76
    %507 = vmatpush.msra.mxu0 %v68
    %508 = vmatpush.msra.mxu0 %v60
    %509 = vmatpush.msra.mxu0 %v52
    %510 = vmatpush.msra.mxu0 %v44
    %511 = vmatmul.f32.gmra.mxu0 0.0
    %v512 = vpop.f32.mrf.mxu0
    %v513 = vadd.f32 0.0, %v512
    %514 = vdwg.mxu0
    %515 = vmatpush.msra.mxu0 %v292
    %516 = vmatpush.msra.mxu0 %v284
    %517 = vmatpush.msra.mxu0 %v276
    %518 = vmatpush.msra.mxu0 %v268
    %519 = vmatpush.msra.mxu0 %v260
    %520 = vmatpush.msra.mxu0 %v252
    %521 = vmatpush.msra.mxu0 %v244
    %522 = vmatpush.msra.mxu0 %v236
    %523 = vmatpush.msra.mxu0 %v228
    %524 = vmatpush.msra.mxu0 %v220
    %525 = vmatpush.msra.mxu0 %v212
    %526 = vmatpush.msra.mxu0 %v204
    %527 = vmatpush.msra.mxu0 %v196
    %528 = vmatpush.msra.mxu0 %v188
    %529 = vmatpush.msra.mxu0 %v180
    %530 = vmatpush.msra.mxu0 %v172
    %531 = vmatmul.f32.gmra.mxu0 0.0
    %v532 = vpop.f32.mrf.mxu0
    %v533 = vadd.f32 %v513, %v532
    %534 = vdwg.mxu0
    %535 = vmatpush.msra.mxu0 %v165
    %536 = vmatpush.msra.mxu0 %v157
    %537 = vmatpush.msra.mxu0 %v149
    %538 = vmatpush.msra.mxu0 %v141
    %539 = vmatpush.msra.mxu0 %v133
    %540 = vmatpush.msra.mxu0 %v125
    %541 = vmatpush.msra.mxu0 %v117
    %542 = vmatpush.msra.mxu0 %v109
    %543 = vmatpush.msra.mxu0 %v101
    %544 = vmatpush.msra.mxu0 %v93
    %545 = vmatpush.msra.mxu0 %v85
    %546 = vmatpush.msra.mxu0 %v77
    %547 = vmatpush.msra.mxu0 %v69
    %548 = vmatpush.msra.mxu0 %v61
    %549 = vmatpush.msra.mxu0 %v53
    %550 = vmatpush.msra.mxu0 %v45
    %551 = vmatmul.f32.gmra.mxu0 0.0
    %v552 = vpop.f32.mrf.mxu0
    %v553 = vadd.f32 0.0, %v552
    %554 = vdwg.mxu0
    %555 = vmatpush.msra.mxu0 %v293
    %556 = vmatpush.msra.mxu0 %v285
    %557 = vmatpush.msra.mxu0 %v277
    %558 = vmatpush.msra.mxu0 %v269
    %559 = vmatpush.msra.mxu0 %v261
    %560 = vmatpush.msra.mxu0 %v253
    %561 = vmatpush.msra.mxu0 %v245
    %562 = vmatpush.msra.mxu0 %v237
    %563 = vmatpush.msra.mxu0 %v229
    %564 = vmatpush.msra.mxu0 %v221
    %565 = vmatpush.msra.mxu0 %v213
    %566 = vmatpush.msra.mxu0 %v205
    %567 = vmatpush.msra.mxu0 %v197
    %568 = vmatpush.msra.mxu0 %v189
    %569 = vmatpush.msra.mxu0 %v181
    %570 = vmatpush.msra.mxu0 %v173
    %571 = vmatmul.f32.gmra.mxu0 0.0
    %v572 = vpop.f32.mrf.mxu0
    %v573 = vadd.f32 %v553, %v572
    %574 = vdwg.mxu0
    %575 = vmatpush.msra.mxu0 %v166
    %576 = vmatpush.msra.mxu0 %v158
    %577 = vmatpush.msra.mxu0 %v150
    %578 = vmatpush.msra.mxu0 %v142
    %579 = vmatpush.msra.mxu0 %v134
    %580 = vmatpush.msra.mxu0 %v126
    %581 = vmatpush.msra.mxu0 %v118
    %582 = vmatpush.msra.mxu0 %v110
    %583 = vmatpush.msra.mxu0 %v102
    %584 = vmatpush.msra.mxu0 %v94
    %585 = vmatpush.msra.mxu0 %v86
    %586 = vmatpush.msra.mxu0 %v78
    %587 = vmatpush.msra.mxu0 %v70
    %588 = vmatpush.msra.mxu0 %v62
    %589 = vmatpush.msra.mxu0 %v54
    %590 = vmatpush.msra.mxu0 %v46
    %591 = vmatmul.f32.gmra.mxu0 0.0
    %v592 = vpop.f32.mrf.mxu0
    %v593 = vadd.f32 0.0, %v592
    %594 = vdwg.mxu0
    %595 = vmatpush.msra.mxu0 %v294
    %596 = vmatpush.msra.mxu0 %v286
    %597 = vmatpush.msra.mxu0 %v278
    %598 = vmatpush.msra.mxu0 %v270
    %599 = vmatpush.msra.mxu0 %v262
    %600 = vmatpush.msra.mxu0 %v254
    %601 = vmatpush.msra.mxu0 %v246
    %602 = vmatpush.msra.mxu0 %v238
    %603 = vmatpush.msra.mxu0 %v230
    %604 = vmatpush.msra.mxu0 %v222
    %605 = vmatpush.msra.mxu0 %v214
    %606 = vmatpush.msra.mxu0 %v206
    %607 = vmatpush.msra.mxu0 %v198
    %608 = vmatpush.msra.mxu0 %v190
    %609 = vmatpush.msra.mxu0 %v182
    %610 = vmatpush.msra.mxu0 %v174
    %611 = vmatmul.f32.gmra.mxu0 0.0
    %v612 = vpop.f32.mrf.mxu0
    %v613 = vadd.f32 %v593, %v612
    %614 = vdwg.mxu0
    %v615 = vadd.f32 %v31, %v333
    %v616 = vadd.f32 %v32, %v373
    %v617 = vadd.f32 %v33, %v413
    %v618 = vadd.f32 %v34, %v453
    %v619 = vadd.f32 %v35, %v493
    %v620 = vadd.f32 %v36, %v533
    %v621 = vadd.f32 %v37, %v573
    %v622 = vadd.f32 %v38, %v613
    %v623 = vxor.u32 %v615, 2147483648
    %v624 = vxor.u32 %v616, 2147483648
    %v625 = vmul.f32 %v623, 1.442695
    %v626 = vpow.pop %v625
    %v627 = vmul.f32 %v624, 1.442695
    %v628 = vpow.pop %v627
    %v629 = vadd.f32 %v626, 1.0
    %v630 = vadd.f32 %v628, 1.0
    %v631 = vrcp.pop %v629
    %v632 = vmul.f32 %v629, %v631
    %v633 = vsub.f32 1.0, %v632
    %v634 = vmul.f32 %v631, %v633
    %v635 = vadd.f32 %v631, %v634
    %vm636 = vweird.f32 %v629
    %vm637 = vweird.f32 %v631
    %vm638 = vmor %vm636, %vm637
    %v639 = vsel %vm638, %v631, %v635
    %v640 = vand.u32 2147483647, %v629
    %vm641 = vcmp.eq.f32.partialorder %v640, 8.507059e+37
    %v642 = vand.u32 %v629, 2147483648
    %v643 = vor.u32 1.1754944e-38, %v642
    %v644 = vsel %vm641, %v643, %v639
    %v645 = vmul.f32 1.0, %v644
    %v646 = vrcp.pop %v630
    %v647 = vmul.f32 %v630, %v646
    %v648 = vsub.f32 1.0, %v647
    %v649 = vmul.f32 %v646, %v648
    %v650 = vadd.f32 %v646, %v649
    %vm651 = vweird.f32 %v630
    %vm652 = vweird.f32 %v646
    %vm653 = vmor %vm651, %vm652
    %v654 = vsel %vm653, %v646, %v650
    %v655 = vand.u32 2147483647, %v630
    %vm656 = vcmp.eq.f32.partialorder %v655, 8.507059e+37
    %v657 = vand.u32 %v630, 2147483648
    %v658 = vor.u32 1.1754944e-38, %v657
    %v659 = vsel %vm656, %v658, %v654
    %v660 = vmul.f32 1.0, %v659
    %v661 = vxor.u32 %v617, 2147483648
    %v662 = vxor.u32 %v618, 2147483648
    %v663 = vmul.f32 %v661, 1.442695
    %v664 = vpow.pop %v663
    %v665 = vmul.f32 %v662, 1.442695
    %v666 = vpow.pop %v665
    %v667 = vadd.f32 %v664, 1.0
    %v668 = vadd.f32 %v666, 1.0
    %v669 = vrcp.pop %v667
    %v670 = vmul.f32 %v667, %v669
    %v671 = vsub.f32 1.0, %v670
    %v672 = vmul.f32 %v669, %v671
    %v673 = vadd.f32 %v669, %v672
    %vm674 = vweird.f32 %v667
    %vm675 = vweird.f32 %v669
    %vm676 = vmor %vm674, %vm675
    %v677 = vsel %vm676, %v669, %v673
    %v678 = vand.u32 2147483647, %v667
    %vm679 = vcmp.eq.f32.partialorder %v678, 8.507059e+37
    %v680 = vand.u32 %v667, 2147483648
    %v681 = vor.u32 1.1754944e-38, %v680
    %v682 = vsel %vm679, %v681, %v677
    %v683 = vmul.f32 1.0, %v682
    %v684 = vrcp.pop %v668
    %v685 = vmul.f32 %v668, %v684
    %v686 = vsub.f32 1.0, %v685
    %v687 = vmul.f32 %v684, %v686
    %v688 = vadd.f32 %v684, %v687
    %vm689 = vweird.f32 %v668
    %vm690 = vweird.f32 %v684
    %vm691 = vmor %vm689, %vm690
    %v692 = vsel %vm691, %v684, %v688
    %v693 = vand.u32 2147483647, %v668
    %vm694 = vcmp.eq.f32.partialorder %v693, 8.507059e+37
    %v695 = vand.u32 %v668, 2147483648
    %v696 = vor.u32 1.1754944e-38, %v695
    %v697 = vsel %vm694, %v696, %v692
    %v698 = vmul.f32 1.0, %v697
    %v699 = vtanh.pop %v619
    %v700 = vtanh.pop %v620
    %v701 = vxor.u32 %v621, 2147483648
    %v702 = vxor.u32 %v622, 2147483648
    %v703 = vmul.f32 %v701, 1.442695
    %v704 = vpow.pop %v703
    %v705 = vmul.f32 %v702, 1.442695
    %v706 = vpow.pop %v705
    %v707 = vadd.f32 %v704, 1.0
    %v708 = vadd.f32 %v706, 1.0
    %v709 = vrcp.pop %v707
    %v710 = vmul.f32 %v707, %v709
    %v711 = vsub.f32 1.0, %v710
    %v712 = vmul.f32 %v709, %v711
    %v713 = vadd.f32 %v709, %v712
    %vm714 = vweird.f32 %v707
    %vm715 = vweird.f32 %v709
    %vm716 = vmor %vm714, %vm715
    %v717 = vsel %vm716, %v709, %v713
    %v718 = vand.u32 2147483647, %v707
    %vm719 = vcmp.eq.f32.partialorder %v718, 8.507059e+37
    %v720 = vand.u32 %v707, 2147483648
    %v721 = vor.u32 1.1754944e-38, %v720
    %v722 = vsel %vm719, %v721, %v717
    %v723 = vmul.f32 1.0, %v722
    %v724 = vrcp.pop %v708
    %v725 = vmul.f32 %v708, %v724
    %v726 = vsub.f32 1.0, %v725
    %v727 = vmul.f32 %v724, %v726
    %v728 = vadd.f32 %v724, %v727
    %vm729 = vweird.f32 %v708
    %vm730 = vweird.f32 %v724
    %vm731 = vmor %vm729, %vm730
    %v732 = vsel %vm731, %v724, %v728
    %v733 = vand.u32 2147483647, %v708
    %vm734 = vcmp.eq.f32.partialorder %v733, 8.507059e+37
    %v735 = vand.u32 %v708, 2147483648
    %v736 = vor.u32 1.1754944e-38, %v735
    %v737 = vsel %vm734, %v736, %v732
    %v738 = vmul.f32 1.0, %v737
    %v739 = vmul.f32 %v683, 0.0
    %v740 = vmul.f32 %v698, 0.0
    %v741 = vmul.f32 %v645, %v699
    %v742 = vmul.f32 %v660, %v700
    %v743 = vadd.f32 %v739, %v741
    %v744 = vadd.f32 %v740, %v742
    %v745 = vtanh.pop %v743
    %v746 = vtanh.pop %v744
    %v747 = vmul.f32 %v723, %v745
    %v748 = vmul.f32 %v738, %v746
    %v749 = vld [vmem:[%s2] sm:$0xff]
    %v750 = vld [vmem:[%s2 + $0x8] sm:$0xff]
    %v751 = vld [vmem:[%s2 + $0x10] sm:$0xff]
    %v752 = vld [vmem:[%s2 + $0x18] sm:$0xff]
    %v753 = vld [vmem:[%s2 + $0x20] sm:$0xff]
    %v754 = vld [vmem:[%s2 + $0x28] sm:$0xff]
    %v755 = vld [vmem:[%s2 + $0x30] sm:$0xff]
    %v756 = vld [vmem:[%s2 + $0x38] sm:$0xff]
    %v757 = vld [vmem:[%s2 + $0x40] sm:$0xff]
    %v758 = vld [vmem:[%s2 + $0x48] sm:$0xff]
    %v759 = vld [vmem:[%s2 + $0x50] sm:$0xff]
    %v760 = vld [vmem:[%s2 + $0x58] sm:$0xff]
    %v761 = vld [vmem:[%s2 + $0x60] sm:$0xff]
    %v762 = vld [vmem:[%s2 + $0x68] sm:$0xff]
    %v763 = vld [vmem:[%s2 + $0x70] sm:$0xff]
    %v764 = vld [vmem:[%s2 + $0x78] sm:$0xff]
    %v765 = vld [vmem:[%s2 + $0x80] sm:$0xff]
    %v766 = vld [vmem:[%s2 + $0x88] sm:$0xff]
    %v767 = vld [vmem:[%s2 + $0x90] sm:$0xff]
    %v768 = vld [vmem:[%s2 + $0x98] sm:$0xff]
    %v769 = vld [vmem:[%s2 + $0xa0] sm:$0xff]
    %v770 = vld [vmem:[%s2 + $0xa8] sm:$0xff]
    %v771 = vld [vmem:[%s2 + $0xb0] sm:$0xff]
    %v772 = vld [vmem:[%s2 + $0xb8] sm:$0xff]
    %v773 = vld [vmem:[%s2 + $0xc0] sm:$0xff]
    %v774 = vld [vmem:[%s2 + $0xc8] sm:$0xff]
    %v775 = vld [vmem:[%s2 + $0xd0] sm:$0xff]
    %v776 = vld [vmem:[%s2 + $0xd8] sm:$0xff]
    %v777 = vld [vmem:[%s2 + $0xe0] sm:$0xff]
    %v778 = vld [vmem:[%s2 + $0xe8] sm:$0xff]
    %v779 = vld [vmem:[%s2 + $0xf0] sm:$0xff]
    %v780 = vld [vmem:[%s2 + $0xf8] sm:$0xff]
    %v781 = vld [vmem:[%s2 + $0x100] sm:$0xff]
    %v782 = vld [vmem:[%s2 + $0x108] sm:$0xff]
    %v783 = vld [vmem:[%s2 + $0x110] sm:$0xff]
    %v784 = vld [vmem:[%s2 + $0x118] sm:$0xff]
    %v785 = vld [vmem:[%s2 + $0x120] sm:$0xff]
    %v786 = vld [vmem:[%s2 + $0x128] sm:$0xff]
    %v787 = vld [vmem:[%s2 + $0x130] sm:$0xff]
    %v788 = vld [vmem:[%s2 + $0x138] sm:$0xff]
    %v789 = vld [vmem:[%s2 + $0x140] sm:$0xff]
    %v790 = vld [vmem:[%s2 + $0x148] sm:$0xff]
    %v791 = vld [vmem:[%s2 + $0x150] sm:$0xff]
    %v792 = vld [vmem:[%s2 + $0x158] sm:$0xff]
    %v793 = vld [vmem:[%s2 + $0x160] sm:$0xff]
    %v794 = vld [vmem:[%s2 + $0x168] sm:$0xff]
    %v795 = vld [vmem:[%s2 + $0x170] sm:$0xff]
    %v796 = vld [vmem:[%s2 + $0x178] sm:$0xff]
    %v797 = vld [vmem:[%s2 + $0x180] sm:$0xff]
    %v798 = vld [vmem:[%s2 + $0x188] sm:$0xff]
    %v799 = vld [vmem:[%s2 + $0x190] sm:$0xff]
    %v800 = vld [vmem:[%s2 + $0x198] sm:$0xff]
    %v801 = vld [vmem:[%s2 + $0x1a0] sm:$0xff]
    %v802 = vld [vmem:[%s2 + $0x1a8] sm:$0xff]
    %v803 = vld [vmem:[%s2 + $0x1b0] sm:$0xff]
    %v804 = vld [vmem:[%s2 + $0x1b8] sm:$0xff]
    %v805 = vld [vmem:[%s2 + $0x1c0] sm:$0xff]
    %v806 = vld [vmem:[%s2 + $0x1c8] sm:$0xff]
    %v807 = vld [vmem:[%s2 + $0x1d0] sm:$0xff]
    %v808 = vld [vmem:[%s2 + $0x1d8] sm:$0xff]
    %v809 = vld [vmem:[%s2 + $0x1e0] sm:$0xff]
    %v810 = vld [vmem:[%s2 + $0x1e8] sm:$0xff]
    %v811 = vld [vmem:[%s2 + $0x1f0] sm:$0xff]
    %v812 = vld [vmem:[%s2 + $0x1f8] sm:$0xff]
    %v813 = vld [vmem:[%s2 + $0x200] sm:$0xff]
    %v814 = vld [vmem:[%s2 + $0x208] sm:$0xff]
    %v815 = vld [vmem:[%s2 + $0x210] sm:$0xff]
    %v816 = vld [vmem:[%s2 + $0x218] sm:$0xff]
    %v817 = vld [vmem:[%s2 + $0x220] sm:$0xff]
    %v818 = vld [vmem:[%s2 + $0x228] sm:$0xff]
    %v819 = vld [vmem:[%s2 + $0x230] sm:$0xff]
    %v820 = vld [vmem:[%s2 + $0x238] sm:$0xff]
    %v821 = vld [vmem:[%s2 + $0x240] sm:$0xff]
    %v822 = vld [vmem:[%s2 + $0x248] sm:$0xff]
    %v823 = vld [vmem:[%s2 + $0x250] sm:$0xff]
    %v824 = vld [vmem:[%s2 + $0x258] sm:$0xff]
    %v825 = vld [vmem:[%s2 + $0x260] sm:$0xff]
    %v826 = vld [vmem:[%s2 + $0x268] sm:$0xff]
    %v827 = vld [vmem:[%s2 + $0x270] sm:$0xff]
    %v828 = vld [vmem:[%s2 + $0x278] sm:$0xff]
    %v829 = vld [vmem:[%s2 + $0x280] sm:$0xff]
    %v830 = vld [vmem:[%s2 + $0x288] sm:$0xff]
    %v831 = vld [vmem:[%s2 + $0x290] sm:$0xff]
    %v832 = vld [vmem:[%s2 + $0x298] sm:$0xff]
    %v833 = vld [vmem:[%s2 + $0x2a0] sm:$0xff]
    %v834 = vld [vmem:[%s2 + $0x2a8] sm:$0xff]
    %v835 = vld [vmem:[%s2 + $0x2b0] sm:$0xff]
    %v836 = vld [vmem:[%s2 + $0x2b8] sm:$0xff]
    %v837 = vld [vmem:[%s2 + $0x2c0] sm:$0xff]
    %v838 = vld [vmem:[%s2 + $0x2c8] sm:$0xff]
    %v839 = vld [vmem:[%s2 + $0x2d0] sm:$0xff]
    %v840 = vld [vmem:[%s2 + $0x2d8] sm:$0xff]
    %v841 = vld [vmem:[%s2 + $0x2e0] sm:$0xff]
    %v842 = vld [vmem:[%s2 + $0x2e8] sm:$0xff]
    %v843 = vld [vmem:[%s2 + $0x2f0] sm:$0xff]
    %v844 = vld [vmem:[%s2 + $0x2f8] sm:$0xff]
    %v845 = vld [vmem:[%s2 + $0x300] sm:$0xff]
    %v846 = vld [vmem:[%s2 + $0x308] sm:$0xff]
    %v847 = vld [vmem:[%s2 + $0x310] sm:$0xff]
    %v848 = vld [vmem:[%s2 + $0x318] sm:$0xff]
    %v849 = vld [vmem:[%s2 + $0x320] sm:$0xff]
    %v850 = vld [vmem:[%s2 + $0x328] sm:$0xff]
    %v851 = vld [vmem:[%s2 + $0x330] sm:$0xff]
    %v852 = vld [vmem:[%s2 + $0x338] sm:$0xff]
    %v853 = vld [vmem:[%s2 + $0x340] sm:$0xff]
    %v854 = vld [vmem:[%s2 + $0x348] sm:$0xff]
    %v855 = vld [vmem:[%s2 + $0x350] sm:$0xff]
    %v856 = vld [vmem:[%s2 + $0x358] sm:$0xff]
    %v857 = vld [vmem:[%s2 + $0x360] sm:$0xff]
    %v858 = vld [vmem:[%s2 + $0x368] sm:$0xff]
    %v859 = vld [vmem:[%s2 + $0x370] sm:$0xff]
    %v860 = vld [vmem:[%s2 + $0x378] sm:$0xff]
    %v861 = vld [vmem:[%s2 + $0x380] sm:$0xff]
    %v862 = vld [vmem:[%s2 + $0x388] sm:$0xff]
    %v863 = vld [vmem:[%s2 + $0x390] sm:$0xff]
    %v864 = vld [vmem:[%s2 + $0x398] sm:$0xff]
    %v865 = vld [vmem:[%s2 + $0x3a0] sm:$0xff]
    %v866 = vld [vmem:[%s2 + $0x3a8] sm:$0xff]
    %v867 = vld [vmem:[%s2 + $0x3b0] sm:$0xff]
    %v868 = vld [vmem:[%s2 + $0x3b8] sm:$0xff]
    %v869 = vld [vmem:[%s2 + $0x3c0] sm:$0xff]
    %v870 = vld [vmem:[%s2 + $0x3c8] sm:$0xff]
    %v871 = vld [vmem:[%s2 + $0x3d0] sm:$0xff]
    %v872 = vld [vmem:[%s2 + $0x3d8] sm:$0xff]
    %v873 = vld [vmem:[%s2 + $0x3e0] sm:$0xff]
    %v874 = vld [vmem:[%s2 + $0x3e8] sm:$0xff]
    %v875 = vld [vmem:[%s2 + $0x3f0] sm:$0xff]
    %v876 = vld [vmem:[%s2 + $0x3f8] sm:$0xff]
    %v877 = vld [vmem:[%s3] sm:$0xff]
    %v878 = vld [vmem:[%s3 + $0x8] sm:$0xff]
    %v879 = vld [vmem:[%s3 + $0x10] sm:$0xff]
    %v880 = vld [vmem:[%s3 + $0x18] sm:$0xff]
    %v881 = vld [vmem:[%s3 + $0x20] sm:$0xff]
    %v882 = vld [vmem:[%s3 + $0x28] sm:$0xff]
    %v883 = vld [vmem:[%s3 + $0x30] sm:$0xff]
    %v884 = vld [vmem:[%s3 + $0x38] sm:$0xff]
    %v885 = vld [vmem:[%s3 + $0x40] sm:$0xff]
    %v886 = vld [vmem:[%s3 + $0x48] sm:$0xff]
    %v887 = vld [vmem:[%s3 + $0x50] sm:$0xff]
    %v888 = vld [vmem:[%s3 + $0x58] sm:$0xff]
    %v889 = vld [vmem:[%s3 + $0x60] sm:$0xff]
    %v890 = vld [vmem:[%s3 + $0x68] sm:$0xff]
    %v891 = vld [vmem:[%s3 + $0x70] sm:$0xff]
    %v892 = vld [vmem:[%s3 + $0x78] sm:$0xff]
    %v893 = vld [vmem:[%s3 + $0x80] sm:$0xff]
    %v894 = vld [vmem:[%s3 + $0x88] sm:$0xff]
    %v895 = vld [vmem:[%s3 + $0x90] sm:$0xff]
    %v896 = vld [vmem:[%s3 + $0x98] sm:$0xff]
    %v897 = vld [vmem:[%s3 + $0xa0] sm:$0xff]
    %v898 = vld [vmem:[%s3 + $0xa8] sm:$0xff]
    %v899 = vld [vmem:[%s3 + $0xb0] sm:$0xff]
    %v900 = vld [vmem:[%s3 + $0xb8] sm:$0xff]
    %v901 = vld [vmem:[%s3 + $0xc0] sm:$0xff]
    %v902 = vld [vmem:[%s3 + $0xc8] sm:$0xff]
    %v903 = vld [vmem:[%s3 + $0xd0] sm:$0xff]
    %v904 = vld [vmem:[%s3 + $0xd8] sm:$0xff]
    %v905 = vld [vmem:[%s3 + $0xe0] sm:$0xff]
    %v906 = vld [vmem:[%s3 + $0xe8] sm:$0xff]
    %v907 = vld [vmem:[%s3 + $0xf0] sm:$0xff]
    %v908 = vld [vmem:[%s3 + $0xf8] sm:$0xff]
    %v909 = vld [vmem:[%s3 + $0x100] sm:$0xff]
    %v910 = vld [vmem:[%s3 + $0x108] sm:$0xff]
    %v911 = vld [vmem:[%s3 + $0x110] sm:$0xff]
    %v912 = vld [vmem:[%s3 + $0x118] sm:$0xff]
    %v913 = vld [vmem:[%s3 + $0x120] sm:$0xff]
    %v914 = vld [vmem:[%s3 + $0x128] sm:$0xff]
    %v915 = vld [vmem:[%s3 + $0x130] sm:$0xff]
    %v916 = vld [vmem:[%s3 + $0x138] sm:$0xff]
    %v917 = vld [vmem:[%s3 + $0x140] sm:$0xff]
    %v918 = vld [vmem:[%s3 + $0x148] sm:$0xff]
    %v919 = vld [vmem:[%s3 + $0x150] sm:$0xff]
    %v920 = vld [vmem:[%s3 + $0x158] sm:$0xff]
    %v921 = vld [vmem:[%s3 + $0x160] sm:$0xff]
    %v922 = vld [vmem:[%s3 + $0x168] sm:$0xff]
    %v923 = vld [vmem:[%s3 + $0x170] sm:$0xff]
    %v924 = vld [vmem:[%s3 + $0x178] sm:$0xff]
    %v925 = vld [vmem:[%s3 + $0x180] sm:$0xff]
    %v926 = vld [vmem:[%s3 + $0x188] sm:$0xff]
    %v927 = vld [vmem:[%s3 + $0x190] sm:$0xff]
    %v928 = vld [vmem:[%s3 + $0x198] sm:$0xff]
    %v929 = vld [vmem:[%s3 + $0x1a0] sm:$0xff]
    %v930 = vld [vmem:[%s3 + $0x1a8] sm:$0xff]
    %v931 = vld [vmem:[%s3 + $0x1b0] sm:$0xff]
    %v932 = vld [vmem:[%s3 + $0x1b8] sm:$0xff]
    %v933 = vld [vmem:[%s3 + $0x1c0] sm:$0xff]
    %v934 = vld [vmem:[%s3 + $0x1c8] sm:$0xff]
    %v935 = vld [vmem:[%s3 + $0x1d0] sm:$0xff]
    %v936 = vld [vmem:[%s3 + $0x1d8] sm:$0xff]
    %v937 = vld [vmem:[%s3 + $0x1e0] sm:$0xff]
    %v938 = vld [vmem:[%s3 + $0x1e8] sm:$0xff]
    %v939 = vld [vmem:[%s3 + $0x1f0] sm:$0xff]
    %v940 = vld [vmem:[%s3 + $0x1f8] sm:$0xff]
    %941 = vmatpush.msra.mxu0 %v937
    %942 = vmatpush.msra.mxu0 %v933
    %943 = vmatpush.msra.mxu0 %v929
    %944 = vmatpush.msra.mxu0 %v925
    %945 = vmatpush.msra.mxu0 %v921
    %946 = vmatpush.msra.mxu0 %v917
    %947 = vmatpush.msra.mxu0 %v913
    %948 = vmatpush.msra.mxu0 %v909
    %949 = vmatpush.msra.mxu0 %v905
    %950 = vmatpush.msra.mxu0 %v901
    %951 = vmatpush.msra.mxu0 %v897
    %952 = vmatpush.msra.mxu0 %v893
    %953 = vmatpush.msra.mxu0 %v889
    %954 = vmatpush.msra.mxu0 %v885
    %955 = vmatpush.msra.mxu0 %v881
    %956 = vmatpush.msra.mxu0 %v877
    %957 = vmatmul.f32.gmra.mxu0 0.0
    %v958 = vpop.f32.mrf.mxu0
    %v959 = vadd.f32 0.0, %v958
    %960 = vdwg.mxu0
    %961 = vmatpush.msra.mxu0 %v938
    %962 = vmatpush.msra.mxu0 %v934
    %963 = vmatpush.msra.mxu0 %v930
    %964 = vmatpush.msra.mxu0 %v926
    %965 = vmatpush.msra.mxu0 %v922
    %966 = vmatpush.msra.mxu0 %v918
    %967 = vmatpush.msra.mxu0 %v914
    %968 = vmatpush.msra.mxu0 %v910
    %969 = vmatpush.msra.mxu0 %v906
    %970 = vmatpush.msra.mxu0 %v902
    %971 = vmatpush.msra.mxu0 %v898
    %972 = vmatpush.msra.mxu0 %v894
    %973 = vmatpush.msra.mxu0 %v890
    %974 = vmatpush.msra.mxu0 %v886
    %975 = vmatpush.msra.mxu0 %v882
    %976 = vmatpush.msra.mxu0 %v878
    %977 = vmatmul.f32.gmra.mxu0 0.0
    %v978 = vpop.f32.mrf.mxu0
    %v979 = vadd.f32 0.0, %v978
    %980 = vdwg.mxu0
    %981 = vmatpush.msra.mxu0 %v939
    %982 = vmatpush.msra.mxu0 %v935
    %983 = vmatpush.msra.mxu0 %v931
    %984 = vmatpush.msra.mxu0 %v927
    %985 = vmatpush.msra.mxu0 %v923
    %986 = vmatpush.msra.mxu0 %v919
    %987 = vmatpush.msra.mxu0 %v915
    %988 = vmatpush.msra.mxu0 %v911
    %989 = vmatpush.msra.mxu0 %v907
    %990 = vmatpush.msra.mxu0 %v903
    %991 = vmatpush.msra.mxu0 %v899
    %992 = vmatpush.msra.mxu0 %v895
    %993 = vmatpush.msra.mxu0 %v891
    %994 = vmatpush.msra.mxu0 %v887
    %995 = vmatpush.msra.mxu0 %v883
    %996 = vmatpush.msra.mxu0 %v879
    %997 = vmatmul.f32.gmra.mxu0 0.0
    %v998 = vpop.f32.mrf.mxu0
    %v999 = vadd.f32 0.0, %v998
    %1000 = vdwg.mxu0
    %1001 = vmatpush.msra.mxu0 %v940
    %1002 = vmatpush.msra.mxu0 %v936
    %1003 = vmatpush.msra.mxu0 %v932
    %1004 = vmatpush.msra.mxu0 %v928
    %1005 = vmatpush.msra.mxu0 %v924
    %1006 = vmatpush.msra.mxu0 %v920
    %1007 = vmatpush.msra.mxu0 %v916
    %1008 = vmatpush.msra.mxu0 %v912
    %1009 = vmatpush.msra.mxu0 %v908
    %1010 = vmatpush.msra.mxu0 %v904
    %1011 = vmatpush.msra.mxu0 %v900
    %1012 = vmatpush.msra.mxu0 %v896
    %1013 = vmatpush.msra.mxu0 %v892
    %1014 = vmatpush.msra.mxu0 %v888
    %1015 = vmatpush.msra.mxu0 %v884
    %1016 = vmatpush.msra.mxu0 %v880
    %1017 = vmatmul.f32.gmra.mxu0 0.0
    %v1018 = vpop.f32.mrf.mxu0
    %v1019 = vadd.f32 0.0, %v1018
    %1020 = vdwg.mxu0
    %1021 = vmatpush.msra.mxu0 %v809
    %1022 = vmatpush.msra.mxu0 %v805
    %1023 = vmatpush.msra.mxu0 %v801
    %1024 = vmatpush.msra.mxu0 %v797
    %1025 = vmatpush.msra.mxu0 %v793
    %1026 = vmatpush.msra.mxu0 %v789
    %1027 = vmatpush.msra.mxu0 %v785
    %1028 = vmatpush.msra.mxu0 %v781
    %1029 = vmatpush.msra.mxu0 %v777
    %1030 = vmatpush.msra.mxu0 %v773
    %1031 = vmatpush.msra.mxu0 %v769
    %1032 = vmatpush.msra.mxu0 %v765
    %1033 = vmatpush.msra.mxu0 %v761
    %1034 = vmatpush.msra.mxu0 %v757
    %1035 = vmatpush.msra.mxu0 %v753
    %1036 = vmatpush.msra.mxu0 %v749
    %1037 = vmatmul.f32.gmra.mxu0 %v747
    %v1038 = vpop.f32.mrf.mxu0
    %v1039 = vadd.f32 %v959, %v1038
    %1040 = vdwg.mxu0
    %1041 = vmatpush.msra.mxu0 %v873
    %1042 = vmatpush.msra.mxu0 %v869
    %1043 = vmatpush.msra.mxu0 %v865
    %1044 = vmatpush.msra.mxu0 %v861
    %1045 = vmatpush.msra.mxu0 %v857
    %1046 = vmatpush.msra.mxu0 %v853
    %1047 = vmatpush.msra.mxu0 %v849
    %1048 = vmatpush.msra.mxu0 %v845
    %1049 = vmatpush.msra.mxu0 %v841
    %1050 = vmatpush.msra.mxu0 %v837
    %1051 = vmatpush.msra.mxu0 %v833
    %1052 = vmatpush.msra.mxu0 %v829
    %1053 = vmatpush.msra.mxu0 %v825
    %1054 = vmatpush.msra.mxu0 %v821
    %1055 = vmatpush.msra.mxu0 %v817
    %1056 = vmatpush.msra.mxu0 %v813
    %1057 = vmatmul.f32.gmra.mxu0 %v748
    %v1058 = vpop.f32.mrf.mxu0
    %v1059 = vadd.f32 %v1039, %v1058
    %1060 = vdwg.mxu0
    %1061 = vmatpush.msra.mxu0 %v810
    %1062 = vmatpush.msra.mxu0 %v806
    %1063 = vmatpush.msra.mxu0 %v802
    %1064 = vmatpush.msra.mxu0 %v798
    %1065 = vmatpush.msra.mxu0 %v794
    %1066 = vmatpush.msra.mxu0 %v790
    %1067 = vmatpush.msra.mxu0 %v786
    %1068 = vmatpush.msra.mxu0 %v782
    %1069 = vmatpush.msra.mxu0 %v778
    %1070 = vmatpush.msra.mxu0 %v774
    %1071 = vmatpush.msra.mxu0 %v770
    %1072 = vmatpush.msra.mxu0 %v766
    %1073 = vmatpush.msra.mxu0 %v762
    %1074 = vmatpush.msra.mxu0 %v758
    %1075 = vmatpush.msra.mxu0 %v754
    %1076 = vmatpush.msra.mxu0 %v750
    %1077 = vmatmul.f32.gmra.mxu0 %v747
    %v1078 = vpop.f32.mrf.mxu0
    %v1079 = vadd.f32 %v979, %v1078
    %1080 = vdwg.mxu0
    %1081 = vmatpush.msra.mxu0 %v874
    %1082 = vmatpush.msra.mxu0 %v870
    %1083 = vmatpush.msra.mxu0 %v866
    %1084 = vmatpush.msra.mxu0 %v862
    %1085 = vmatpush.msra.mxu0 %v858
    %1086 = vmatpush.msra.mxu0 %v854
    %1087 = vmatpush.msra.mxu0 %v850
    %1088 = vmatpush.msra.mxu0 %v846
    %1089 = vmatpush.msra.mxu0 %v842
    %1090 = vmatpush.msra.mxu0 %v838
    %1091 = vmatpush.msra.mxu0 %v834
    %1092 = vmatpush.msra.mxu0 %v830
    %1093 = vmatpush.msra.mxu0 %v826
    %1094 = vmatpush.msra.mxu0 %v822
    %1095 = vmatpush.msra.mxu0 %v818
    %1096 = vmatpush.msra.mxu0 %v814
    %1097 = vmatmul.f32.gmra.mxu0 %v748
    %v1098 = vpop.f32.mrf.mxu0
    %v1099 = vadd.f32 %v1079, %v1098
    %1100 = vdwg.mxu0
    %1101 = vmatpush.msra.mxu0 %v811
    %1102 = vmatpush.msra.mxu0 %v807
    %1103 = vmatpush.msra.mxu0 %v803
    %1104 = vmatpush.msra.mxu0 %v799
    %1105 = vmatpush.msra.mxu0 %v795
    %1106 = vmatpush.msra.mxu0 %v791
    %1107 = vmatpush.msra.mxu0 %v787
    %1108 = vmatpush.msra.mxu0 %v783
    %1109 = vmatpush.msra.mxu0 %v779
    %1110 = vmatpush.msra.mxu0 %v775
    %1111 = vmatpush.msra.mxu0 %v771
    %1112 = vmatpush.msra.mxu0 %v767
    %1113 = vmatpush.msra.mxu0 %v763
    %1114 = vmatpush.msra.mxu0 %v759
    %1115 = vmatpush.msra.mxu0 %v755
    %1116 = vmatpush.msra.mxu0 %v751
    %1117 = vmatmul.f32.gmra.mxu0 %v747
    %v1118 = vpop.f32.mrf.mxu0
    %v1119 = vadd.f32 %v999, %v1118
    %1120 = vdwg.mxu0
    %1121 = vmatpush.msra.mxu0 %v875
    %1122 = vmatpush.msra.mxu0 %v871
    %1123 = vmatpush.msra.mxu0 %v867
    %1124 = vmatpush.msra.mxu0 %v863
    %1125 = vmatpush.msra.mxu0 %v859
    %1126 = vmatpush.msra.mxu0 %v855
    %1127 = vmatpush.msra.mxu0 %v851
    %1128 = vmatpush.msra.mxu0 %v847
    %1129 = vmatpush.msra.mxu0 %v843
    %1130 = vmatpush.msra.mxu0 %v839
    %1131 = vmatpush.msra.mxu0 %v835
    %1132 = vmatpush.msra.mxu0 %v831
    %1133 = vmatpush.msra.mxu0 %v827
    %1134 = vmatpush.msra.mxu0 %v823
    %1135 = vmatpush.msra.mxu0 %v819
    %1136 = vmatpush.msra.mxu0 %v815
    %1137 = vmatmul.f32.gmra.mxu0 %v748
    %v1138 = vpop.f32.mrf.mxu0
    %v1139 = vadd.f32 %v1119, %v1138
    %1140 = vdwg.mxu0
    %1141 = vmatpush.msra.mxu0 %v812
    %1142 = vmatpush.msra.mxu0 %v808
    %1143 = vmatpush.msra.mxu0 %v804
    %1144 = vmatpush.msra.mxu0 %v800
    %1145 = vmatpush.msra.mxu0 %v796
    %1146 = vmatpush.msra.mxu0 %v792
    %1147 = vmatpush.msra.mxu0 %v788
    %1148 = vmatpush.msra.mxu0 %v784
    %1149 = vmatpush.msra.mxu0 %v780
    %1150 = vmatpush.msra.mxu0 %v776
    %1151 = vmatpush.msra.mxu0 %v772
    %1152 = vmatpush.msra.mxu0 %v768
    %1153 = vmatpush.msra.mxu0 %v764
    %1154 = vmatpush.msra.mxu0 %v760
    %1155 = vmatpush.msra.mxu0 %v756
    %1156 = vmatpush.msra.mxu0 %v752
    %1157 = vmatmul.f32.gmra.mxu0 %v747
    %v1158 = vpop.f32.mrf.mxu0
    %v1159 = vadd.f32 %v1019, %v1158
    %1160 = vdwg.mxu0
    %1161 = vmatpush.msra.mxu0 %v876
    %1162 = vmatpush.msra.mxu0 %v872
    %1163 = vmatpush.msra.mxu0 %v868
    %1164 = vmatpush.msra.mxu0 %v864
    %1165 = vmatpush.msra.mxu0 %v860
    %1166 = vmatpush.msra.mxu0 %v856
    %1167 = vmatpush.msra.mxu0 %v852
    %1168 = vmatpush.msra.mxu0 %v848
    %1169 = vmatpush.msra.mxu0 %v844
    %1170 = vmatpush.msra.mxu0 %v840
    %1171 = vmatpush.msra.mxu0 %v836
    %1172 = vmatpush.msra.mxu0 %v832
    %1173 = vmatpush.msra.mxu0 %v828
    %1174 = vmatpush.msra.mxu0 %v824
    %1175 = vmatpush.msra.mxu0 %v820
    %1176 = vmatpush.msra.mxu0 %v816
    %1177 = vmatmul.f32.gmra.mxu0 %v748
    %v1178 = vpop.f32.mrf.mxu0
    %v1179 = vadd.f32 %v1159, %v1178
    %1180 = vdwg.mxu0
    %v1181 = vadd.f32 %v1059, %v23
    %v1182 = vadd.f32 %v1099, %v24
    %v1183 = vadd.f32 %v1139, %v25
    %v1184 = vadd.f32 %v1179, %v26
    %v1185 = vxor.u32 %v1181, 2147483648
    %v1186 = vmul.f32 %v1185, 1.442695
    %v1187 = vpow.pop %v1186
    %v1188 = vadd.f32 %v1187, 1.0
    %v1189 = vrcp.pop %v1188
    %v1190 = vmul.f32 %v1188, %v1189
    %v1191 = vsub.f32 1.0, %v1190
    %v1192 = vmul.f32 %v1189, %v1191
    %v1193 = vadd.f32 %v1189, %v1192
    %vm1194 = vweird.f32 %v1188
    %vm1195 = vweird.f32 %v1189
    %vm1196 = vmor %vm1194, %vm1195
    %v1197 = vsel %vm1196, %v1189, %v1193
    %v1198 = vand.u32 2147483647, %v1188
    %vm1199 = vcmp.eq.f32.partialorder %v1198, 8.507059e+37
    %v1200 = vand.u32 %v1188, 2147483648
    %v1201 = vor.u32 1.1754944e-38, %v1200
    %v1202 = vsel %vm1199, %v1201, %v1197
    %v1203 = vmul.f32 1.0, %v1202
    %v1204 = vxor.u32 %v1182, 2147483648
    %v1205 = vmul.f32 %v1204, 1.442695
    %v1206 = vpow.pop %v1205
    %v1207 = vadd.f32 %v1206, 1.0
    %v1208 = vrcp.pop %v1207
    %v1209 = vmul.f32 %v1207, %v1208
    %v1210 = vsub.f32 1.0, %v1209
    %v1211 = vmul.f32 %v1208, %v1210
    %v1212 = vadd.f32 %v1208, %v1211
    %vm1213 = vweird.f32 %v1207
    %vm1214 = vweird.f32 %v1208
    %vm1215 = vmor %vm1213, %vm1214
    %v1216 = vsel %vm1215, %v1208, %v1212
    %v1217 = vand.u32 2147483647, %v1207
    %vm1218 = vcmp.eq.f32.partialorder %v1217, 8.507059e+37
    %v1219 = vand.u32 %v1207, 2147483648
    %v1220 = vor.u32 1.1754944e-38, %v1219
    %v1221 = vsel %vm1218, %v1220, %v1216
    %v1222 = vmul.f32 1.0, %v1221
    %v1223 = vtanh.pop %v1183
    %v1224 = vxor.u32 %v1184, 2147483648
    %v1225 = vmul.f32 %v1224, 1.442695
    %v1226 = vpow.pop %v1225
    %v1227 = vadd.f32 %v1226, 1.0
    %v1228 = vrcp.pop %v1227
    %v1229 = vmul.f32 %v1227, %v1228
    %v1230 = vsub.f32 1.0, %v1229
    %v1231 = vmul.f32 %v1228, %v1230
    %v1232 = vadd.f32 %v1228, %v1231
    %vm1233 = vweird.f32 %v1227
    %vm1234 = vweird.f32 %v1228
    %vm1235 = vmor %vm1233, %vm1234
    %v1236 = vsel %vm1235, %v1228, %v1232
    %v1237 = vand.u32 2147483647, %v1227
    %vm1238 = vcmp.eq.f32.partialorder %v1237, 8.507059e+37
    %v1239 = vand.u32 %v1227, 2147483648
    %v1240 = vor.u32 1.1754944e-38, %v1239
    %v1241 = vsel %vm1238, %v1240, %v1236
    %v1242 = vmul.f32 1.0, %v1241
    %v1243 = vmul.f32 %v1222, 0.0
    %v1244 = vmul.f32 %v1203, %v1223
    %v1245 = vadd.f32 %v1243, %v1244
    %v1246 = vtanh.pop %v1245
    %v1247 = vmul.f32 %v1242, %v1246
    %s1248 = scalar_lea.vmem %s0, 64
    %v1249 = vld [vmem:[%s1248] sm:$0xff]
    %v1250 = vld [vmem:[%s1248 + $0x8] sm:$0xff]
    %v1251 = vld [vmem:[%s1248 + $0x10] sm:$0xff]
    %v1252 = vld [vmem:[%s1248 + $0x18] sm:$0xff]
    %v1253 = vld [vmem:[%s1248 + $0x20] sm:$0xff]
    %v1254 = vld [vmem:[%s1248 + $0x28] sm:$0xff]
    %v1255 = vld [vmem:[%s1248 + $0x30] sm:$0xff]
    %v1256 = vld [vmem:[%s1248 + $0x38] sm:$0xff]
    %1257 = vmatpush.msra.mxu0 %v159
    %1258 = vmatpush.msra.mxu0 %v151
    %1259 = vmatpush.msra.mxu0 %v143
    %1260 = vmatpush.msra.mxu0 %v135
    %1261 = vmatpush.msra.mxu0 %v127
    %1262 = vmatpush.msra.mxu0 %v119
    %1263 = vmatpush.msra.mxu0 %v111
    %1264 = vmatpush.msra.mxu0 %v103
    %1265 = vmatpush.msra.mxu0 %v95
    %1266 = vmatpush.msra.mxu0 %v87
    %1267 = vmatpush.msra.mxu0 %v79
    %1268 = vmatpush.msra.mxu0 %v71
    %1269 = vmatpush.msra.mxu0 %v63
    %1270 = vmatpush.msra.mxu0 %v55
    %1271 = vmatpush.msra.mxu0 %v47
    %1272 = vmatpush.msra.mxu0 %v39
    %1273 = vmatmul.f32.gmra.mxu0 %v747
    %v1274 = vpop.f32.mrf.mxu0
    %v1275 = vadd.f32 0.0, %v1274
    %1276 = vdwg.mxu0
    %1277 = vmatpush.msra.mxu0 %v287
    %1278 = vmatpush.msra.mxu0 %v279
    %1279 = vmatpush.msra.mxu0 %v271
    %1280 = vmatpush.msra.mxu0 %v263
    %1281 = vmatpush.msra.mxu0 %v255
    %1282 = vmatpush.msra.mxu0 %v247
    %1283 = vmatpush.msra.mxu0 %v239
    %1284 = vmatpush.msra.mxu0 %v231
    %1285 = vmatpush.msra.mxu0 %v223
    %1286 = vmatpush.msra.mxu0 %v215
    %1287 = vmatpush.msra.mxu0 %v207
    %1288 = vmatpush.msra.mxu0 %v199
    %1289 = vmatpush.msra.mxu0 %v191
    %1290 = vmatpush.msra.mxu0 %v183
    %1291 = vmatpush.msra.mxu0 %v175
    %1292 = vmatpush.msra.mxu0 %v167
    %1293 = vmatmul.f32.gmra.mxu0 %v748
    %v1294 = vpop.f32.mrf.mxu0
    %v1295 = vadd.f32 %v1275, %v1294
    %1296 = vdwg.mxu0
    %1297 = vmatpush.msra.mxu0 %v160
    %1298 = vmatpush.msra.mxu0 %v152
    %1299 = vmatpush.msra.mxu0 %v144
    %1300 = vmatpush.msra.mxu0 %v136
    %1301 = vmatpush.msra.mxu0 %v128
    %1302 = vmatpush.msra.mxu0 %v120
    %1303 = vmatpush.msra.mxu0 %v112
    %1304 = vmatpush.msra.mxu0 %v104
    %1305 = vmatpush.msra.mxu0 %v96
    %1306 = vmatpush.msra.mxu0 %v88
    %1307 = vmatpush.msra.mxu0 %v80
    %1308 = vmatpush.msra.mxu0 %v72
    %1309 = vmatpush.msra.mxu0 %v64
    %1310 = vmatpush.msra.mxu0 %v56
    %1311 = vmatpush.msra.mxu0 %v48
    %1312 = vmatpush.msra.mxu0 %v40
    %1313 = vmatmul.f32.gmra.mxu0 %v747
    %v1314 = vpop.f32.mrf.mxu0
    %v1315 = vadd.f32 0.0, %v1314
    %1316 = vdwg.mxu0
    %1317 = vmatpush.msra.mxu0 %v288
    %1318 = vmatpush.msra.mxu0 %v280
    %1319 = vmatpush.msra.mxu0 %v272
    %1320 = vmatpush.msra.mxu0 %v264
    %1321 = vmatpush.msra.mxu0 %v256
    %1322 = vmatpush.msra.mxu0 %v248
    %1323 = vmatpush.msra.mxu0 %v240
    %1324 = vmatpush.msra.mxu0 %v232
    %1325 = vmatpush.msra.mxu0 %v224
    %1326 = vmatpush.msra.mxu0 %v216
    %1327 = vmatpush.msra.mxu0 %v208
    %1328 = vmatpush.msra.mxu0 %v200
    %1329 = vmatpush.msra.mxu0 %v192
    %1330 = vmatpush.msra.mxu0 %v184
    %1331 = vmatpush.msra.mxu0 %v176
    %1332 = vmatpush.msra.mxu0 %v168
    %1333 = vmatmul.f32.gmra.mxu0 %v748
    %v1334 = vpop.f32.mrf.mxu0
    %v1335 = vadd.f32 %v1315, %v1334
    %1336 = vdwg.mxu0
    %1337 = vmatpush.msra.mxu0 %v161
    %1338 = vmatpush.msra.mxu0 %v153
    %1339 = vmatpush.msra.mxu0 %v145
    %1340 = vmatpush.msra.mxu0 %v137
    %1341 = vmatpush.msra.mxu0 %v129
    %1342 = vmatpush.msra.mxu0 %v121
    %1343 = vmatpush.msra.mxu0 %v113
    %1344 = vmatpush.msra.mxu0 %v105
    %1345 = vmatpush.msra.mxu0 %v97
    %1346 = vmatpush.msra.mxu0 %v89
    %1347 = vmatpush.msra.mxu0 %v81
    %1348 = vmatpush.msra.mxu0 %v73
    %1349 = vmatpush.msra.mxu0 %v65
    %1350 = vmatpush.msra.mxu0 %v57
    %1351 = vmatpush.msra.mxu0 %v49
    %1352 = vmatpush.msra.mxu0 %v41
    %1353 = vmatmul.f32.gmra.mxu0 %v747
    %v1354 = vpop.f32.mrf.mxu0
    %v1355 = vadd.f32 0.0, %v1354
    %1356 = vdwg.mxu0
    %1357 = vmatpush.msra.mxu0 %v289
    %1358 = vmatpush.msra.mxu0 %v281
    %1359 = vmatpush.msra.mxu0 %v273
    %1360 = vmatpush.msra.mxu0 %v265
    %1361 = vmatpush.msra.mxu0 %v257
    %1362 = vmatpush.msra.mxu0 %v249
    %1363 = vmatpush.msra.mxu0 %v241
    %1364 = vmatpush.msra.mxu0 %v233
    %1365 = vmatpush.msra.mxu0 %v225
    %1366 = vmatpush.msra.mxu0 %v217
    %1367 = vmatpush.msra.mxu0 %v209
    %1368 = vmatpush.msra.mxu0 %v201
    %1369 = vmatpush.msra.mxu0 %v193
    %1370 = vmatpush.msra.mxu0 %v185
    %1371 = vmatpush.msra.mxu0 %v177
    %1372 = vmatpush.msra.mxu0 %v169
    %1373 = vmatmul.f32.gmra.mxu0 %v748
    %v1374 = vpop.f32.mrf.mxu0
    %v1375 = vadd.f32 %v1355, %v1374
    %1376 = vdwg.mxu0
    %1377 = vmatpush.msra.mxu0 %v162
    %1378 = vmatpush.msra.mxu0 %v154
    %1379 = vmatpush.msra.mxu0 %v146
    %1380 = vmatpush.msra.mxu0 %v138
    %1381 = vmatpush.msra.mxu0 %v130
    %1382 = vmatpush.msra.mxu0 %v122
    %1383 = vmatpush.msra.mxu0 %v114
    %1384 = vmatpush.msra.mxu0 %v106
    %1385 = vmatpush.msra.mxu0 %v98
    %1386 = vmatpush.msra.mxu0 %v90
    %1387 = vmatpush.msra.mxu0 %v82
    %1388 = vmatpush.msra.mxu0 %v74
    %1389 = vmatpush.msra.mxu0 %v66
    %1390 = vmatpush.msra.mxu0 %v58
    %1391 = vmatpush.msra.mxu0 %v50
    %1392 = vmatpush.msra.mxu0 %v42
    %1393 = vmatmul.f32.gmra.mxu0 %v747
    %v1394 = vpop.f32.mrf.mxu0
    %v1395 = vadd.f32 0.0, %v1394
    %1396 = vdwg.mxu0
    %1397 = vmatpush.msra.mxu0 %v290
    %1398 = vmatpush.msra.mxu0 %v282
    %1399 = vmatpush.msra.mxu0 %v274
    %1400 = vmatpush.msra.mxu0 %v266
    %1401 = vmatpush.msra.mxu0 %v258
    %1402 = vmatpush.msra.mxu0 %v250
    %1403 = vmatpush.msra.mxu0 %v242
    %1404 = vmatpush.msra.mxu0 %v234
    %1405 = vmatpush.msra.mxu0 %v226
    %1406 = vmatpush.msra.mxu0 %v218
    %1407 = vmatpush.msra.mxu0 %v210
    %1408 = vmatpush.msra.mxu0 %v202
    %1409 = vmatpush.msra.mxu0 %v194
    %1410 = vmatpush.msra.mxu0 %v186
    %1411 = vmatpush.msra.mxu0 %v178
    %1412 = vmatpush.msra.mxu0 %v170
    %1413 = vmatmul.f32.gmra.mxu0 %v748
    %v1414 = vpop.f32.mrf.mxu0
    %v1415 = vadd.f32 %v1395, %v1414
    %1416 = vdwg.mxu0
    %1417 = vmatpush.msra.mxu0 %v163
    %1418 = vmatpush.msra.mxu0 %v155
    %1419 = vmatpush.msra.mxu0 %v147
    %1420 = vmatpush.msra.mxu0 %v139
    %1421 = vmatpush.msra.mxu0 %v131
    %1422 = vmatpush.msra.mxu0 %v123
    %1423 = vmatpush.msra.mxu0 %v115
    %1424 = vmatpush.msra.mxu0 %v107
    %1425 = vmatpush.msra.mxu0 %v99
    %1426 = vmatpush.msra.mxu0 %v91
    %1427 = vmatpush.msra.mxu0 %v83
    %1428 = vmatpush.msra.mxu0 %v75
    %1429 = vmatpush.msra.mxu0 %v67
    %1430 = vmatpush.msra.mxu0 %v59
    %1431 = vmatpush.msra.mxu0 %v51
    %1432 = vmatpush.msra.mxu0 %v43
    %1433 = vmatmul.f32.gmra.mxu0 %v747
    %v1434 = vpop.f32.mrf.mxu0
    %v1435 = vadd.f32 0.0, %v1434
    %1436 = vdwg.mxu0
    %1437 = vmatpush.msra.mxu0 %v291
    %1438 = vmatpush.msra.mxu0 %v283
    %1439 = vmatpush.msra.mxu0 %v275
    %1440 = vmatpush.msra.mxu0 %v267
    %1441 = vmatpush.msra.mxu0 %v259
    %1442 = vmatpush.msra.mxu0 %v251
    %1443 = vmatpush.msra.mxu0 %v243
    %1444 = vmatpush.msra.mxu0 %v235
    %1445 = vmatpush.msra.mxu0 %v227
    %1446 = vmatpush.msra.mxu0 %v219
    %1447 = vmatpush.msra.mxu0 %v211
    %1448 = vmatpush.msra.mxu0 %v203
    %1449 = vmatpush.msra.mxu0 %v195
    %1450 = vmatpush.msra.mxu0 %v187
    %1451 = vmatpush.msra.mxu0 %v179
    %1452 = vmatpush.msra.mxu0 %v171
    %1453 = vmatmul.f32.gmra.mxu0 %v748
    %v1454 = vpop.f32.mrf.mxu0
    %v1455 = vadd.f32 %v1435, %v1454
    %1456 = vdwg.mxu0
    %1457 = vmatpush.msra.mxu0 %v164
    %1458 = vmatpush.msra.mxu0 %v156
    %1459 = vmatpush.msra.mxu0 %v148
    %1460 = vmatpush.msra.mxu0 %v140
    %1461 = vmatpush.msra.mxu0 %v132
    %1462 = vmatpush.msra.mxu0 %v124
    %1463 = vmatpush.msra.mxu0 %v116
    %1464 = vmatpush.msra.mxu0 %v108
    %1465 = vmatpush.msra.mxu0 %v100
    %1466 = vmatpush.msra.mxu0 %v92
    %1467 = vmatpush.msra.mxu0 %v84
    %1468 = vmatpush.msra.mxu0 %v76
    %1469 = vmatpush.msra.mxu0 %v68
    %1470 = vmatpush.msra.mxu0 %v60
    %1471 = vmatpush.msra.mxu0 %v52
    %1472 = vmatpush.msra.mxu0 %v44
    %1473 = vmatmul.f32.gmra.mxu0 %v747
    %v1474 = vpop.f32.mrf.mxu0
    %v1475 = vadd.f32 0.0, %v1474
    %1476 = vdwg.mxu0
    %1477 = vmatpush.msra.mxu0 %v292
    %1478 = vmatpush.msra.mxu0 %v284
    %1479 = vmatpush.msra.mxu0 %v276
    %1480 = vmatpush.msra.mxu0 %v268
    %1481 = vmatpush.msra.mxu0 %v260
    %1482 = vmatpush.msra.mxu0 %v252
    %1483 = vmatpush.msra.mxu0 %v244
    %1484 = vmatpush.msra.mxu0 %v236
    %1485 = vmatpush.msra.mxu0 %v228
    %1486 = vmatpush.msra.mxu0 %v220
    %1487 = vmatpush.msra.mxu0 %v212
    %1488 = vmatpush.msra.mxu0 %v204
    %1489 = vmatpush.msra.mxu0 %v196
    %1490 = vmatpush.msra.mxu0 %v188
    %1491 = vmatpush.msra.mxu0 %v180
    %1492 = vmatpush.msra.mxu0 %v172
    %1493 = vmatmul.f32.gmra.mxu0 %v748
    %v1494 = vpop.f32.mrf.mxu0
    %v1495 = vadd.f32 %v1475, %v1494
    %1496 = vdwg.mxu0
    %1497 = vmatpush.msra.mxu0 %v165
    %1498 = vmatpush.msra.mxu0 %v157
    %1499 = vmatpush.msra.mxu0 %v149
    %1500 = vmatpush.msra.mxu0 %v141
    %1501 = vmatpush.msra.mxu0 %v133
    %1502 = vmatpush.msra.mxu0 %v125
    %1503 = vmatpush.msra.mxu0 %v117
    %1504 = vmatpush.msra.mxu0 %v109
    %1505 = vmatpush.msra.mxu0 %v101
    %1506 = vmatpush.msra.mxu0 %v93
    %1507 = vmatpush.msra.mxu0 %v85
    %1508 = vmatpush.msra.mxu0 %v77
    %1509 = vmatpush.msra.mxu0 %v69
    %1510 = vmatpush.msra.mxu0 %v61
    %1511 = vmatpush.msra.mxu0 %v53
    %1512 = vmatpush.msra.mxu0 %v45
    %1513 = vmatmul.f32.gmra.mxu0 %v747
    %v1514 = vpop.f32.mrf.mxu0
    %v1515 = vadd.f32 0.0, %v1514
    %1516 = vdwg.mxu0
    %1517 = vmatpush.msra.mxu0 %v293
    %1518 = vmatpush.msra.mxu0 %v285
    %1519 = vmatpush.msra.mxu0 %v277
    %1520 = vmatpush.msra.mxu0 %v269
    %1521 = vmatpush.msra.mxu0 %v261
    %1522 = vmatpush.msra.mxu0 %v253
    %1523 = vmatpush.msra.mxu0 %v245
    %1524 = vmatpush.msra.mxu0 %v237
    %1525 = vmatpush.msra.mxu0 %v229
    %1526 = vmatpush.msra.mxu0 %v221
    %1527 = vmatpush.msra.mxu0 %v213
    %1528 = vmatpush.msra.mxu0 %v205
    %1529 = vmatpush.msra.mxu0 %v197
    %1530 = vmatpush.msra.mxu0 %v189
    %1531 = vmatpush.msra.mxu0 %v181
    %1532 = vmatpush.msra.mxu0 %v173
    %1533 = vmatmul.f32.gmra.mxu0 %v748
    %v1534 = vpop.f32.mrf.mxu0
    %v1535 = vadd.f32 %v1515, %v1534
    %1536 = vdwg.mxu0
    %1537 = vmatpush.msra.mxu0 %v166
    %1538 = vmatpush.msra.mxu0 %v158
    %1539 = vmatpush.msra.mxu0 %v150
    %1540 = vmatpush.msra.mxu0 %v142
    %1541 = vmatpush.msra.mxu0 %v134
    %1542 = vmatpush.msra.mxu0 %v126
    %1543 = vmatpush.msra.mxu0 %v118
    %1544 = vmatpush.msra.mxu0 %v110
    %1545 = vmatpush.msra.mxu0 %v102
    %1546 = vmatpush.msra.mxu0 %v94
    %1547 = vmatpush.msra.mxu0 %v86
    %1548 = vmatpush.msra.mxu0 %v78
    %1549 = vmatpush.msra.mxu0 %v70
    %1550 = vmatpush.msra.mxu0 %v62
    %1551 = vmatpush.msra.mxu0 %v54
    %1552 = vmatpush.msra.mxu0 %v46
    %1553 = vmatmul.f32.gmra.mxu0 %v747
    %v1554 = vpop.f32.mrf.mxu0
    %v1555 = vadd.f32 0.0, %v1554
    %1556 = vdwg.mxu0
    %1557 = vmatpush.msra.mxu0 %v294
    %1558 = vmatpush.msra.mxu0 %v286
    %1559 = vmatpush.msra.mxu0 %v278
    %1560 = vmatpush.msra.mxu0 %v270
    %1561 = vmatpush.msra.mxu0 %v262
    %1562 = vmatpush.msra.mxu0 %v254
    %1563 = vmatpush.msra.mxu0 %v246
    %1564 = vmatpush.msra.mxu0 %v238
    %1565 = vmatpush.msra.mxu0 %v230
    %1566 = vmatpush.msra.mxu0 %v222
    %1567 = vmatpush.msra.mxu0 %v214
    %1568 = vmatpush.msra.mxu0 %v206
    %1569 = vmatpush.msra.mxu0 %v198
    %1570 = vmatpush.msra.mxu0 %v190
    %1571 = vmatpush.msra.mxu0 %v182
    %1572 = vmatpush.msra.mxu0 %v174
    %1573 = vmatmul.f32.gmra.mxu0 %v748
    %v1574 = vpop.f32.mrf.mxu0
    %v1575 = vadd.f32 %v1555, %v1574
    %1576 = vdwg.mxu0
    %v1577 = vadd.f32 %v1249, %v1295
    %v1578 = vadd.f32 %v1250, %v1335
    %v1579 = vadd.f32 %v1251, %v1375
    %v1580 = vadd.f32 %v1252, %v1415
    %v1581 = vadd.f32 %v1253, %v1455
    %v1582 = vadd.f32 %v1254, %v1495
    %v1583 = vadd.f32 %v1255, %v1535
    %v1584 = vadd.f32 %v1256, %v1575
    %v1585 = vxor.u32 %v1577, 2147483648
    %v1586 = vxor.u32 %v1578, 2147483648
    %v1587 = vmul.f32 %v1585, 1.442695
    %v1588 = vpow.pop %v1587
    %v1589 = vmul.f32 %v1586, 1.442695
    %v1590 = vpow.pop %v1589
    %v1591 = vadd.f32 %v1588, 1.0
    %v1592 = vadd.f32 %v1590, 1.0
    %v1593 = vrcp.pop %v1591
    %v1594 = vmul.f32 %v1591, %v1593
    %v1595 = vsub.f32 1.0, %v1594
    %v1596 = vmul.f32 %v1593, %v1595
    %v1597 = vadd.f32 %v1593, %v1596
    %vm1598 = vweird.f32 %v1591
    %vm1599 = vweird.f32 %v1593
    %vm1600 = vmor %vm1598, %vm1599
    %v1601 = vsel %vm1600, %v1593, %v1597
    %v1602 = vand.u32 2147483647, %v1591
    %vm1603 = vcmp.eq.f32.partialorder %v1602, 8.507059e+37
    %v1604 = vand.u32 %v1591, 2147483648
    %v1605 = vor.u32 1.1754944e-38, %v1604
    %v1606 = vsel %vm1603, %v1605, %v1601
    %v1607 = vmul.f32 1.0, %v1606
    %v1608 = vrcp.pop %v1592
    %v1609 = vmul.f32 %v1592, %v1608
    %v1610 = vsub.f32 1.0, %v1609
    %v1611 = vmul.f32 %v1608, %v1610
    %v1612 = vadd.f32 %v1608, %v1611
    %vm1613 = vweird.f32 %v1592
    %vm1614 = vweird.f32 %v1608
    %vm1615 = vmor %vm1613, %vm1614
    %v1616 = vsel %vm1615, %v1608, %v1612
    %v1617 = vand.u32 2147483647, %v1592
    %vm1618 = vcmp.eq.f32.partialorder %v1617, 8.507059e+37
    %v1619 = vand.u32 %v1592, 2147483648
    %v1620 = vor.u32 1.1754944e-38, %v1619
    %v1621 = vsel %vm1618, %v1620, %v1616
    %v1622 = vmul.f32 1.0, %v1621
    %v1623 = vxor.u32 %v1579, 2147483648
    %v1624 = vxor.u32 %v1580, 2147483648
    %v1625 = vmul.f32 %v1623, 1.442695
    %v1626 = vpow.pop %v1625
    %v1627 = vmul.f32 %v1624, 1.442695
    %v1628 = vpow.pop %v1627
    %v1629 = vadd.f32 %v1626, 1.0
    %v1630 = vadd.f32 %v1628, 1.0
    %v1631 = vrcp.pop %v1629
    %v1632 = vmul.f32 %v1629, %v1631
    %v1633 = vsub.f32 1.0, %v1632
    %v1634 = vmul.f32 %v1631, %v1633
    %v1635 = vadd.f32 %v1631, %v1634
    %vm1636 = vweird.f32 %v1629
    %vm1637 = vweird.f32 %v1631
    %vm1638 = vmor %vm1636, %vm1637
    %v1639 = vsel %vm1638, %v1631, %v1635
    %v1640 = vand.u32 2147483647, %v1629
    %vm1641 = vcmp.eq.f32.partialorder %v1640, 8.507059e+37
    %v1642 = vand.u32 %v1629, 2147483648
    %v1643 = vor.u32 1.1754944e-38, %v1642
    %v1644 = vsel %vm1641, %v1643, %v1639
    %v1645 = vmul.f32 1.0, %v1644
    %v1646 = vrcp.pop %v1630
    %v1647 = vmul.f32 %v1630, %v1646
    %v1648 = vsub.f32 1.0, %v1647
    %v1649 = vmul.f32 %v1646, %v1648
    %v1650 = vadd.f32 %v1646, %v1649
    %vm1651 = vweird.f32 %v1630
    %vm1652 = vweird.f32 %v1646
    %vm1653 = vmor %vm1651, %vm1652
    %v1654 = vsel %vm1653, %v1646, %v1650
    %v1655 = vand.u32 2147483647, %v1630
    %vm1656 = vcmp.eq.f32.partialorder %v1655, 8.507059e+37
    %v1657 = vand.u32 %v1630, 2147483648
    %v1658 = vor.u32 1.1754944e-38, %v1657
    %v1659 = vsel %vm1656, %v1658, %v1654
    %v1660 = vmul.f32 1.0, %v1659
    %v1661 = vtanh.pop %v1581
    %v1662 = vtanh.pop %v1582
    %v1663 = vxor.u32 %v1583, 2147483648
    %v1664 = vxor.u32 %v1584, 2147483648
    %v1665 = vmul.f32 %v1663, 1.442695
    %v1666 = vpow.pop %v1665
    %v1667 = vmul.f32 %v1664, 1.442695
    %v1668 = vpow.pop %v1667
    %v1669 = vadd.f32 %v1666, 1.0
    %v1670 = vadd.f32 %v1668, 1.0
    %v1671 = vrcp.pop %v1669
    %v1672 = vmul.f32 %v1669, %v1671
    %v1673 = vsub.f32 1.0, %v1672
    %v1674 = vmul.f32 %v1671, %v1673
    %v1675 = vadd.f32 %v1671, %v1674
    %vm1676 = vweird.f32 %v1669
    %vm1677 = vweird.f32 %v1671
    %vm1678 = vmor %vm1676, %vm1677
    %v1679 = vsel %vm1678, %v1671, %v1675
    %v1680 = vand.u32 2147483647, %v1669
    %vm1681 = vcmp.eq.f32.partialorder %v1680, 8.507059e+37
    %v1682 = vand.u32 %v1669, 2147483648
    %v1683 = vor.u32 1.1754944e-38, %v1682
    %v1684 = vsel %vm1681, %v1683, %v1679
    %v1685 = vmul.f32 1.0, %v1684
    %v1686 = vrcp.pop %v1670
    %v1687 = vmul.f32 %v1670, %v1686
    %v1688 = vsub.f32 1.0, %v1687
    %v1689 = vmul.f32 %v1686, %v1688
    %v1690 = vadd.f32 %v1686, %v1689
    %vm1691 = vweird.f32 %v1670
    %vm1692 = vweird.f32 %v1686
    %vm1693 = vmor %vm1691, %vm1692
    %v1694 = vsel %vm1693, %v1686, %v1690
    %v1695 = vand.u32 2147483647, %v1670
    %vm1696 = vcmp.eq.f32.partialorder %v1695, 8.507059e+37
    %v1697 = vand.u32 %v1670, 2147483648
    %v1698 = vor.u32 1.1754944e-38, %v1697
    %v1699 = vsel %vm1696, %v1698, %v1694
    %v1700 = vmul.f32 1.0, %v1699
    %v1701 = vmul.f32 %v1645, %v743
    %v1702 = vmul.f32 %v1660, %v744
    %v1703 = vmul.f32 %v1607, %v1661
    %v1704 = vmul.f32 %v1622, %v1662
    %v1705 = vadd.f32 %v1701, %v1703
    %v1706 = vadd.f32 %v1702, %v1704
    %v1707 = vtanh.pop %v1705
    %v1708 = vtanh.pop %v1706
    %v1709 = vmul.f32 %v1685, %v1707
    %v1710 = vmul.f32 %v1700, %v1708
    %1711 = vmatpush.msra.mxu0 %v937
    %1712 = vmatpush.msra.mxu0 %v933
    %1713 = vmatpush.msra.mxu0 %v929
    %1714 = vmatpush.msra.mxu0 %v925
    %1715 = vmatpush.msra.mxu0 %v921
    %1716 = vmatpush.msra.mxu0 %v917
    %1717 = vmatpush.msra.mxu0 %v913
    %1718 = vmatpush.msra.mxu0 %v909
    %1719 = vmatpush.msra.mxu0 %v905
    %1720 = vmatpush.msra.mxu0 %v901
    %1721 = vmatpush.msra.mxu0 %v897
    %1722 = vmatpush.msra.mxu0 %v893
    %1723 = vmatpush.msra.mxu0 %v889
    %1724 = vmatpush.msra.mxu0 %v885
    %1725 = vmatpush.msra.mxu0 %v881
    %1726 = vmatpush.msra.mxu0 %v877
    %1727 = vmatmul.f32.gmra.mxu0 %v1247
    %v1728 = vpop.f32.mrf.mxu0
    %v1729 = vadd.f32 0.0, %v1728
    %1730 = vdwg.mxu0
    %1731 = vmatpush.msra.mxu0 %v938
    %1732 = vmatpush.msra.mxu0 %v934
    %1733 = vmatpush.msra.mxu0 %v930
    %1734 = vmatpush.msra.mxu0 %v926
    %1735 = vmatpush.msra.mxu0 %v922
    %1736 = vmatpush.msra.mxu0 %v918
    %1737 = vmatpush.msra.mxu0 %v914
    %1738 = vmatpush.msra.mxu0 %v910
    %1739 = vmatpush.msra.mxu0 %v906
    %1740 = vmatpush.msra.mxu0 %v902
    %1741 = vmatpush.msra.mxu0 %v898
    %1742 = vmatpush.msra.mxu0 %v894
    %1743 = vmatpush.msra.mxu0 %v890
    %1744 = vmatpush.msra.mxu0 %v886
    %1745 = vmatpush.msra.mxu0 %v882
    %1746 = vmatpush.msra.mxu0 %v878
    %1747 = vmatmul.f32.gmra.mxu0 %v1247
    %v1748 = vpop.f32.mrf.mxu0
    %v1749 = vadd.f32 0.0, %v1748
    %1750 = vdwg.mxu0
    %1751 = vmatpush.msra.mxu0 %v939
    %1752 = vmatpush.msra.mxu0 %v935
    %1753 = vmatpush.msra.mxu0 %v931
    %1754 = vmatpush.msra.mxu0 %v927
    %1755 = vmatpush.msra.mxu0 %v923
    %1756 = vmatpush.msra.mxu0 %v919
    %1757 = vmatpush.msra.mxu0 %v915
    %1758 = vmatpush.msra.mxu0 %v911
    %1759 = vmatpush.msra.mxu0 %v907
    %1760 = vmatpush.msra.mxu0 %v903
    %1761 = vmatpush.msra.mxu0 %v899
    %1762 = vmatpush.msra.mxu0 %v895
    %1763 = vmatpush.msra.mxu0 %v891
    %1764 = vmatpush.msra.mxu0 %v887
    %1765 = vmatpush.msra.mxu0 %v883
    %1766 = vmatpush.msra.mxu0 %v879
    %1767 = vmatmul.f32.gmra.mxu0 %v1247
    %v1768 = vpop.f32.mrf.mxu0
    %v1769 = vadd.f32 0.0, %v1768
    %1770 = vdwg.mxu0
    %1771 = vmatpush.msra.mxu0 %v940
    %1772 = vmatpush.msra.mxu0 %v936
    %1773 = vmatpush.msra.mxu0 %v932
    %1774 = vmatpush.msra.mxu0 %v928
    %1775 = vmatpush.msra.mxu0 %v924
    %1776 = vmatpush.msra.mxu0 %v920
    %1777 = vmatpush.msra.mxu0 %v916
    %1778 = vmatpush.msra.mxu0 %v912
    %1779 = vmatpush.msra.mxu0 %v908
    %1780 = vmatpush.msra.mxu0 %v904
    %1781 = vmatpush.msra.mxu0 %v900
    %1782 = vmatpush.msra.mxu0 %v896
    %1783 = vmatpush.msra.mxu0 %v892
    %1784 = vmatpush.msra.mxu0 %v888
    %1785 = vmatpush.msra.mxu0 %v884
    %1786 = vmatpush.msra.mxu0 %v880
    %1787 = vmatmul.f32.gmra.mxu0 %v1247
    %v1788 = vpop.f32.mrf.mxu0
    %v1789 = vadd.f32 0.0, %v1788
    %1790 = vdwg.mxu0
    %1791 = vmatpush.msra.mxu0 %v809
    %1792 = vmatpush.msra.mxu0 %v805
    %1793 = vmatpush.msra.mxu0 %v801
    %1794 = vmatpush.msra.mxu0 %v797
    %1795 = vmatpush.msra.mxu0 %v793
    %1796 = vmatpush.msra.mxu0 %v789
    %1797 = vmatpush.msra.mxu0 %v785
    %1798 = vmatpush.msra.mxu0 %v781
    %1799 = vmatpush.msra.mxu0 %v777
    %1800 = vmatpush.msra.mxu0 %v773
    %1801 = vmatpush.msra.mxu0 %v769
    %1802 = vmatpush.msra.mxu0 %v765
    %1803 = vmatpush.msra.mxu0 %v761
    %1804 = vmatpush.msra.mxu0 %v757
    %1805 = vmatpush.msra.mxu0 %v753
    %1806 = vmatpush.msra.mxu0 %v749
    %1807 = vmatmul.f32.gmra.mxu0 %v1709
    %v1808 = vpop.f32.mrf.mxu0
    %v1809 = vadd.f32 %v1729, %v1808
    %1810 = vdwg.mxu0
    %1811 = vmatpush.msra.mxu0 %v873
    %1812 = vmatpush.msra.mxu0 %v869
    %1813 = vmatpush.msra.mxu0 %v865
    %1814 = vmatpush.msra.mxu0 %v861
    %1815 = vmatpush.msra.mxu0 %v857
    %1816 = vmatpush.msra.mxu0 %v853
    %1817 = vmatpush.msra.mxu0 %v849
    %1818 = vmatpush.msra.mxu0 %v845
    %1819 = vmatpush.msra.mxu0 %v841
    %1820 = vmatpush.msra.mxu0 %v837
    %1821 = vmatpush.msra.mxu0 %v833
    %1822 = vmatpush.msra.mxu0 %v829
    %1823 = vmatpush.msra.mxu0 %v825
    %1824 = vmatpush.msra.mxu0 %v821
    %1825 = vmatpush.msra.mxu0 %v817
    %1826 = vmatpush.msra.mxu0 %v813
    %1827 = vmatmul.f32.gmra.mxu0 %v1710
    %v1828 = vpop.f32.mrf.mxu0
    %v1829 = vadd.f32 %v1809, %v1828
    %1830 = vdwg.mxu0
    %1831 = vmatpush.msra.mxu0 %v810
    %1832 = vmatpush.msra.mxu0 %v806
    %1833 = vmatpush.msra.mxu0 %v802
    %1834 = vmatpush.msra.mxu0 %v798
    %1835 = vmatpush.msra.mxu0 %v794
    %1836 = vmatpush.msra.mxu0 %v790
    %1837 = vmatpush.msra.mxu0 %v786
    %1838 = vmatpush.msra.mxu0 %v782
    %1839 = vmatpush.msra.mxu0 %v778
    %1840 = vmatpush.msra.mxu0 %v774
    %1841 = vmatpush.msra.mxu0 %v770
    %1842 = vmatpush.msra.mxu0 %v766
    %1843 = vmatpush.msra.mxu0 %v762
    %1844 = vmatpush.msra.mxu0 %v758
    %1845 = vmatpush.msra.mxu0 %v754
    %1846 = vmatpush.msra.mxu0 %v750
    %1847 = vmatmul.f32.gmra.mxu0 %v1709
    %v1848 = vpop.f32.mrf.mxu0
    %v1849 = vadd.f32 %v1749, %v1848
    %1850 = vdwg.mxu0
    %1851 = vmatpush.msra.mxu0 %v874
    %1852 = vmatpush.msra.mxu0 %v870
    %1853 = vmatpush.msra.mxu0 %v866
    %1854 = vmatpush.msra.mxu0 %v862
    %1855 = vmatpush.msra.mxu0 %v858
    %1856 = vmatpush.msra.mxu0 %v854
    %1857 = vmatpush.msra.mxu0 %v850
    %1858 = vmatpush.msra.mxu0 %v846
    %1859 = vmatpush.msra.mxu0 %v842
    %1860 = vmatpush.msra.mxu0 %v838
    %1861 = vmatpush.msra.mxu0 %v834
    %1862 = vmatpush.msra.mxu0 %v830
    %1863 = vmatpush.msra.mxu0 %v826
    %1864 = vmatpush.msra.mxu0 %v822
    %1865 = vmatpush.msra.mxu0 %v818
    %1866 = vmatpush.msra.mxu0 %v814
    %1867 = vmatmul.f32.gmra.mxu0 %v1710
    %v1868 = vpop.f32.mrf.mxu0
    %v1869 = vadd.f32 %v1849, %v1868
    %1870 = vdwg.mxu0
    %1871 = vmatpush.msra.mxu0 %v811
    %1872 = vmatpush.msra.mxu0 %v807
    %1873 = vmatpush.msra.mxu0 %v803
    %1874 = vmatpush.msra.mxu0 %v799
    %1875 = vmatpush.msra.mxu0 %v795
    %1876 = vmatpush.msra.mxu0 %v791
    %1877 = vmatpush.msra.mxu0 %v787
    %1878 = vmatpush.msra.mxu0 %v783
    %1879 = vmatpush.msra.mxu0 %v779
    %1880 = vmatpush.msra.mxu0 %v775
    %1881 = vmatpush.msra.mxu0 %v771
    %1882 = vmatpush.msra.mxu0 %v767
    %1883 = vmatpush.msra.mxu0 %v763
    %1884 = vmatpush.msra.mxu0 %v759
    %1885 = vmatpush.msra.mxu0 %v755
    %1886 = vmatpush.msra.mxu0 %v751
    %1887 = vmatmul.f32.gmra.mxu0 %v1709
    %v1888 = vpop.f32.mrf.mxu0
    %v1889 = vadd.f32 %v1769, %v1888
    %1890 = vdwg.mxu0
    %1891 = vmatpush.msra.mxu0 %v875
    %1892 = vmatpush.msra.mxu0 %v871
    %1893 = vmatpush.msra.mxu0 %v867
    %1894 = vmatpush.msra.mxu0 %v863
    %1895 = vmatpush.msra.mxu0 %v859
    %1896 = vmatpush.msra.mxu0 %v855
    %1897 = vmatpush.msra.mxu0 %v851
    %1898 = vmatpush.msra.mxu0 %v847
    %1899 = vmatpush.msra.mxu0 %v843
    %1900 = vmatpush.msra.mxu0 %v839
    %1901 = vmatpush.msra.mxu0 %v835
    %1902 = vmatpush.msra.mxu0 %v831
    %1903 = vmatpush.msra.mxu0 %v827
    %1904 = vmatpush.msra.mxu0 %v823
    %1905 = vmatpush.msra.mxu0 %v819
    %1906 = vmatpush.msra.mxu0 %v815
    %1907 = vmatmul.f32.gmra.mxu0 %v1710
    %v1908 = vpop.f32.mrf.mxu0
    %v1909 = vadd.f32 %v1889, %v1908
    %1910 = vdwg.mxu0
    %1911 = vmatpush.msra.mxu0 %v812
    %1912 = vmatpush.msra.mxu0 %v808
    %1913 = vmatpush.msra.mxu0 %v804
    %1914 = vmatpush.msra.mxu0 %v800
    %1915 = vmatpush.msra.mxu0 %v796
    %1916 = vmatpush.msra.mxu0 %v792
    %1917 = vmatpush.msra.mxu0 %v788
    %1918 = vmatpush.msra.mxu0 %v784
    %1919 = vmatpush.msra.mxu0 %v780
    %1920 = vmatpush.msra.mxu0 %v776
    %1921 = vmatpush.msra.mxu0 %v772
    %1922 = vmatpush.msra.mxu0 %v768
    %1923 = vmatpush.msra.mxu0 %v764
    %1924 = vmatpush.msra.mxu0 %v760
    %1925 = vmatpush.msra.mxu0 %v756
    %1926 = vmatpush.msra.mxu0 %v752
    %1927 = vmatmul.f32.gmra.mxu0 %v1709
    %v1928 = vpop.f32.mrf.mxu0
    %v1929 = vadd.f32 %v1789, %v1928
    %1930 = vdwg.mxu0
    %1931 = vmatpush.msra.mxu0 %v876
    %1932 = vmatpush.msra.mxu0 %v872
    %1933 = vmatpush.msra.mxu0 %v868
    %1934 = vmatpush.msra.mxu0 %v864
    %1935 = vmatpush.msra.mxu0 %v860
    %1936 = vmatpush.msra.mxu0 %v856
    %1937 = vmatpush.msra.mxu0 %v852
    %1938 = vmatpush.msra.mxu0 %v848
    %1939 = vmatpush.msra.mxu0 %v844
    %1940 = vmatpush.msra.mxu0 %v840
    %1941 = vmatpush.msra.mxu0 %v836
    %1942 = vmatpush.msra.mxu0 %v832
    %1943 = vmatpush.msra.mxu0 %v828
    %1944 = vmatpush.msra.mxu0 %v824
    %1945 = vmatpush.msra.mxu0 %v820
    %1946 = vmatpush.msra.mxu0 %v816
    %1947 = vmatmul.f32.gmra.mxu0 %v1710
    %v1948 = vpop.f32.mrf.mxu0
    %v1949 = vadd.f32 %v1929, %v1948
    %1950 = vdwg.mxu0
    %v1951 = vadd.f32 %v1829, %v23
    %v1952 = vadd.f32 %v1869, %v24
    %v1953 = vadd.f32 %v1909, %v25
    %v1954 = vadd.f32 %v1949, %v26
    %v1955 = vxor.u32 %v1951, 2147483648
    %v1956 = vmul.f32 %v1955, 1.442695
    %v1957 = vpow.pop %v1956
    %v1958 = vadd.f32 %v1957, 1.0
    %v1959 = vrcp.pop %v1958
    %v1960 = vmul.f32 %v1958, %v1959
    %v1961 = vsub.f32 1.0, %v1960
    %v1962 = vmul.f32 %v1959, %v1961
    %v1963 = vadd.f32 %v1959, %v1962
    %vm1964 = vweird.f32 %v1958
    %vm1965 = vweird.f32 %v1959
    %vm1966 = vmor %vm1964, %vm1965
    %v1967 = vsel %vm1966, %v1959, %v1963
    %v1968 = vand.u32 2147483647, %v1958
    %vm1969 = vcmp.eq.f32.partialorder %v1968, 8.507059e+37
    %v1970 = vand.u32 %v1958, 2147483648
    %v1971 = vor.u32 1.1754944e-38, %v1970
    %v1972 = vsel %vm1969, %v1971, %v1967
    %v1973 = vmul.f32 1.0, %v1972
    %v1974 = vxor.u32 %v1952, 2147483648
    %v1975 = vmul.f32 %v1974, 1.442695
    %v1976 = vpow.pop %v1975
    %v1977 = vadd.f32 %v1976, 1.0
    %v1978 = vrcp.pop %v1977
    %v1979 = vmul.f32 %v1977, %v1978
    %v1980 = vsub.f32 1.0, %v1979
    %v1981 = vmul.f32 %v1978, %v1980
    %v1982 = vadd.f32 %v1978, %v1981
    %vm1983 = vweird.f32 %v1977
    %vm1984 = vweird.f32 %v1978
    %vm1985 = vmor %vm1983, %vm1984
    %v1986 = vsel %vm1985, %v1978, %v1982
    %v1987 = vand.u32 2147483647, %v1977
    %vm1988 = vcmp.eq.f32.partialorder %v1987, 8.507059e+37
    %v1989 = vand.u32 %v1977, 2147483648
    %v1990 = vor.u32 1.1754944e-38, %v1989
    %v1991 = vsel %vm1988, %v1990, %v1986
    %v1992 = vmul.f32 1.0, %v1991
    %v1993 = vtanh.pop %v1953
    %v1994 = vxor.u32 %v1954, 2147483648
    %v1995 = vmul.f32 %v1994, 1.442695
    %v1996 = vpow.pop %v1995
    %v1997 = vadd.f32 %v1996, 1.0
    %v1998 = vrcp.pop %v1997
    %v1999 = vmul.f32 %v1997, %v1998
    %v2000 = vsub.f32 1.0, %v1999
    %v2001 = vmul.f32 %v1998, %v2000
    %v2002 = vadd.f32 %v1998, %v2001
    %vm2003 = vweird.f32 %v1997
    %vm2004 = vweird.f32 %v1998
    %vm2005 = vmor %vm2003, %vm2004
    %v2006 = vsel %vm2005, %v1998, %v2002
    %v2007 = vand.u32 2147483647, %v1997
    %vm2008 = vcmp.eq.f32.partialorder %v2007, 8.507059e+37
    %v2009 = vand.u32 %v1997, 2147483648
    %v2010 = vor.u32 1.1754944e-38, %v2009
    %v2011 = vsel %vm2008, %v2010, %v2006
    %v2012 = vmul.f32 1.0, %v2011
    %v2013 = vmul.f32 %v1992, %v1245
    %v2014 = vmul.f32 %v1973, %v1993
    %v2015 = vadd.f32 %v2013, %v2014
    %v2016 = vtanh.pop %v2015
    %v2017 = vmul.f32 %v2012, %v2016
    %s2018 = scalar_lea.vmem %s0, 128
    %v2019 = vld [vmem:[%s2018] sm:$0xff]
    %v2020 = vld [vmem:[%s2018 + $0x8] sm:$0xff]
    %v2021 = vld [vmem:[%s2018 + $0x10] sm:$0xff]
    %v2022 = vld [vmem:[%s2018 + $0x18] sm:$0xff]
    %v2023 = vld [vmem:[%s2018 + $0x20] sm:$0xff]
    %v2024 = vld [vmem:[%s2018 + $0x28] sm:$0xff]
    %v2025 = vld [vmem:[%s2018 + $0x30] sm:$0xff]
    %v2026 = vld [vmem:[%s2018 + $0x38] sm:$0xff]
    %2027 = vmatpush.msra.mxu0 %v159
    %2028 = vmatpush.msra.mxu0 %v151
    %2029 = vmatpush.msra.mxu0 %v143
    %2030 = vmatpush.msra.mxu0 %v135
    %2031 = vmatpush.msra.mxu0 %v127
    %2032 = vmatpush.msra.mxu0 %v119
    %2033 = vmatpush.msra.mxu0 %v111
    %2034 = vmatpush.msra.mxu0 %v103
    %2035 = vmatpush.msra.mxu0 %v95
    %2036 = vmatpush.msra.mxu0 %v87
    %2037 = vmatpush.msra.mxu0 %v79
    %2038 = vmatpush.msra.mxu0 %v71
    %2039 = vmatpush.msra.mxu0 %v63
    %2040 = vmatpush.msra.mxu0 %v55
    %2041 = vmatpush.msra.mxu0 %v47
    %2042 = vmatpush.msra.mxu0 %v39
    %2043 = vmatmul.f32.gmra.mxu0 %v1709
    %v2044 = vpop.f32.mrf.mxu0
    %v2045 = vadd.f32 0.0, %v2044
    %2046 = vdwg.mxu0
    %2047 = vmatpush.msra.mxu0 %v287
    %2048 = vmatpush.msra.mxu0 %v279
    %2049 = vmatpush.msra.mxu0 %v271
    %2050 = vmatpush.msra.mxu0 %v263
    %2051 = vmatpush.msra.mxu0 %v255
    %2052 = vmatpush.msra.mxu0 %v247
    %2053 = vmatpush.msra.mxu0 %v239
    %2054 = vmatpush.msra.mxu0 %v231
    %2055 = vmatpush.msra.mxu0 %v223
    %2056 = vmatpush.msra.mxu0 %v215
    %2057 = vmatpush.msra.mxu0 %v207
    %2058 = vmatpush.msra.mxu0 %v199
    %2059 = vmatpush.msra.mxu0 %v191
    %2060 = vmatpush.msra.mxu0 %v183
    %2061 = vmatpush.msra.mxu0 %v175
    %2062 = vmatpush.msra.mxu0 %v167
    %2063 = vmatmul.f32.gmra.mxu0 %v1710
    %v2064 = vpop.f32.mrf.mxu0
    %v2065 = vadd.f32 %v2045, %v2064
    %2066 = vdwg.mxu0
    %2067 = vmatpush.msra.mxu0 %v160
    %2068 = vmatpush.msra.mxu0 %v152
    %2069 = vmatpush.msra.mxu0 %v144
    %2070 = vmatpush.msra.mxu0 %v136
    %2071 = vmatpush.msra.mxu0 %v128
    %2072 = vmatpush.msra.mxu0 %v120
    %2073 = vmatpush.msra.mxu0 %v112
    %2074 = vmatpush.msra.mxu0 %v104
    %2075 = vmatpush.msra.mxu0 %v96
    %2076 = vmatpush.msra.mxu0 %v88
    %2077 = vmatpush.msra.mxu0 %v80
    %2078 = vmatpush.msra.mxu0 %v72
    %2079 = vmatpush.msra.mxu0 %v64
    %2080 = vmatpush.msra.mxu0 %v56
    %2081 = vmatpush.msra.mxu0 %v48
    %2082 = vmatpush.msra.mxu0 %v40
    %2083 = vmatmul.f32.gmra.mxu0 %v1709
    %v2084 = vpop.f32.mrf.mxu0
    %v2085 = vadd.f32 0.0, %v2084
    %2086 = vdwg.mxu0
    %2087 = vmatpush.msra.mxu0 %v288
    %2088 = vmatpush.msra.mxu0 %v280
    %2089 = vmatpush.msra.mxu0 %v272
    %2090 = vmatpush.msra.mxu0 %v264
    %2091 = vmatpush.msra.mxu0 %v256
    %2092 = vmatpush.msra.mxu0 %v248
    %2093 = vmatpush.msra.mxu0 %v240
    %2094 = vmatpush.msra.mxu0 %v232
    %2095 = vmatpush.msra.mxu0 %v224
    %2096 = vmatpush.msra.mxu0 %v216
    %2097 = vmatpush.msra.mxu0 %v208
    %2098 = vmatpush.msra.mxu0 %v200
    %2099 = vmatpush.msra.mxu0 %v192
    %2100 = vmatpush.msra.mxu0 %v184
    %2101 = vmatpush.msra.mxu0 %v176
    %2102 = vmatpush.msra.mxu0 %v168
    %2103 = vmatmul.f32.gmra.mxu0 %v1710
    %v2104 = vpop.f32.mrf.mxu0
    %v2105 = vadd.f32 %v2085, %v2104
    %2106 = vdwg.mxu0
    %2107 = vmatpush.msra.mxu0 %v161
    %2108 = vmatpush.msra.mxu0 %v153
    %2109 = vmatpush.msra.mxu0 %v145
    %2110 = vmatpush.msra.mxu0 %v137
    %2111 = vmatpush.msra.mxu0 %v129
    %2112 = vmatpush.msra.mxu0 %v121
    %2113 = vmatpush.msra.mxu0 %v113
    %2114 = vmatpush.msra.mxu0 %v105
    %2115 = vmatpush.msra.mxu0 %v97
    %2116 = vmatpush.msra.mxu0 %v89
    %2117 = vmatpush.msra.mxu0 %v81
    %2118 = vmatpush.msra.mxu0 %v73
    %2119 = vmatpush.msra.mxu0 %v65
    %2120 = vmatpush.msra.mxu0 %v57
    %2121 = vmatpush.msra.mxu0 %v49
    %2122 = vmatpush.msra.mxu0 %v41
    %2123 = vmatmul.f32.gmra.mxu0 %v1709
    %v2124 = vpop.f32.mrf.mxu0
    %v2125 = vadd.f32 0.0, %v2124
    %2126 = vdwg.mxu0
    %2127 = vmatpush.msra.mxu0 %v289
    %2128 = vmatpush.msra.mxu0 %v281
    %2129 = vmatpush.msra.mxu0 %v273
    %2130 = vmatpush.msra.mxu0 %v265
    %2131 = vmatpush.msra.mxu0 %v257
    %2132 = vmatpush.msra.mxu0 %v249
    %2133 = vmatpush.msra.mxu0 %v241
    %2134 = vmatpush.msra.mxu0 %v233
    %2135 = vmatpush.msra.mxu0 %v225
    %2136 = vmatpush.msra.mxu0 %v217
    %2137 = vmatpush.msra.mxu0 %v209
    %2138 = vmatpush.msra.mxu0 %v201
    %2139 = vmatpush.msra.mxu0 %v193
    %2140 = vmatpush.msra.mxu0 %v185
    %2141 = vmatpush.msra.mxu0 %v177
    %2142 = vmatpush.msra.mxu0 %v169
    %2143 = vmatmul.f32.gmra.mxu0 %v1710
    %v2144 = vpop.f32.mrf.mxu0
    %v2145 = vadd.f32 %v2125, %v2144
    %2146 = vdwg.mxu0
    %2147 = vmatpush.msra.mxu0 %v162
    %2148 = vmatpush.msra.mxu0 %v154
    %2149 = vmatpush.msra.mxu0 %v146
    %2150 = vmatpush.msra.mxu0 %v138
    %2151 = vmatpush.msra.mxu0 %v130
    %2152 = vmatpush.msra.mxu0 %v122
    %2153 = vmatpush.msra.mxu0 %v114
    %2154 = vmatpush.msra.mxu0 %v106
    %2155 = vmatpush.msra.mxu0 %v98
    %2156 = vmatpush.msra.mxu0 %v90
    %2157 = vmatpush.msra.mxu0 %v82
    %2158 = vmatpush.msra.mxu0 %v74
    %2159 = vmatpush.msra.mxu0 %v66
    %2160 = vmatpush.msra.mxu0 %v58
    %2161 = vmatpush.msra.mxu0 %v50
    %2162 = vmatpush.msra.mxu0 %v42
    %2163 = vmatmul.f32.gmra.mxu0 %v1709
    %v2164 = vpop.f32.mrf.mxu0
    %v2165 = vadd.f32 0.0, %v2164
    %2166 = vdwg.mxu0
    %2167 = vmatpush.msra.mxu0 %v290
    %2168 = vmatpush.msra.mxu0 %v282
    %2169 = vmatpush.msra.mxu0 %v274
    %2170 = vmatpush.msra.mxu0 %v266
    %2171 = vmatpush.msra.mxu0 %v258
    %2172 = vmatpush.msra.mxu0 %v250
    %2173 = vmatpush.msra.mxu0 %v242
    %2174 = vmatpush.msra.mxu0 %v234
    %2175 = vmatpush.msra.mxu0 %v226
    %2176 = vmatpush.msra.mxu0 %v218
    %2177 = vmatpush.msra.mxu0 %v210
    %2178 = vmatpush.msra.mxu0 %v202
    %2179 = vmatpush.msra.mxu0 %v194
    %2180 = vmatpush.msra.mxu0 %v186
    %2181 = vmatpush.msra.mxu0 %v178
    %2182 = vmatpush.msra.mxu0 %v170
    %2183 = vmatmul.f32.gmra.mxu0 %v1710
    %v2184 = vpop.f32.mrf.mxu0
    %v2185 = vadd.f32 %v2165, %v2184
    %2186 = vdwg.mxu0
    %2187 = vmatpush.msra.mxu0 %v163
    %2188 = vmatpush.msra.mxu0 %v155
    %2189 = vmatpush.msra.mxu0 %v147
    %2190 = vmatpush.msra.mxu0 %v139
    %2191 = vmatpush.msra.mxu0 %v131
    %2192 = vmatpush.msra.mxu0 %v123
    %2193 = vmatpush.msra.mxu0 %v115
    %2194 = vmatpush.msra.mxu0 %v107
    %2195 = vmatpush.msra.mxu0 %v99
    %2196 = vmatpush.msra.mxu0 %v91
    %2197 = vmatpush.msra.mxu0 %v83
    %2198 = vmatpush.msra.mxu0 %v75
    %2199 = vmatpush.msra.mxu0 %v67
    %2200 = vmatpush.msra.mxu0 %v59
    %2201 = vmatpush.msra.mxu0 %v51
    %2202 = vmatpush.msra.mxu0 %v43
    %2203 = vmatmul.f32.gmra.mxu0 %v1709
    %v2204 = vpop.f32.mrf.mxu0
    %v2205 = vadd.f32 0.0, %v2204
    %2206 = vdwg.mxu0
    %2207 = vmatpush.msra.mxu0 %v291
    %2208 = vmatpush.msra.mxu0 %v283
    %2209 = vmatpush.msra.mxu0 %v275
    %2210 = vmatpush.msra.mxu0 %v267
    %2211 = vmatpush.msra.mxu0 %v259
    %2212 = vmatpush.msra.mxu0 %v251
    %2213 = vmatpush.msra.mxu0 %v243
    %2214 = vmatpush.msra.mxu0 %v235
    %2215 = vmatpush.msra.mxu0 %v227
    %2216 = vmatpush.msra.mxu0 %v219
    %2217 = vmatpush.msra.mxu0 %v211
    %2218 = vmatpush.msra.mxu0 %v203
    %2219 = vmatpush.msra.mxu0 %v195
    %2220 = vmatpush.msra.mxu0 %v187
    %2221 = vmatpush.msra.mxu0 %v179
    %2222 = vmatpush.msra.mxu0 %v171
    %2223 = vmatmul.f32.gmra.mxu0 %v1710
    %v2224 = vpop.f32.mrf.mxu0
    %v2225 = vadd.f32 %v2205, %v2224
    %2226 = vdwg.mxu0
    %2227 = vmatpush.msra.mxu0 %v164
    %2228 = vmatpush.msra.mxu0 %v156
    %2229 = vmatpush.msra.mxu0 %v148
    %2230 = vmatpush.msra.mxu0 %v140
    %2231 = vmatpush.msra.mxu0 %v132
    %2232 = vmatpush.msra.mxu0 %v124
    %2233 = vmatpush.msra.mxu0 %v116
    %2234 = vmatpush.msra.mxu0 %v108
    %2235 = vmatpush.msra.mxu0 %v100
    %2236 = vmatpush.msra.mxu0 %v92
    %2237 = vmatpush.msra.mxu0 %v84
    %2238 = vmatpush.msra.mxu0 %v76
    %2239 = vmatpush.msra.mxu0 %v68
    %2240 = vmatpush.msra.mxu0 %v60
    %2241 = vmatpush.msra.mxu0 %v52
    %2242 = vmatpush.msra.mxu0 %v44
    %2243 = vmatmul.f32.gmra.mxu0 %v1709
    %v2244 = vpop.f32.mrf.mxu0
    %v2245 = vadd.f32 0.0, %v2244
    %2246 = vdwg.mxu0
    %2247 = vmatpush.msra.mxu0 %v292
    %2248 = vmatpush.msra.mxu0 %v284
    %2249 = vmatpush.msra.mxu0 %v276
    %2250 = vmatpush.msra.mxu0 %v268
    %2251 = vmatpush.msra.mxu0 %v260
    %2252 = vmatpush.msra.mxu0 %v252
    %2253 = vmatpush.msra.mxu0 %v244
    %2254 = vmatpush.msra.mxu0 %v236
    %2255 = vmatpush.msra.mxu0 %v228
    %2256 = vmatpush.msra.mxu0 %v220
    %2257 = vmatpush.msra.mxu0 %v212
    %2258 = vmatpush.msra.mxu0 %v204
    %2259 = vmatpush.msra.mxu0 %v196
    %2260 = vmatpush.msra.mxu0 %v188
    %2261 = vmatpush.msra.mxu0 %v180
    %2262 = vmatpush.msra.mxu0 %v172
    %2263 = vmatmul.f32.gmra.mxu0 %v1710
    %v2264 = vpop.f32.mrf.mxu0
    %v2265 = vadd.f32 %v2245, %v2264
    %2266 = vdwg.mxu0
    %2267 = vmatpush.msra.mxu0 %v165
    %2268 = vmatpush.msra.mxu0 %v157
    %2269 = vmatpush.msra.mxu0 %v149
    %2270 = vmatpush.msra.mxu0 %v141
    %2271 = vmatpush.msra.mxu0 %v133
    %2272 = vmatpush.msra.mxu0 %v125
    %2273 = vmatpush.msra.mxu0 %v117
    %2274 = vmatpush.msra.mxu0 %v109
    %2275 = vmatpush.msra.mxu0 %v101
    %2276 = vmatpush.msra.mxu0 %v93
    %2277 = vmatpush.msra.mxu0 %v85
    %2278 = vmatpush.msra.mxu0 %v77
    %2279 = vmatpush.msra.mxu0 %v69
    %2280 = vmatpush.msra.mxu0 %v61
    %2281 = vmatpush.msra.mxu0 %v53
    %2282 = vmatpush.msra.mxu0 %v45
    %2283 = vmatmul.f32.gmra.mxu0 %v1709
    %v2284 = vpop.f32.mrf.mxu0
    %v2285 = vadd.f32 0.0, %v2284
    %2286 = vdwg.mxu0
    %2287 = vmatpush.msra.mxu0 %v293
    %2288 = vmatpush.msra.mxu0 %v285
    %2289 = vmatpush.msra.mxu0 %v277
    %2290 = vmatpush.msra.mxu0 %v269
    %2291 = vmatpush.msra.mxu0 %v261
    %2292 = vmatpush.msra.mxu0 %v253
    %2293 = vmatpush.msra.mxu0 %v245
    %2294 = vmatpush.msra.mxu0 %v237
    %2295 = vmatpush.msra.mxu0 %v229
    %2296 = vmatpush.msra.mxu0 %v221
    %2297 = vmatpush.msra.mxu0 %v213
    %2298 = vmatpush.msra.mxu0 %v205
    %2299 = vmatpush.msra.mxu0 %v197
    %2300 = vmatpush.msra.mxu0 %v189
    %2301 = vmatpush.msra.mxu0 %v181
    %2302 = vmatpush.msra.mxu0 %v173
    %2303 = vmatmul.f32.gmra.mxu0 %v1710
    %v2304 = vpop.f32.mrf.mxu0
    %v2305 = vadd.f32 %v2285, %v2304
    %2306 = vdwg.mxu0
    %2307 = vmatpush.msra.mxu0 %v166
    %2308 = vmatpush.msra.mxu0 %v158
    %2309 = vmatpush.msra.mxu0 %v150
    %2310 = vmatpush.msra.mxu0 %v142
    %2311 = vmatpush.msra.mxu0 %v134
    %2312 = vmatpush.msra.mxu0 %v126
    %2313 = vmatpush.msra.mxu0 %v118
    %2314 = vmatpush.msra.mxu0 %v110
    %2315 = vmatpush.msra.mxu0 %v102
    %2316 = vmatpush.msra.mxu0 %v94
    %2317 = vmatpush.msra.mxu0 %v86
    %2318 = vmatpush.msra.mxu0 %v78
    %2319 = vmatpush.msra.mxu0 %v70
    %2320 = vmatpush.msra.mxu0 %v62
    %2321 = vmatpush.msra.mxu0 %v54
    %2322 = vmatpush.msra.mxu0 %v46
    %2323 = vmatmul.f32.gmra.mxu0 %v1709
    %v2324 = vpop.f32.mrf.mxu0
    %v2325 = vadd.f32 0.0, %v2324
    %2326 = vdwg.mxu0
    %2327 = vmatpush.msra.mxu0 %v294
    %2328 = vmatpush.msra.mxu0 %v286
    %2329 = vmatpush.msra.mxu0 %v278
    %2330 = vmatpush.msra.mxu0 %v270
    %2331 = vmatpush.msra.mxu0 %v262
    %2332 = vmatpush.msra.mxu0 %v254
    %2333 = vmatpush.msra.mxu0 %v246
    %2334 = vmatpush.msra.mxu0 %v238
    %2335 = vmatpush.msra.mxu0 %v230
    %2336 = vmatpush.msra.mxu0 %v222
    %2337 = vmatpush.msra.mxu0 %v214
    %2338 = vmatpush.msra.mxu0 %v206
    %2339 = vmatpush.msra.mxu0 %v198
    %2340 = vmatpush.msra.mxu0 %v190
    %2341 = vmatpush.msra.mxu0 %v182
    %2342 = vmatpush.msra.mxu0 %v174
    %2343 = vmatmul.f32.gmra.mxu0 %v1710
    %v2344 = vpop.f32.mrf.mxu0
    %v2345 = vadd.f32 %v2325, %v2344
    %2346 = vdwg.mxu0
    %v2347 = vadd.f32 %v2019, %v2065
    %v2348 = vadd.f32 %v2020, %v2105
    %v2349 = vadd.f32 %v2021, %v2145
    %v2350 = vadd.f32 %v2022, %v2185
    %v2351 = vadd.f32 %v2023, %v2225
    %v2352 = vadd.f32 %v2024, %v2265
    %v2353 = vadd.f32 %v2025, %v2305
    %v2354 = vadd.f32 %v2026, %v2345
    %v2355 = vxor.u32 %v2347, 2147483648
    %v2356 = vxor.u32 %v2348, 2147483648
    %v2357 = vmul.f32 %v2355, 1.442695
    %v2358 = vpow.pop %v2357
    %v2359 = vmul.f32 %v2356, 1.442695
    %v2360 = vpow.pop %v2359
    %v2361 = vadd.f32 %v2358, 1.0
    %v2362 = vadd.f32 %v2360, 1.0
    %v2363 = vrcp.pop %v2361
    %v2364 = vmul.f32 %v2361, %v2363
    %v2365 = vsub.f32 1.0, %v2364
    %v2366 = vmul.f32 %v2363, %v2365
    %v2367 = vadd.f32 %v2363, %v2366
    %vm2368 = vweird.f32 %v2361
    %vm2369 = vweird.f32 %v2363
    %vm2370 = vmor %vm2368, %vm2369
    %v2371 = vsel %vm2370, %v2363, %v2367
    %v2372 = vand.u32 2147483647, %v2361
    %vm2373 = vcmp.eq.f32.partialorder %v2372, 8.507059e+37
    %v2374 = vand.u32 %v2361, 2147483648
    %v2375 = vor.u32 1.1754944e-38, %v2374
    %v2376 = vsel %vm2373, %v2375, %v2371
    %v2377 = vmul.f32 1.0, %v2376
    %v2378 = vrcp.pop %v2362
    %v2379 = vmul.f32 %v2362, %v2378
    %v2380 = vsub.f32 1.0, %v2379
    %v2381 = vmul.f32 %v2378, %v2380
    %v2382 = vadd.f32 %v2378, %v2381
    %vm2383 = vweird.f32 %v2362
    %vm2384 = vweird.f32 %v2378
    %vm2385 = vmor %vm2383, %vm2384
    %v2386 = vsel %vm2385, %v2378, %v2382
    %v2387 = vand.u32 2147483647, %v2362
    %vm2388 = vcmp.eq.f32.partialorder %v2387, 8.507059e+37
    %v2389 = vand.u32 %v2362, 2147483648
    %v2390 = vor.u32 1.1754944e-38, %v2389
    %v2391 = vsel %vm2388, %v2390, %v2386
    %v2392 = vmul.f32 1.0, %v2391
    %v2393 = vxor.u32 %v2349, 2147483648
    %v2394 = vxor.u32 %v2350, 2147483648
    %v2395 = vmul.f32 %v2393, 1.442695
    %v2396 = vpow.pop %v2395
    %v2397 = vmul.f32 %v2394, 1.442695
    %v2398 = vpow.pop %v2397
    %v2399 = vadd.f32 %v2396, 1.0
    %v2400 = vadd.f32 %v2398, 1.0
    %v2401 = vrcp.pop %v2399
    %v2402 = vmul.f32 %v2399, %v2401
    %v2403 = vsub.f32 1.0, %v2402
    %v2404 = vmul.f32 %v2401, %v2403
    %v2405 = vadd.f32 %v2401, %v2404
    %vm2406 = vweird.f32 %v2399
    %vm2407 = vweird.f32 %v2401
    %vm2408 = vmor %vm2406, %vm2407
    %v2409 = vsel %vm2408, %v2401, %v2405
    %v2410 = vand.u32 2147483647, %v2399
    %vm2411 = vcmp.eq.f32.partialorder %v2410, 8.507059e+37
    %v2412 = vand.u32 %v2399, 2147483648
    %v2413 = vor.u32 1.1754944e-38, %v2412
    %v2414 = vsel %vm2411, %v2413, %v2409
    %v2415 = vmul.f32 1.0, %v2414
    %v2416 = vrcp.pop %v2400
    %v2417 = vmul.f32 %v2400, %v2416
    %v2418 = vsub.f32 1.0, %v2417
    %v2419 = vmul.f32 %v2416, %v2418
    %v2420 = vadd.f32 %v2416, %v2419
    %vm2421 = vweird.f32 %v2400
    %vm2422 = vweird.f32 %v2416
    %vm2423 = vmor %vm2421, %vm2422
    %v2424 = vsel %vm2423, %v2416, %v2420
    %v2425 = vand.u32 2147483647, %v2400
    %vm2426 = vcmp.eq.f32.partialorder %v2425, 8.507059e+37
    %v2427 = vand.u32 %v2400, 2147483648
    %v2428 = vor.u32 1.1754944e-38, %v2427
    %v2429 = vsel %vm2426, %v2428, %v2424
    %v2430 = vmul.f32 1.0, %v2429
    %v2431 = vtanh.pop %v2351
    %v2432 = vtanh.pop %v2352
    %v2433 = vxor.u32 %v2353, 2147483648
    %v2434 = vxor.u32 %v2354, 2147483648
    %v2435 = vmul.f32 %v2433, 1.442695
    %v2436 = vpow.pop %v2435
    %v2437 = vmul.f32 %v2434, 1.442695
    %v2438 = vpow.pop %v2437
    %v2439 = vadd.f32 %v2436, 1.0
    %v2440 = vadd.f32 %v2438, 1.0
    %v2441 = vrcp.pop %v2439
    %v2442 = vmul.f32 %v2439, %v2441
    %v2443 = vsub.f32 1.0, %v2442
    %v2444 = vmul.f32 %v2441, %v2443
    %v2445 = vadd.f32 %v2441, %v2444
    %vm2446 = vweird.f32 %v2439
    %vm2447 = vweird.f32 %v2441
    %vm2448 = vmor %vm2446, %vm2447
    %v2449 = vsel %vm2448, %v2441, %v2445
    %v2450 = vand.u32 2147483647, %v2439
    %vm2451 = vcmp.eq.f32.partialorder %v2450, 8.507059e+37
    %v2452 = vand.u32 %v2439, 2147483648
    %v2453 = vor.u32 1.1754944e-38, %v2452
    %v2454 = vsel %vm2451, %v2453, %v2449
    %v2455 = vmul.f32 1.0, %v2454
    %v2456 = vrcp.pop %v2440
    %v2457 = vmul.f32 %v2440, %v2456
    %v2458 = vsub.f32 1.0, %v2457
    %v2459 = vmul.f32 %v2456, %v2458
    %v2460 = vadd.f32 %v2456, %v2459
    %vm2461 = vweird.f32 %v2440
    %vm2462 = vweird.f32 %v2456
    %vm2463 = vmor %vm2461, %vm2462
    %v2464 = vsel %vm2463, %v2456, %v2460
    %v2465 = vand.u32 2147483647, %v2440
    %vm2466 = vcmp.eq.f32.partialorder %v2465, 8.507059e+37
    %v2467 = vand.u32 %v2440, 2147483648
    %v2468 = vor.u32 1.1754944e-38, %v2467
    %v2469 = vsel %vm2466, %v2468, %v2464
    %v2470 = vmul.f32 1.0, %v2469
    %v2471 = vmul.f32 %v2415, %v1705
    %v2472 = vmul.f32 %v2430, %v1706
    %v2473 = vmul.f32 %v2377, %v2431
    %v2474 = vmul.f32 %v2392, %v2432
    %v2475 = vadd.f32 %v2471, %v2473
    %v2476 = vadd.f32 %v2472, %v2474
    %v2477 = vtanh.pop %v2475
    %v2478 = vtanh.pop %v2476
    %v2479 = vmul.f32 %v2455, %v2477
    %v2480 = vmul.f32 %v2470, %v2478
    %2481 = vmatpush.msra.mxu0 %v937
    %2482 = vmatpush.msra.mxu0 %v933
    %2483 = vmatpush.msra.mxu0 %v929
    %2484 = vmatpush.msra.mxu0 %v925
    %2485 = vmatpush.msra.mxu0 %v921
    %2486 = vmatpush.msra.mxu0 %v917
    %2487 = vmatpush.msra.mxu0 %v913
    %2488 = vmatpush.msra.mxu0 %v909
    %2489 = vmatpush.msra.mxu0 %v905
    %2490 = vmatpush.msra.mxu0 %v901
    %2491 = vmatpush.msra.mxu0 %v897
    %2492 = vmatpush.msra.mxu0 %v893
    %2493 = vmatpush.msra.mxu0 %v889
    %2494 = vmatpush.msra.mxu0 %v885
    %2495 = vmatpush.msra.mxu0 %v881
    %2496 = vmatpush.msra.mxu0 %v877
    %2497 = vmatmul.f32.gmra.mxu0 %v2017
    %v2498 = vpop.f32.mrf.mxu0
    %v2499 = vadd.f32 0.0, %v2498
    %2500 = vdwg.mxu0
    %2501 = vmatpush.msra.mxu0 %v938
    %2502 = vmatpush.msra.mxu0 %v934
    %2503 = vmatpush.msra.mxu0 %v930
    %2504 = vmatpush.msra.mxu0 %v926
    %2505 = vmatpush.msra.mxu0 %v922
    %2506 = vmatpush.msra.mxu0 %v918
    %2507 = vmatpush.msra.mxu0 %v914
    %2508 = vmatpush.msra.mxu0 %v910
    %2509 = vmatpush.msra.mxu0 %v906
    %2510 = vmatpush.msra.mxu0 %v902
    %2511 = vmatpush.msra.mxu0 %v898
    %2512 = vmatpush.msra.mxu0 %v894
    %2513 = vmatpush.msra.mxu0 %v890
    %2514 = vmatpush.msra.mxu0 %v886
    %2515 = vmatpush.msra.mxu0 %v882
    %2516 = vmatpush.msra.mxu0 %v878
    %2517 = vmatmul.f32.gmra.mxu0 %v2017
    %v2518 = vpop.f32.mrf.mxu0
    %v2519 = vadd.f32 0.0, %v2518
    %2520 = vdwg.mxu0
    %2521 = vmatpush.msra.mxu0 %v939
    %2522 = vmatpush.msra.mxu0 %v935
    %2523 = vmatpush.msra.mxu0 %v931
    %2524 = vmatpush.msra.mxu0 %v927
    %2525 = vmatpush.msra.mxu0 %v923
    %2526 = vmatpush.msra.mxu0 %v919
    %2527 = vmatpush.msra.mxu0 %v915
    %2528 = vmatpush.msra.mxu0 %v911
    %2529 = vmatpush.msra.mxu0 %v907
    %2530 = vmatpush.msra.mxu0 %v903
    %2531 = vmatpush.msra.mxu0 %v899
    %2532 = vmatpush.msra.mxu0 %v895
    %2533 = vmatpush.msra.mxu0 %v891
    %2534 = vmatpush.msra.mxu0 %v887
    %2535 = vmatpush.msra.mxu0 %v883
    %2536 = vmatpush.msra.mxu0 %v879
    %2537 = vmatmul.f32.gmra.mxu0 %v2017
    %v2538 = vpop.f32.mrf.mxu0
    %v2539 = vadd.f32 0.0, %v2538
    %2540 = vdwg.mxu0
    %2541 = vmatpush.msra.mxu0 %v940
    %2542 = vmatpush.msra.mxu0 %v936
    %2543 = vmatpush.msra.mxu0 %v932
    %2544 = vmatpush.msra.mxu0 %v928
    %2545 = vmatpush.msra.mxu0 %v924
    %2546 = vmatpush.msra.mxu0 %v920
    %2547 = vmatpush.msra.mxu0 %v916
    %2548 = vmatpush.msra.mxu0 %v912
    %2549 = vmatpush.msra.mxu0 %v908
    %2550 = vmatpush.msra.mxu0 %v904
    %2551 = vmatpush.msra.mxu0 %v900
    %2552 = vmatpush.msra.mxu0 %v896
    %2553 = vmatpush.msra.mxu0 %v892
    %2554 = vmatpush.msra.mxu0 %v888
    %2555 = vmatpush.msra.mxu0 %v884
    %2556 = vmatpush.msra.mxu0 %v880
    %2557 = vmatmul.f32.gmra.mxu0 %v2017
    %v2558 = vpop.f32.mrf.mxu0
    %v2559 = vadd.f32 0.0, %v2558
    %2560 = vdwg.mxu0
    %2561 = vmatpush.msra.mxu0 %v809
    %2562 = vmatpush.msra.mxu0 %v805
    %2563 = vmatpush.msra.mxu0 %v801
    %2564 = vmatpush.msra.mxu0 %v797
    %2565 = vmatpush.msra.mxu0 %v793
    %2566 = vmatpush.msra.mxu0 %v789
    %2567 = vmatpush.msra.mxu0 %v785
    %2568 = vmatpush.msra.mxu0 %v781
    %2569 = vmatpush.msra.mxu0 %v777
    %2570 = vmatpush.msra.mxu0 %v773
    %2571 = vmatpush.msra.mxu0 %v769
    %2572 = vmatpush.msra.mxu0 %v765
    %2573 = vmatpush.msra.mxu0 %v761
    %2574 = vmatpush.msra.mxu0 %v757
    %2575 = vmatpush.msra.mxu0 %v753
    %2576 = vmatpush.msra.mxu0 %v749
    %2577 = vmatmul.f32.gmra.mxu0 %v2479
    %v2578 = vpop.f32.mrf.mxu0
    %v2579 = vadd.f32 %v2499, %v2578
    %2580 = vdwg.mxu0
    %2581 = vmatpush.msra.mxu0 %v873
    %2582 = vmatpush.msra.mxu0 %v869
    %2583 = vmatpush.msra.mxu0 %v865
    %2584 = vmatpush.msra.mxu0 %v861
    %2585 = vmatpush.msra.mxu0 %v857
    %2586 = vmatpush.msra.mxu0 %v853
    %2587 = vmatpush.msra.mxu0 %v849
    %2588 = vmatpush.msra.mxu0 %v845
    %2589 = vmatpush.msra.mxu0 %v841
    %2590 = vmatpush.msra.mxu0 %v837
    %2591 = vmatpush.msra.mxu0 %v833
    %2592 = vmatpush.msra.mxu0 %v829
    %2593 = vmatpush.msra.mxu0 %v825
    %2594 = vmatpush.msra.mxu0 %v821
    %2595 = vmatpush.msra.mxu0 %v817
    %2596 = vmatpush.msra.mxu0 %v813
    %2597 = vmatmul.f32.gmra.mxu0 %v2480
    %v2598 = vpop.f32.mrf.mxu0
    %v2599 = vadd.f32 %v2579, %v2598
    %2600 = vdwg.mxu0
    %2601 = vmatpush.msra.mxu0 %v810
    %2602 = vmatpush.msra.mxu0 %v806
    %2603 = vmatpush.msra.mxu0 %v802
    %2604 = vmatpush.msra.mxu0 %v798
    %2605 = vmatpush.msra.mxu0 %v794
    %2606 = vmatpush.msra.mxu0 %v790
    %2607 = vmatpush.msra.mxu0 %v786
    %2608 = vmatpush.msra.mxu0 %v782
    %2609 = vmatpush.msra.mxu0 %v778
    %2610 = vmatpush.msra.mxu0 %v774
    %2611 = vmatpush.msra.mxu0 %v770
    %2612 = vmatpush.msra.mxu0 %v766
    %2613 = vmatpush.msra.mxu0 %v762
    %2614 = vmatpush.msra.mxu0 %v758
    %2615 = vmatpush.msra.mxu0 %v754
    %2616 = vmatpush.msra.mxu0 %v750
    %2617 = vmatmul.f32.gmra.mxu0 %v2479
    %v2618 = vpop.f32.mrf.mxu0
    %v2619 = vadd.f32 %v2519, %v2618
    %2620 = vdwg.mxu0
    %2621 = vmatpush.msra.mxu0 %v874
    %2622 = vmatpush.msra.mxu0 %v870
    %2623 = vmatpush.msra.mxu0 %v866
    %2624 = vmatpush.msra.mxu0 %v862
    %2625 = vmatpush.msra.mxu0 %v858
    %2626 = vmatpush.msra.mxu0 %v854
    %2627 = vmatpush.msra.mxu0 %v850
    %2628 = vmatpush.msra.mxu0 %v846
    %2629 = vmatpush.msra.mxu0 %v842
    %2630 = vmatpush.msra.mxu0 %v838
    %2631 = vmatpush.msra.mxu0 %v834
    %2632 = vmatpush.msra.mxu0 %v830
    %2633 = vmatpush.msra.mxu0 %v826
    %2634 = vmatpush.msra.mxu0 %v822
    %2635 = vmatpush.msra.mxu0 %v818
    %2636 = vmatpush.msra.mxu0 %v814
    %2637 = vmatmul.f32.gmra.mxu0 %v2480
    %v2638 = vpop.f32.mrf.mxu0
    %v2639 = vadd.f32 %v2619, %v2638
    %2640 = vdwg.mxu0
    %2641 = vmatpush.msra.mxu0 %v811
    %2642 = vmatpush.msra.mxu0 %v807
    %2643 = vmatpush.msra.mxu0 %v803
    %2644 = vmatpush.msra.mxu0 %v799
    %2645 = vmatpush.msra.mxu0 %v795
    %2646 = vmatpush.msra.mxu0 %v791
    %2647 = vmatpush.msra.mxu0 %v787
    %2648 = vmatpush.msra.mxu0 %v783
    %2649 = vmatpush.msra.mxu0 %v779
    %2650 = vmatpush.msra.mxu0 %v775
    %2651 = vmatpush.msra.mxu0 %v771
    %2652 = vmatpush.msra.mxu0 %v767
    %2653 = vmatpush.msra.mxu0 %v763
    %2654 = vmatpush.msra.mxu0 %v759
    %2655 = vmatpush.msra.mxu0 %v755
    %2656 = vmatpush.msra.mxu0 %v751
    %2657 = vmatmul.f32.gmra.mxu0 %v2479
    %v2658 = vpop.f32.mrf.mxu0
    %v2659 = vadd.f32 %v2539, %v2658
    %2660 = vdwg.mxu0
    %2661 = vmatpush.msra.mxu0 %v875
    %2662 = vmatpush.msra.mxu0 %v871
    %2663 = vmatpush.msra.mxu0 %v867
    %2664 = vmatpush.msra.mxu0 %v863
    %2665 = vmatpush.msra.mxu0 %v859
    %2666 = vmatpush.msra.mxu0 %v855
    %2667 = vmatpush.msra.mxu0 %v851
    %2668 = vmatpush.msra.mxu0 %v847
    %2669 = vmatpush.msra.mxu0 %v843
    %2670 = vmatpush.msra.mxu0 %v839
    %2671 = vmatpush.msra.mxu0 %v835
    %2672 = vmatpush.msra.mxu0 %v831
    %2673 = vmatpush.msra.mxu0 %v827
    %2674 = vmatpush.msra.mxu0 %v823
    %2675 = vmatpush.msra.mxu0 %v819
    %2676 = vmatpush.msra.mxu0 %v815
    %2677 = vmatmul.f32.gmra.mxu0 %v2480
    %v2678 = vpop.f32.mrf.mxu0
    %v2679 = vadd.f32 %v2659, %v2678
    %2680 = vdwg.mxu0
    %2681 = vmatpush.msra.mxu0 %v812
    %2682 = vmatpush.msra.mxu0 %v808
    %2683 = vmatpush.msra.mxu0 %v804
    %2684 = vmatpush.msra.mxu0 %v800
    %2685 = vmatpush.msra.mxu0 %v796
    %2686 = vmatpush.msra.mxu0 %v792
    %2687 = vmatpush.msra.mxu0 %v788
    %2688 = vmatpush.msra.mxu0 %v784
    %2689 = vmatpush.msra.mxu0 %v780
    %2690 = vmatpush.msra.mxu0 %v776
    %2691 = vmatpush.msra.mxu0 %v772
    %2692 = vmatpush.msra.mxu0 %v768
    %2693 = vmatpush.msra.mxu0 %v764
    %2694 = vmatpush.msra.mxu0 %v760
    %2695 = vmatpush.msra.mxu0 %v756
    %2696 = vmatpush.msra.mxu0 %v752
    %2697 = vmatmul.f32.gmra.mxu0 %v2479
    %v2698 = vpop.f32.mrf.mxu0
    %v2699 = vadd.f32 %v2559, %v2698
    %2700 = vdwg.mxu0
    %2701 = vmatpush.msra.mxu0 %v876
    %2702 = vmatpush.msra.mxu0 %v872
    %2703 = vmatpush.msra.mxu0 %v868
    %2704 = vmatpush.msra.mxu0 %v864
    %2705 = vmatpush.msra.mxu0 %v860
    %2706 = vmatpush.msra.mxu0 %v856
    %2707 = vmatpush.msra.mxu0 %v852
    %2708 = vmatpush.msra.mxu0 %v848
    %2709 = vmatpush.msra.mxu0 %v844
    %2710 = vmatpush.msra.mxu0 %v840
    %2711 = vmatpush.msra.mxu0 %v836
    %2712 = vmatpush.msra.mxu0 %v832
    %2713 = vmatpush.msra.mxu0 %v828
    %2714 = vmatpush.msra.mxu0 %v824
    %2715 = vmatpush.msra.mxu0 %v820
    %2716 = vmatpush.msra.mxu0 %v816
    %2717 = vmatmul.f32.gmra.mxu0 %v2480
    %v2718 = vpop.f32.mrf.mxu0
    %v2719 = vadd.f32 %v2699, %v2718
    %2720 = vdwg.mxu0
    %v2721 = vadd.f32 %v2599, %v23
    %v2722 = vadd.f32 %v2639, %v24
    %v2723 = vadd.f32 %v2679, %v25
    %v2724 = vadd.f32 %v2719, %v26
    %v2725 = vxor.u32 %v2721, 2147483648
    %v2726 = vmul.f32 %v2725, 1.442695
    %v2727 = vpow.pop %v2726
    %v2728 = vadd.f32 %v2727, 1.0
    %v2729 = vrcp.pop %v2728
    %v2730 = vmul.f32 %v2728, %v2729
    %v2731 = vsub.f32 1.0, %v2730
    %v2732 = vmul.f32 %v2729, %v2731
    %v2733 = vadd.f32 %v2729, %v2732
    %vm2734 = vweird.f32 %v2728
    %vm2735 = vweird.f32 %v2729
    %vm2736 = vmor %vm2734, %vm2735
    %v2737 = vsel %vm2736, %v2729, %v2733
    %v2738 = vand.u32 2147483647, %v2728
    %vm2739 = vcmp.eq.f32.partialorder %v2738, 8.507059e+37
    %v2740 = vand.u32 %v2728, 2147483648
    %v2741 = vor.u32 1.1754944e-38, %v2740
    %v2742 = vsel %vm2739, %v2741, %v2737
    %v2743 = vmul.f32 1.0, %v2742
    %v2744 = vxor.u32 %v2722, 2147483648
    %v2745 = vmul.f32 %v2744, 1.442695
    %v2746 = vpow.pop %v2745
    %v2747 = vadd.f32 %v2746, 1.0
    %v2748 = vrcp.pop %v2747
    %v2749 = vmul.f32 %v2747, %v2748
    %v2750 = vsub.f32 1.0, %v2749
    %v2751 = vmul.f32 %v2748, %v2750
    %v2752 = vadd.f32 %v2748, %v2751
    %vm2753 = vweird.f32 %v2747
    %vm2754 = vweird.f32 %v2748
    %vm2755 = vmor %vm2753, %vm2754
    %v2756 = vsel %vm2755, %v2748, %v2752
    %v2757 = vand.u32 2147483647, %v2747
    %vm2758 = vcmp.eq.f32.partialorder %v2757, 8.507059e+37
    %v2759 = vand.u32 %v2747, 2147483648
    %v2760 = vor.u32 1.1754944e-38, %v2759
    %v2761 = vsel %vm2758, %v2760, %v2756
    %v2762 = vmul.f32 1.0, %v2761
    %v2763 = vtanh.pop %v2723
    %v2764 = vxor.u32 %v2724, 2147483648
    %v2765 = vmul.f32 %v2764, 1.442695
    %v2766 = vpow.pop %v2765
    %v2767 = vadd.f32 %v2766, 1.0
    %v2768 = vrcp.pop %v2767
    %v2769 = vmul.f32 %v2767, %v2768
    %v2770 = vsub.f32 1.0, %v2769
    %v2771 = vmul.f32 %v2768, %v2770
    %v2772 = vadd.f32 %v2768, %v2771
    %vm2773 = vweird.f32 %v2767
    %vm2774 = vweird.f32 %v2768
    %vm2775 = vmor %vm2773, %vm2774
    %v2776 = vsel %vm2775, %v2768, %v2772
    %v2777 = vand.u32 2147483647, %v2767
    %vm2778 = vcmp.eq.f32.partialorder %v2777, 8.507059e+37
    %v2779 = vand.u32 %v2767, 2147483648
    %v2780 = vor.u32 1.1754944e-38, %v2779
    %v2781 = vsel %vm2778, %v2780, %v2776
    %v2782 = vmul.f32 1.0, %v2781
    %v2783 = vmul.f32 %v2762, %v2015
    %v2784 = vmul.f32 %v2743, %v2763
    %v2785 = vadd.f32 %v2783, %v2784
    %v2786 = vtanh.pop %v2785
    %v2787 = vmul.f32 %v2782, %v2786
    %s2788 = scalar_lea.vmem %s0, 192
    %v2789 = vld [vmem:[%s2788] sm:$0xff]
    %v2790 = vld [vmem:[%s2788 + $0x8] sm:$0xff]
    %v2791 = vld [vmem:[%s2788 + $0x10] sm:$0xff]
    %v2792 = vld [vmem:[%s2788 + $0x18] sm:$0xff]
    %v2793 = vld [vmem:[%s2788 + $0x20] sm:$0xff]
    %v2794 = vld [vmem:[%s2788 + $0x28] sm:$0xff]
    %v2795 = vld [vmem:[%s2788 + $0x30] sm:$0xff]
    %v2796 = vld [vmem:[%s2788 + $0x38] sm:$0xff]
    %2797 = vmatpush.msra.mxu0 %v159
    %2798 = vmatpush.msra.mxu0 %v151
    %2799 = vmatpush.msra.mxu0 %v143
    %2800 = vmatpush.msra.mxu0 %v135
    %2801 = vmatpush.msra.mxu0 %v127
    %2802 = vmatpush.msra.mxu0 %v119
    %2803 = vmatpush.msra.mxu0 %v111
    %2804 = vmatpush.msra.mxu0 %v103
    %2805 = vmatpush.msra.mxu0 %v95
    %2806 = vmatpush.msra.mxu0 %v87
    %2807 = vmatpush.msra.mxu0 %v79
    %2808 = vmatpush.msra.mxu0 %v71
    %2809 = vmatpush.msra.mxu0 %v63
    %2810 = vmatpush.msra.mxu0 %v55
    %2811 = vmatpush.msra.mxu0 %v47
    %2812 = vmatpush.msra.mxu0 %v39
    %2813 = vmatmul.f32.gmra.mxu0 %v2479
    %v2814 = vpop.f32.mrf.mxu0
    %v2815 = vadd.f32 0.0, %v2814
    %2816 = vdwg.mxu0
    %2817 = vmatpush.msra.mxu0 %v287
    %2818 = vmatpush.msra.mxu0 %v279
    %2819 = vmatpush.msra.mxu0 %v271
    %2820 = vmatpush.msra.mxu0 %v263
    %2821 = vmatpush.msra.mxu0 %v255
    %2822 = vmatpush.msra.mxu0 %v247
    %2823 = vmatpush.msra.mxu0 %v239
    %2824 = vmatpush.msra.mxu0 %v231
    %2825 = vmatpush.msra.mxu0 %v223
    %2826 = vmatpush.msra.mxu0 %v215
    %2827 = vmatpush.msra.mxu0 %v207
    %2828 = vmatpush.msra.mxu0 %v199
    %2829 = vmatpush.msra.mxu0 %v191
    %2830 = vmatpush.msra.mxu0 %v183
    %2831 = vmatpush.msra.mxu0 %v175
    %2832 = vmatpush.msra.mxu0 %v167
    %2833 = vmatmul.f32.gmra.mxu0 %v2480
    %v2834 = vpop.f32.mrf.mxu0
    %v2835 = vadd.f32 %v2815, %v2834
    %2836 = vdwg.mxu0
    %2837 = vmatpush.msra.mxu0 %v160
    %2838 = vmatpush.msra.mxu0 %v152
    %2839 = vmatpush.msra.mxu0 %v144
    %2840 = vmatpush.msra.mxu0 %v136
    %2841 = vmatpush.msra.mxu0 %v128
    %2842 = vmatpush.msra.mxu0 %v120
    %2843 = vmatpush.msra.mxu0 %v112
    %2844 = vmatpush.msra.mxu0 %v104
    %2845 = vmatpush.msra.mxu0 %v96
    %2846 = vmatpush.msra.mxu0 %v88
    %2847 = vmatpush.msra.mxu0 %v80
    %2848 = vmatpush.msra.mxu0 %v72
    %2849 = vmatpush.msra.mxu0 %v64
    %2850 = vmatpush.msra.mxu0 %v56
    %2851 = vmatpush.msra.mxu0 %v48
    %2852 = vmatpush.msra.mxu0 %v40
    %2853 = vmatmul.f32.gmra.mxu0 %v2479
    %v2854 = vpop.f32.mrf.mxu0
    %v2855 = vadd.f32 0.0, %v2854
    %2856 = vdwg.mxu0
    %2857 = vmatpush.msra.mxu0 %v288
    %2858 = vmatpush.msra.mxu0 %v280
    %2859 = vmatpush.msra.mxu0 %v272
    %2860 = vmatpush.msra.mxu0 %v264
    %2861 = vmatpush.msra.mxu0 %v256
    %2862 = vmatpush.msra.mxu0 %v248
    %2863 = vmatpush.msra.mxu0 %v240
    %2864 = vmatpush.msra.mxu0 %v232
    %2865 = vmatpush.msra.mxu0 %v224
    %2866 = vmatpush.msra.mxu0 %v216
    %2867 = vmatpush.msra.mxu0 %v208
    %2868 = vmatpush.msra.mxu0 %v200
    %2869 = vmatpush.msra.mxu0 %v192
    %2870 = vmatpush.msra.mxu0 %v184
    %2871 = vmatpush.msra.mxu0 %v176
    %2872 = vmatpush.msra.mxu0 %v168
    %2873 = vmatmul.f32.gmra.mxu0 %v2480
    %v2874 = vpop.f32.mrf.mxu0
    %v2875 = vadd.f32 %v2855, %v2874
    %2876 = vdwg.mxu0
    %2877 = vmatpush.msra.mxu0 %v161
    %2878 = vmatpush.msra.mxu0 %v153
    %2879 = vmatpush.msra.mxu0 %v145
    %2880 = vmatpush.msra.mxu0 %v137
    %2881 = vmatpush.msra.mxu0 %v129
    %2882 = vmatpush.msra.mxu0 %v121
    %2883 = vmatpush.msra.mxu0 %v113
    %2884 = vmatpush.msra.mxu0 %v105
    %2885 = vmatpush.msra.mxu0 %v97
    %2886 = vmatpush.msra.mxu0 %v89
    %2887 = vmatpush.msra.mxu0 %v81
    %2888 = vmatpush.msra.mxu0 %v73
    %2889 = vmatpush.msra.mxu0 %v65
    %2890 = vmatpush.msra.mxu0 %v57
    %2891 = vmatpush.msra.mxu0 %v49
    %2892 = vmatpush.msra.mxu0 %v41
    %2893 = vmatmul.f32.gmra.mxu0 %v2479
    %v2894 = vpop.f32.mrf.mxu0
    %v2895 = vadd.f32 0.0, %v2894
    %2896 = vdwg.mxu0
    %2897 = vmatpush.msra.mxu0 %v289
    %2898 = vmatpush.msra.mxu0 %v281
    %2899 = vmatpush.msra.mxu0 %v273
    %2900 = vmatpush.msra.mxu0 %v265
    %2901 = vmatpush.msra.mxu0 %v257
    %2902 = vmatpush.msra.mxu0 %v249
    %2903 = vmatpush.msra.mxu0 %v241
    %2904 = vmatpush.msra.mxu0 %v233
    %2905 = vmatpush.msra.mxu0 %v225
    %2906 = vmatpush.msra.mxu0 %v217
    %2907 = vmatpush.msra.mxu0 %v209
    %2908 = vmatpush.msra.mxu0 %v201
    %2909 = vmatpush.msra.mxu0 %v193
    %2910 = vmatpush.msra.mxu0 %v185
    %2911 = vmatpush.msra.mxu0 %v177
    %2912 = vmatpush.msra.mxu0 %v169
    %2913 = vmatmul.f32.gmra.mxu0 %v2480
    %v2914 = vpop.f32.mrf.mxu0
    %v2915 = vadd.f32 %v2895, %v2914
    %2916 = vdwg.mxu0
    %2917 = vmatpush.msra.mxu0 %v162
    %2918 = vmatpush.msra.mxu0 %v154
    %2919 = vmatpush.msra.mxu0 %v146
    %2920 = vmatpush.msra.mxu0 %v138
    %2921 = vmatpush.msra.mxu0 %v130
    %2922 = vmatpush.msra.mxu0 %v122
    %2923 = vmatpush.msra.mxu0 %v114
    %2924 = vmatpush.msra.mxu0 %v106
    %2925 = vmatpush.msra.mxu0 %v98
    %2926 = vmatpush.msra.mxu0 %v90
    %2927 = vmatpush.msra.mxu0 %v82
    %2928 = vmatpush.msra.mxu0 %v74
    %2929 = vmatpush.msra.mxu0 %v66
    %2930 = vmatpush.msra.mxu0 %v58
    %2931 = vmatpush.msra.mxu0 %v50
    %2932 = vmatpush.msra.mxu0 %v42
    %2933 = vmatmul.f32.gmra.mxu0 %v2479
    %v2934 = vpop.f32.mrf.mxu0
    %v2935 = vadd.f32 0.0, %v2934
    %2936 = vdwg.mxu0
    %2937 = vmatpush.msra.mxu0 %v290
    %2938 = vmatpush.msra.mxu0 %v282
    %2939 = vmatpush.msra.mxu0 %v274
    %2940 = vmatpush.msra.mxu0 %v266
    %2941 = vmatpush.msra.mxu0 %v258
    %2942 = vmatpush.msra.mxu0 %v250
    %2943 = vmatpush.msra.mxu0 %v242
    %2944 = vmatpush.msra.mxu0 %v234
    %2945 = vmatpush.msra.mxu0 %v226
    %2946 = vmatpush.msra.mxu0 %v218
    %2947 = vmatpush.msra.mxu0 %v210
    %2948 = vmatpush.msra.mxu0 %v202
    %2949 = vmatpush.msra.mxu0 %v194
    %2950 = vmatpush.msra.mxu0 %v186
    %2951 = vmatpush.msra.mxu0 %v178
    %2952 = vmatpush.msra.mxu0 %v170
    %2953 = vmatmul.f32.gmra.mxu0 %v2480
    %v2954 = vpop.f32.mrf.mxu0
    %v2955 = vadd.f32 %v2935, %v2954
    %2956 = vdwg.mxu0
    %2957 = vmatpush.msra.mxu0 %v163
    %2958 = vmatpush.msra.mxu0 %v155
    %2959 = vmatpush.msra.mxu0 %v147
    %2960 = vmatpush.msra.mxu0 %v139
    %2961 = vmatpush.msra.mxu0 %v131
    %2962 = vmatpush.msra.mxu0 %v123
    %2963 = vmatpush.msra.mxu0 %v115
    %2964 = vmatpush.msra.mxu0 %v107
    %2965 = vmatpush.msra.mxu0 %v99
    %2966 = vmatpush.msra.mxu0 %v91
    %2967 = vmatpush.msra.mxu0 %v83
    %2968 = vmatpush.msra.mxu0 %v75
    %2969 = vmatpush.msra.mxu0 %v67
    %2970 = vmatpush.msra.mxu0 %v59
    %2971 = vmatpush.msra.mxu0 %v51
    %2972 = vmatpush.msra.mxu0 %v43
    %2973 = vmatmul.f32.gmra.mxu0 %v2479
    %v2974 = vpop.f32.mrf.mxu0
    %v2975 = vadd.f32 0.0, %v2974
    %2976 = vdwg.mxu0
    %2977 = vmatpush.msra.mxu0 %v291
    %2978 = vmatpush.msra.mxu0 %v283
    %2979 = vmatpush.msra.mxu0 %v275
    %2980 = vmatpush.msra.mxu0 %v267
    %2981 = vmatpush.msra.mxu0 %v259
    %2982 = vmatpush.msra.mxu0 %v251
    %2983 = vmatpush.msra.mxu0 %v243
    %2984 = vmatpush.msra.mxu0 %v235
    %2985 = vmatpush.msra.mxu0 %v227
    %2986 = vmatpush.msra.mxu0 %v219
    %2987 = vmatpush.msra.mxu0 %v211
    %2988 = vmatpush.msra.mxu0 %v203
    %2989 = vmatpush.msra.mxu0 %v195
    %2990 = vmatpush.msra.mxu0 %v187
    %2991 = vmatpush.msra.mxu0 %v179
    %2992 = vmatpush.msra.mxu0 %v171
    %2993 = vmatmul.f32.gmra.mxu0 %v2480
    %v2994 = vpop.f32.mrf.mxu0
    %v2995 = vadd.f32 %v2975, %v2994
    %2996 = vdwg.mxu0
    %2997 = vmatpush.msra.mxu0 %v164
    %2998 = vmatpush.msra.mxu0 %v156
    %2999 = vmatpush.msra.mxu0 %v148
    %3000 = vmatpush.msra.mxu0 %v140
    %3001 = vmatpush.msra.mxu0 %v132
    %3002 = vmatpush.msra.mxu0 %v124
    %3003 = vmatpush.msra.mxu0 %v116
    %3004 = vmatpush.msra.mxu0 %v108
    %3005 = vmatpush.msra.mxu0 %v100
    %3006 = vmatpush.msra.mxu0 %v92
    %3007 = vmatpush.msra.mxu0 %v84
    %3008 = vmatpush.msra.mxu0 %v76
    %3009 = vmatpush.msra.mxu0 %v68
    %3010 = vmatpush.msra.mxu0 %v60
    %3011 = vmatpush.msra.mxu0 %v52
    %3012 = vmatpush.msra.mxu0 %v44
    %3013 = vmatmul.f32.gmra.mxu0 %v2479
    %v3014 = vpop.f32.mrf.mxu0
    %v3015 = vadd.f32 0.0, %v3014
    %3016 = vdwg.mxu0
    %3017 = vmatpush.msra.mxu0 %v292
    %3018 = vmatpush.msra.mxu0 %v284
    %3019 = vmatpush.msra.mxu0 %v276
    %3020 = vmatpush.msra.mxu0 %v268
    %3021 = vmatpush.msra.mxu0 %v260
    %3022 = vmatpush.msra.mxu0 %v252
    %3023 = vmatpush.msra.mxu0 %v244
    %3024 = vmatpush.msra.mxu0 %v236
    %3025 = vmatpush.msra.mxu0 %v228
    %3026 = vmatpush.msra.mxu0 %v220
    %3027 = vmatpush.msra.mxu0 %v212
    %3028 = vmatpush.msra.mxu0 %v204
    %3029 = vmatpush.msra.mxu0 %v196
    %3030 = vmatpush.msra.mxu0 %v188
    %3031 = vmatpush.msra.mxu0 %v180
    %3032 = vmatpush.msra.mxu0 %v172
    %3033 = vmatmul.f32.gmra.mxu0 %v2480
    %v3034 = vpop.f32.mrf.mxu0
    %v3035 = vadd.f32 %v3015, %v3034
    %3036 = vdwg.mxu0
    %3037 = vmatpush.msra.mxu0 %v165
    %3038 = vmatpush.msra.mxu0 %v157
    %3039 = vmatpush.msra.mxu0 %v149
    %3040 = vmatpush.msra.mxu0 %v141
    %3041 = vmatpush.msra.mxu0 %v133
    %3042 = vmatpush.msra.mxu0 %v125
    %3043 = vmatpush.msra.mxu0 %v117
    %3044 = vmatpush.msra.mxu0 %v109
    %3045 = vmatpush.msra.mxu0 %v101
    %3046 = vmatpush.msra.mxu0 %v93
    %3047 = vmatpush.msra.mxu0 %v85
    %3048 = vmatpush.msra.mxu0 %v77
    %3049 = vmatpush.msra.mxu0 %v69
    %3050 = vmatpush.msra.mxu0 %v61
    %3051 = vmatpush.msra.mxu0 %v53
    %3052 = vmatpush.msra.mxu0 %v45
    %3053 = vmatmul.f32.gmra.mxu0 %v2479
    %v3054 = vpop.f32.mrf.mxu0
    %v3055 = vadd.f32 0.0, %v3054
    %3056 = vdwg.mxu0
    %3057 = vmatpush.msra.mxu0 %v293
    %3058 = vmatpush.msra.mxu0 %v285
    %3059 = vmatpush.msra.mxu0 %v277
    %3060 = vmatpush.msra.mxu0 %v269
    %3061 = vmatpush.msra.mxu0 %v261
    %3062 = vmatpush.msra.mxu0 %v253
    %3063 = vmatpush.msra.mxu0 %v245
    %3064 = vmatpush.msra.mxu0 %v237
    %3065 = vmatpush.msra.mxu0 %v229
    %3066 = vmatpush.msra.mxu0 %v221
    %3067 = vmatpush.msra.mxu0 %v213
    %3068 = vmatpush.msra.mxu0 %v205
    %3069 = vmatpush.msra.mxu0 %v197
    %3070 = vmatpush.msra.mxu0 %v189
    %3071 = vmatpush.msra.mxu0 %v181
    %3072 = vmatpush.msra.mxu0 %v173
    %3073 = vmatmul.f32.gmra.mxu0 %v2480
    %v3074 = vpop.f32.mrf.mxu0
    %v3075 = vadd.f32 %v3055, %v3074
    %3076 = vdwg.mxu0
    %3077 = vmatpush.msra.mxu0 %v166
    %3078 = vmatpush.msra.mxu0 %v158
    %3079 = vmatpush.msra.mxu0 %v150
    %3080 = vmatpush.msra.mxu0 %v142
    %3081 = vmatpush.msra.mxu0 %v134
    %3082 = vmatpush.msra.mxu0 %v126
    %3083 = vmatpush.msra.mxu0 %v118
    %3084 = vmatpush.msra.mxu0 %v110
    %3085 = vmatpush.msra.mxu0 %v102
    %3086 = vmatpush.msra.mxu0 %v94
    %3087 = vmatpush.msra.mxu0 %v86
    %3088 = vmatpush.msra.mxu0 %v78
    %3089 = vmatpush.msra.mxu0 %v70
    %3090 = vmatpush.msra.mxu0 %v62
    %3091 = vmatpush.msra.mxu0 %v54
    %3092 = vmatpush.msra.mxu0 %v46
    %3093 = vmatmul.f32.gmra.mxu0 %v2479
    %v3094 = vpop.f32.mrf.mxu0
    %v3095 = vadd.f32 0.0, %v3094
    %3096 = vdwg.mxu0
    %3097 = vmatpush.msra.mxu0 %v294
    %3098 = vmatpush.msra.mxu0 %v286
    %3099 = vmatpush.msra.mxu0 %v278
    %3100 = vmatpush.msra.mxu0 %v270
    %3101 = vmatpush.msra.mxu0 %v262
    %3102 = vmatpush.msra.mxu0 %v254
    %3103 = vmatpush.msra.mxu0 %v246
    %3104 = vmatpush.msra.mxu0 %v238
    %3105 = vmatpush.msra.mxu0 %v230
    %3106 = vmatpush.msra.mxu0 %v222
    %3107 = vmatpush.msra.mxu0 %v214
    %3108 = vmatpush.msra.mxu0 %v206
    %3109 = vmatpush.msra.mxu0 %v198
    %3110 = vmatpush.msra.mxu0 %v190
    %3111 = vmatpush.msra.mxu0 %v182
    %3112 = vmatpush.msra.mxu0 %v174
    %3113 = vmatmul.f32.gmra.mxu0 %v2480
    %v3114 = vpop.f32.mrf.mxu0
    %v3115 = vadd.f32 %v3095, %v3114
    %3116 = vdwg.mxu0
    %v3117 = vadd.f32 %v2789, %v2835
    %v3118 = vadd.f32 %v2790, %v2875
    %v3119 = vadd.f32 %v2791, %v2915
    %v3120 = vadd.f32 %v2792, %v2955
    %v3121 = vadd.f32 %v2793, %v2995
    %v3122 = vadd.f32 %v2794, %v3035
    %v3123 = vadd.f32 %v2795, %v3075
    %v3124 = vadd.f32 %v2796, %v3115
    %v3125 = vxor.u32 %v3117, 2147483648
    %v3126 = vxor.u32 %v3118, 2147483648
    %v3127 = vmul.f32 %v3125, 1.442695
    %v3128 = vpow.pop %v3127
    %v3129 = vmul.f32 %v3126, 1.442695
    %v3130 = vpow.pop %v3129
    %v3131 = vadd.f32 %v3128, 1.0
    %v3132 = vadd.f32 %v3130, 1.0
    %v3133 = vrcp.pop %v3131
    %v3134 = vmul.f32 %v3131, %v3133
    %v3135 = vsub.f32 1.0, %v3134
    %v3136 = vmul.f32 %v3133, %v3135
    %v3137 = vadd.f32 %v3133, %v3136
    %vm3138 = vweird.f32 %v3131
    %vm3139 = vweird.f32 %v3133
    %vm3140 = vmor %vm3138, %vm3139
    %v3141 = vsel %vm3140, %v3133, %v3137
    %v3142 = vand.u32 2147483647, %v3131
    %vm3143 = vcmp.eq.f32.partialorder %v3142, 8.507059e+37
    %v3144 = vand.u32 %v3131, 2147483648
    %v3145 = vor.u32 1.1754944e-38, %v3144
    %v3146 = vsel %vm3143, %v3145, %v3141
    %v3147 = vmul.f32 1.0, %v3146
    %v3148 = vrcp.pop %v3132
    %v3149 = vmul.f32 %v3132, %v3148
    %v3150 = vsub.f32 1.0, %v3149
    %v3151 = vmul.f32 %v3148, %v3150
    %v3152 = vadd.f32 %v3148, %v3151
    %vm3153 = vweird.f32 %v3132
    %vm3154 = vweird.f32 %v3148
    %vm3155 = vmor %vm3153, %vm3154
    %v3156 = vsel %vm3155, %v3148, %v3152
    %v3157 = vand.u32 2147483647, %v3132
    %vm3158 = vcmp.eq.f32.partialorder %v3157, 8.507059e+37
    %v3159 = vand.u32 %v3132, 2147483648
    %v3160 = vor.u32 1.1754944e-38, %v3159
    %v3161 = vsel %vm3158, %v3160, %v3156
    %v3162 = vmul.f32 1.0, %v3161
    %v3163 = vxor.u32 %v3119, 2147483648
    %v3164 = vxor.u32 %v3120, 2147483648
    %v3165 = vmul.f32 %v3163, 1.442695
    %v3166 = vpow.pop %v3165
    %v3167 = vmul.f32 %v3164, 1.442695
    %v3168 = vpow.pop %v3167
    %v3169 = vadd.f32 %v3166, 1.0
    %v3170 = vadd.f32 %v3168, 1.0
    %v3171 = vrcp.pop %v3169
    %v3172 = vmul.f32 %v3169, %v3171
    %v3173 = vsub.f32 1.0, %v3172
    %v3174 = vmul.f32 %v3171, %v3173
    %v3175 = vadd.f32 %v3171, %v3174
    %vm3176 = vweird.f32 %v3169
    %vm3177 = vweird.f32 %v3171
    %vm3178 = vmor %vm3176, %vm3177
    %v3179 = vsel %vm3178, %v3171, %v3175
    %v3180 = vand.u32 2147483647, %v3169
    %vm3181 = vcmp.eq.f32.partialorder %v3180, 8.507059e+37
    %v3182 = vand.u32 %v3169, 2147483648
    %v3183 = vor.u32 1.1754944e-38, %v3182
    %v3184 = vsel %vm3181, %v3183, %v3179
    %v3185 = vmul.f32 1.0, %v3184
    %v3186 = vrcp.pop %v3170
    %v3187 = vmul.f32 %v3170, %v3186
    %v3188 = vsub.f32 1.0, %v3187
    %v3189 = vmul.f32 %v3186, %v3188
    %v3190 = vadd.f32 %v3186, %v3189
    %vm3191 = vweird.f32 %v3170
    %vm3192 = vweird.f32 %v3186
    %vm3193 = vmor %vm3191, %vm3192
    %v3194 = vsel %vm3193, %v3186, %v3190
    %v3195 = vand.u32 2147483647, %v3170
    %vm3196 = vcmp.eq.f32.partialorder %v3195, 8.507059e+37
    %v3197 = vand.u32 %v3170, 2147483648
    %v3198 = vor.u32 1.1754944e-38, %v3197
    %v3199 = vsel %vm3196, %v3198, %v3194
    %v3200 = vmul.f32 1.0, %v3199
    %v3201 = vtanh.pop %v3121
    %v3202 = vtanh.pop %v3122
    %v3203 = vxor.u32 %v3123, 2147483648
    %v3204 = vxor.u32 %v3124, 2147483648
    %v3205 = vmul.f32 %v3203, 1.442695
    %v3206 = vpow.pop %v3205
    %v3207 = vmul.f32 %v3204, 1.442695
    %v3208 = vpow.pop %v3207
    %v3209 = vadd.f32 %v3206, 1.0
    %v3210 = vadd.f32 %v3208, 1.0
    %v3211 = vrcp.pop %v3209
    %v3212 = vmul.f32 %v3209, %v3211
    %v3213 = vsub.f32 1.0, %v3212
    %v3214 = vmul.f32 %v3211, %v3213
    %v3215 = vadd.f32 %v3211, %v3214
    %vm3216 = vweird.f32 %v3209
    %vm3217 = vweird.f32 %v3211
    %vm3218 = vmor %vm3216, %vm3217
    %v3219 = vsel %vm3218, %v3211, %v3215
    %v3220 = vand.u32 2147483647, %v3209
    %vm3221 = vcmp.eq.f32.partialorder %v3220, 8.507059e+37
    %v3222 = vand.u32 %v3209, 2147483648
    %v3223 = vor.u32 1.1754944e-38, %v3222
    %v3224 = vsel %vm3221, %v3223, %v3219
    %v3225 = vmul.f32 1.0, %v3224
    %v3226 = vrcp.pop %v3210
    %v3227 = vmul.f32 %v3210, %v3226
    %v3228 = vsub.f32 1.0, %v3227
    %v3229 = vmul.f32 %v3226, %v3228
    %v3230 = vadd.f32 %v3226, %v3229
    %vm3231 = vweird.f32 %v3210
    %vm3232 = vweird.f32 %v3226
    %vm3233 = vmor %vm3231, %vm3232
    %v3234 = vsel %vm3233, %v3226, %v3230
    %v3235 = vand.u32 2147483647, %v3210
    %vm3236 = vcmp.eq.f32.partialorder %v3235, 8.507059e+37
    %v3237 = vand.u32 %v3210, 2147483648
    %v3238 = vor.u32 1.1754944e-38, %v3237
    %v3239 = vsel %vm3236, %v3238, %v3234
    %v3240 = vmul.f32 1.0, %v3239
    %v3241 = vmul.f32 %v3185, %v2475
    %v3242 = vmul.f32 %v3200, %v2476
    %v3243 = vmul.f32 %v3147, %v3201
    %v3244 = vmul.f32 %v3162, %v3202
    %v3245 = vadd.f32 %v3241, %v3243
    %v3246 = vadd.f32 %v3242, %v3244
    %v3247 = vtanh.pop %v3245
    %v3248 = vtanh.pop %v3246
    %v3249 = vmul.f32 %v3225, %v3247
    %v3250 = vmul.f32 %v3240, %v3248
    %3251 = vmatpush.msra.mxu0 %v937
    %3252 = vmatpush.msra.mxu0 %v933
    %3253 = vmatpush.msra.mxu0 %v929
    %3254 = vmatpush.msra.mxu0 %v925
    %3255 = vmatpush.msra.mxu0 %v921
    %3256 = vmatpush.msra.mxu0 %v917
    %3257 = vmatpush.msra.mxu0 %v913
    %3258 = vmatpush.msra.mxu0 %v909
    %3259 = vmatpush.msra.mxu0 %v905
    %3260 = vmatpush.msra.mxu0 %v901
    %3261 = vmatpush.msra.mxu0 %v897
    %3262 = vmatpush.msra.mxu0 %v893
    %3263 = vmatpush.msra.mxu0 %v889
    %3264 = vmatpush.msra.mxu0 %v885
    %3265 = vmatpush.msra.mxu0 %v881
    %3266 = vmatpush.msra.mxu0 %v877
    %3267 = vmatmul.f32.gmra.mxu0 %v2787
    %v3268 = vpop.f32.mrf.mxu0
    %v3269 = vadd.f32 0.0, %v3268
    %3270 = vdwg.mxu0
    %3271 = vmatpush.msra.mxu0 %v938
    %3272 = vmatpush.msra.mxu0 %v934
    %3273 = vmatpush.msra.mxu0 %v930
    %3274 = vmatpush.msra.mxu0 %v926
    %3275 = vmatpush.msra.mxu0 %v922
    %3276 = vmatpush.msra.mxu0 %v918
    %3277 = vmatpush.msra.mxu0 %v914
    %3278 = vmatpush.msra.mxu0 %v910
    %3279 = vmatpush.msra.mxu0 %v906
    %3280 = vmatpush.msra.mxu0 %v902
    %3281 = vmatpush.msra.mxu0 %v898
    %3282 = vmatpush.msra.mxu0 %v894
    %3283 = vmatpush.msra.mxu0 %v890
    %3284 = vmatpush.msra.mxu0 %v886
    %3285 = vmatpush.msra.mxu0 %v882
    %3286 = vmatpush.msra.mxu0 %v878
    %3287 = vmatmul.f32.gmra.mxu0 %v2787
    %v3288 = vpop.f32.mrf.mxu0
    %v3289 = vadd.f32 0.0, %v3288
    %3290 = vdwg.mxu0
    %3291 = vmatpush.msra.mxu0 %v939
    %3292 = vmatpush.msra.mxu0 %v935
    %3293 = vmatpush.msra.mxu0 %v931
    %3294 = vmatpush.msra.mxu0 %v927
    %3295 = vmatpush.msra.mxu0 %v923
    %3296 = vmatpush.msra.mxu0 %v919
    %3297 = vmatpush.msra.mxu0 %v915
    %3298 = vmatpush.msra.mxu0 %v911
    %3299 = vmatpush.msra.mxu0 %v907
    %3300 = vmatpush.msra.mxu0 %v903
    %3301 = vmatpush.msra.mxu0 %v899
    %3302 = vmatpush.msra.mxu0 %v895
    %3303 = vmatpush.msra.mxu0 %v891
    %3304 = vmatpush.msra.mxu0 %v887
    %3305 = vmatpush.msra.mxu0 %v883
    %3306 = vmatpush.msra.mxu0 %v879
    %3307 = vmatmul.f32.gmra.mxu0 %v2787
    %v3308 = vpop.f32.mrf.mxu0
    %v3309 = vadd.f32 0.0, %v3308
    %3310 = vdwg.mxu0
    %3311 = vmatpush.msra.mxu0 %v940
    %3312 = vmatpush.msra.mxu0 %v936
    %3313 = vmatpush.msra.mxu0 %v932
    %3314 = vmatpush.msra.mxu0 %v928
    %3315 = vmatpush.msra.mxu0 %v924
    %3316 = vmatpush.msra.mxu0 %v920
    %3317 = vmatpush.msra.mxu0 %v916
    %3318 = vmatpush.msra.mxu0 %v912
    %3319 = vmatpush.msra.mxu0 %v908
    %3320 = vmatpush.msra.mxu0 %v904
    %3321 = vmatpush.msra.mxu0 %v900
    %3322 = vmatpush.msra.mxu0 %v896
    %3323 = vmatpush.msra.mxu0 %v892
    %3324 = vmatpush.msra.mxu0 %v888
    %3325 = vmatpush.msra.mxu0 %v884
    %3326 = vmatpush.msra.mxu0 %v880
    %3327 = vmatmul.f32.gmra.mxu0 %v2787
    %v3328 = vpop.f32.mrf.mxu0
    %v3329 = vadd.f32 0.0, %v3328
    %3330 = vdwg.mxu0
    %3331 = vmatpush.msra.mxu0 %v809
    %3332 = vmatpush.msra.mxu0 %v805
    %3333 = vmatpush.msra.mxu0 %v801
    %3334 = vmatpush.msra.mxu0 %v797
    %3335 = vmatpush.msra.mxu0 %v793
    %3336 = vmatpush.msra.mxu0 %v789
    %3337 = vmatpush.msra.mxu0 %v785
    %3338 = vmatpush.msra.mxu0 %v781
    %3339 = vmatpush.msra.mxu0 %v777
    %3340 = vmatpush.msra.mxu0 %v773
    %3341 = vmatpush.msra.mxu0 %v769
    %3342 = vmatpush.msra.mxu0 %v765
    %3343 = vmatpush.msra.mxu0 %v761
    %3344 = vmatpush.msra.mxu0 %v757
    %3345 = vmatpush.msra.mxu0 %v753
    %3346 = vmatpush.msra.mxu0 %v749
    %3347 = vmatmul.f32.gmra.mxu0 %v3249
    %v3348 = vpop.f32.mrf.mxu0
    %v3349 = vadd.f32 %v3269, %v3348
    %3350 = vdwg.mxu0
    %3351 = vmatpush.msra.mxu0 %v873
    %3352 = vmatpush.msra.mxu0 %v869
    %3353 = vmatpush.msra.mxu0 %v865
    %3354 = vmatpush.msra.mxu0 %v861
    %3355 = vmatpush.msra.mxu0 %v857
    %3356 = vmatpush.msra.mxu0 %v853
    %3357 = vmatpush.msra.mxu0 %v849
    %3358 = vmatpush.msra.mxu0 %v845
    %3359 = vmatpush.msra.mxu0 %v841
    %3360 = vmatpush.msra.mxu0 %v837
    %3361 = vmatpush.msra.mxu0 %v833
    %3362 = vmatpush.msra.mxu0 %v829
    %3363 = vmatpush.msra.mxu0 %v825
    %3364 = vmatpush.msra.mxu0 %v821
    %3365 = vmatpush.msra.mxu0 %v817
    %3366 = vmatpush.msra.mxu0 %v813
    %3367 = vmatmul.f32.gmra.mxu0 %v3250
    %v3368 = vpop.f32.mrf.mxu0
    %v3369 = vadd.f32 %v3349, %v3368
    %3370 = vdwg.mxu0
    %3371 = vmatpush.msra.mxu0 %v810
    %3372 = vmatpush.msra.mxu0 %v806
    %3373 = vmatpush.msra.mxu0 %v802
    %3374 = vmatpush.msra.mxu0 %v798
    %3375 = vmatpush.msra.mxu0 %v794
    %3376 = vmatpush.msra.mxu0 %v790
    %3377 = vmatpush.msra.mxu0 %v786
    %3378 = vmatpush.msra.mxu0 %v782
    %3379 = vmatpush.msra.mxu0 %v778
    %3380 = vmatpush.msra.mxu0 %v774
    %3381 = vmatpush.msra.mxu0 %v770
    %3382 = vmatpush.msra.mxu0 %v766
    %3383 = vmatpush.msra.mxu0 %v762
    %3384 = vmatpush.msra.mxu0 %v758
    %3385 = vmatpush.msra.mxu0 %v754
    %3386 = vmatpush.msra.mxu0 %v750
    %3387 = vmatmul.f32.gmra.mxu0 %v3249
    %v3388 = vpop.f32.mrf.mxu0
    %v3389 = vadd.f32 %v3289, %v3388
    %3390 = vdwg.mxu0
    %3391 = vmatpush.msra.mxu0 %v874
    %3392 = vmatpush.msra.mxu0 %v870
    %3393 = vmatpush.msra.mxu0 %v866
    %3394 = vmatpush.msra.mxu0 %v862
    %3395 = vmatpush.msra.mxu0 %v858
    %3396 = vmatpush.msra.mxu0 %v854
    %3397 = vmatpush.msra.mxu0 %v850
    %3398 = vmatpush.msra.mxu0 %v846
    %3399 = vmatpush.msra.mxu0 %v842
    %3400 = vmatpush.msra.mxu0 %v838
    %3401 = vmatpush.msra.mxu0 %v834
    %3402 = vmatpush.msra.mxu0 %v830
    %3403 = vmatpush.msra.mxu0 %v826
    %3404 = vmatpush.msra.mxu0 %v822
    %3405 = vmatpush.msra.mxu0 %v818
    %3406 = vmatpush.msra.mxu0 %v814
    %3407 = vmatmul.f32.gmra.mxu0 %v3250
    %v3408 = vpop.f32.mrf.mxu0
    %v3409 = vadd.f32 %v3389, %v3408
    %3410 = vdwg.mxu0
    %3411 = vmatpush.msra.mxu0 %v811
    %3412 = vmatpush.msra.mxu0 %v807
    %3413 = vmatpush.msra.mxu0 %v803
    %3414 = vmatpush.msra.mxu0 %v799
    %3415 = vmatpush.msra.mxu0 %v795
    %3416 = vmatpush.msra.mxu0 %v791
    %3417 = vmatpush.msra.mxu0 %v787
    %3418 = vmatpush.msra.mxu0 %v783
    %3419 = vmatpush.msra.mxu0 %v779
    %3420 = vmatpush.msra.mxu0 %v775
    %3421 = vmatpush.msra.mxu0 %v771
    %3422 = vmatpush.msra.mxu0 %v767
    %3423 = vmatpush.msra.mxu0 %v763
    %3424 = vmatpush.msra.mxu0 %v759
    %3425 = vmatpush.msra.mxu0 %v755
    %3426 = vmatpush.msra.mxu0 %v751
    %3427 = vmatmul.f32.gmra.mxu0 %v3249
    %v3428 = vpop.f32.mrf.mxu0
    %v3429 = vadd.f32 %v3309, %v3428
    %3430 = vdwg.mxu0
    %3431 = vmatpush.msra.mxu0 %v875
    %3432 = vmatpush.msra.mxu0 %v871
    %3433 = vmatpush.msra.mxu0 %v867
    %3434 = vmatpush.msra.mxu0 %v863
    %3435 = vmatpush.msra.mxu0 %v859
    %3436 = vmatpush.msra.mxu0 %v855
    %3437 = vmatpush.msra.mxu0 %v851
    %3438 = vmatpush.msra.mxu0 %v847
    %3439 = vmatpush.msra.mxu0 %v843
    %3440 = vmatpush.msra.mxu0 %v839
    %3441 = vmatpush.msra.mxu0 %v835
    %3442 = vmatpush.msra.mxu0 %v831
    %3443 = vmatpush.msra.mxu0 %v827
    %3444 = vmatpush.msra.mxu0 %v823
    %3445 = vmatpush.msra.mxu0 %v819
    %3446 = vmatpush.msra.mxu0 %v815
    %3447 = vmatmul.f32.gmra.mxu0 %v3250
    %v3448 = vpop.f32.mrf.mxu0
    %v3449 = vadd.f32 %v3429, %v3448
    %3450 = vdwg.mxu0
    %3451 = vmatpush.msra.mxu0 %v812
    %3452 = vmatpush.msra.mxu0 %v808
    %3453 = vmatpush.msra.mxu0 %v804
    %3454 = vmatpush.msra.mxu0 %v800
    %3455 = vmatpush.msra.mxu0 %v796
    %3456 = vmatpush.msra.mxu0 %v792
    %3457 = vmatpush.msra.mxu0 %v788
    %3458 = vmatpush.msra.mxu0 %v784
    %3459 = vmatpush.msra.mxu0 %v780
    %3460 = vmatpush.msra.mxu0 %v776
    %3461 = vmatpush.msra.mxu0 %v772
    %3462 = vmatpush.msra.mxu0 %v768
    %3463 = vmatpush.msra.mxu0 %v764
    %3464 = vmatpush.msra.mxu0 %v760
    %3465 = vmatpush.msra.mxu0 %v756
    %3466 = vmatpush.msra.mxu0 %v752
    %3467 = vmatmul.f32.gmra.mxu0 %v3249
    %v3468 = vpop.f32.mrf.mxu0
    %v3469 = vadd.f32 %v3329, %v3468
    %3470 = vdwg.mxu0
    %3471 = vmatpush.msra.mxu0 %v876
    %3472 = vmatpush.msra.mxu0 %v872
    %3473 = vmatpush.msra.mxu0 %v868
    %3474 = vmatpush.msra.mxu0 %v864
    %3475 = vmatpush.msra.mxu0 %v860
    %3476 = vmatpush.msra.mxu0 %v856
    %3477 = vmatpush.msra.mxu0 %v852
    %3478 = vmatpush.msra.mxu0 %v848
    %3479 = vmatpush.msra.mxu0 %v844
    %3480 = vmatpush.msra.mxu0 %v840
    %3481 = vmatpush.msra.mxu0 %v836
    %3482 = vmatpush.msra.mxu0 %v832
    %3483 = vmatpush.msra.mxu0 %v828
    %3484 = vmatpush.msra.mxu0 %v824
    %3485 = vmatpush.msra.mxu0 %v820
    %3486 = vmatpush.msra.mxu0 %v816
    %3487 = vmatmul.f32.gmra.mxu0 %v3250
    %v3488 = vpop.f32.mrf.mxu0
    %v3489 = vadd.f32 %v3469, %v3488
    %3490 = vdwg.mxu0
    %v3491 = vadd.f32 %v3369, %v23
    %v3492 = vadd.f32 %v3409, %v24
    %v3493 = vadd.f32 %v3449, %v25
    %v3494 = vadd.f32 %v3489, %v26
    %v3495 = vxor.u32 %v3491, 2147483648
    %v3496 = vmul.f32 %v3495, 1.442695
    %v3497 = vpow.pop %v3496
    %v3498 = vadd.f32 %v3497, 1.0
    %v3499 = vrcp.pop %v3498
    %v3500 = vmul.f32 %v3498, %v3499
    %v3501 = vsub.f32 1.0, %v3500
    %v3502 = vmul.f32 %v3499, %v3501
    %v3503 = vadd.f32 %v3499, %v3502
    %vm3504 = vweird.f32 %v3498
    %vm3505 = vweird.f32 %v3499
    %vm3506 = vmor %vm3504, %vm3505
    %v3507 = vsel %vm3506, %v3499, %v3503
    %v3508 = vand.u32 2147483647, %v3498
    %vm3509 = vcmp.eq.f32.partialorder %v3508, 8.507059e+37
    %v3510 = vand.u32 %v3498, 2147483648
    %v3511 = vor.u32 1.1754944e-38, %v3510
    %v3512 = vsel %vm3509, %v3511, %v3507
    %v3513 = vmul.f32 1.0, %v3512
    %v3514 = vxor.u32 %v3492, 2147483648
    %v3515 = vmul.f32 %v3514, 1.442695
    %v3516 = vpow.pop %v3515
    %v3517 = vadd.f32 %v3516, 1.0
    %v3518 = vrcp.pop %v3517
    %v3519 = vmul.f32 %v3517, %v3518
    %v3520 = vsub.f32 1.0, %v3519
    %v3521 = vmul.f32 %v3518, %v3520
    %v3522 = vadd.f32 %v3518, %v3521
    %vm3523 = vweird.f32 %v3517
    %vm3524 = vweird.f32 %v3518
    %vm3525 = vmor %vm3523, %vm3524
    %v3526 = vsel %vm3525, %v3518, %v3522
    %v3527 = vand.u32 2147483647, %v3517
    %vm3528 = vcmp.eq.f32.partialorder %v3527, 8.507059e+37
    %v3529 = vand.u32 %v3517, 2147483648
    %v3530 = vor.u32 1.1754944e-38, %v3529
    %v3531 = vsel %vm3528, %v3530, %v3526
    %v3532 = vmul.f32 1.0, %v3531
    %v3533 = vtanh.pop %v3493
    %v3534 = vxor.u32 %v3494, 2147483648
    %v3535 = vmul.f32 %v3534, 1.442695
    %v3536 = vpow.pop %v3535
    %v3537 = vadd.f32 %v3536, 1.0
    %v3538 = vrcp.pop %v3537
    %v3539 = vmul.f32 %v3537, %v3538
    %v3540 = vsub.f32 1.0, %v3539
    %v3541 = vmul.f32 %v3538, %v3540
    %v3542 = vadd.f32 %v3538, %v3541
    %vm3543 = vweird.f32 %v3537
    %vm3544 = vweird.f32 %v3538
    %vm3545 = vmor %vm3543, %vm3544
    %v3546 = vsel %vm3545, %v3538, %v3542
    %v3547 = vand.u32 2147483647, %v3537
    %vm3548 = vcmp.eq.f32.partialorder %v3547, 8.507059e+37
    %v3549 = vand.u32 %v3537, 2147483648
    %v3550 = vor.u32 1.1754944e-38, %v3549
    %v3551 = vsel %vm3548, %v3550, %v3546
    %v3552 = vmul.f32 1.0, %v3551
    %v3553 = vmul.f32 %v3532, %v2785
    %v3554 = vmul.f32 %v3513, %v3533
    %v3555 = vadd.f32 %v3553, %v3554
    %v3556 = vtanh.pop %v3555
    %v3557 = vmul.f32 %v3552, %v3556
    %s3558 = scalar_lea.vmem %s0, 256
    %v3559 = vld [vmem:[%s3558] sm:$0xff]
    %v3560 = vld [vmem:[%s3558 + $0x8] sm:$0xff]
    %v3561 = vld [vmem:[%s3558 + $0x10] sm:$0xff]
    %v3562 = vld [vmem:[%s3558 + $0x18] sm:$0xff]
    %v3563 = vld [vmem:[%s3558 + $0x20] sm:$0xff]
    %v3564 = vld [vmem:[%s3558 + $0x28] sm:$0xff]
    %v3565 = vld [vmem:[%s3558 + $0x30] sm:$0xff]
    %v3566 = vld [vmem:[%s3558 + $0x38] sm:$0xff]
    %3567 = vmatpush.msra.mxu0 %v159
    %3568 = vmatpush.msra.mxu0 %v151
    %3569 = vmatpush.msra.mxu0 %v143
    %3570 = vmatpush.msra.mxu0 %v135
    %3571 = vmatpush.msra.mxu0 %v127
    %3572 = vmatpush.msra.mxu0 %v119
    %3573 = vmatpush.msra.mxu0 %v111
    %3574 = vmatpush.msra.mxu0 %v103
    %3575 = vmatpush.msra.mxu0 %v95
    %3576 = vmatpush.msra.mxu0 %v87
    %3577 = vmatpush.msra.mxu0 %v79
    %3578 = vmatpush.msra.mxu0 %v71
    %3579 = vmatpush.msra.mxu0 %v63
    %3580 = vmatpush.msra.mxu0 %v55
    %3581 = vmatpush.msra.mxu0 %v47
    %3582 = vmatpush.msra.mxu0 %v39
    %3583 = vmatmul.f32.gmra.mxu0 %v3249
    %v3584 = vpop.f32.mrf.mxu0
    %v3585 = vadd.f32 0.0, %v3584
    %3586 = vdwg.mxu0
    %3587 = vmatpush.msra.mxu0 %v287
    %3588 = vmatpush.msra.mxu0 %v279
    %3589 = vmatpush.msra.mxu0 %v271
    %3590 = vmatpush.msra.mxu0 %v263
    %3591 = vmatpush.msra.mxu0 %v255
    %3592 = vmatpush.msra.mxu0 %v247
    %3593 = vmatpush.msra.mxu0 %v239
    %3594 = vmatpush.msra.mxu0 %v231
    %3595 = vmatpush.msra.mxu0 %v223
    %3596 = vmatpush.msra.mxu0 %v215
    %3597 = vmatpush.msra.mxu0 %v207
    %3598 = vmatpush.msra.mxu0 %v199
    %3599 = vmatpush.msra.mxu0 %v191
    %3600 = vmatpush.msra.mxu0 %v183
    %3601 = vmatpush.msra.mxu0 %v175
    %3602 = vmatpush.msra.mxu0 %v167
    %3603 = vmatmul.f32.gmra.mxu0 %v3250
    %v3604 = vpop.f32.mrf.mxu0
    %v3605 = vadd.f32 %v3585, %v3604
    %3606 = vdwg.mxu0
    %3607 = vmatpush.msra.mxu0 %v160
    %3608 = vmatpush.msra.mxu0 %v152
    %3609 = vmatpush.msra.mxu0 %v144
    %3610 = vmatpush.msra.mxu0 %v136
    %3611 = vmatpush.msra.mxu0 %v128
    %3612 = vmatpush.msra.mxu0 %v120
    %3613 = vmatpush.msra.mxu0 %v112
    %3614 = vmatpush.msra.mxu0 %v104
    %3615 = vmatpush.msra.mxu0 %v96
    %3616 = vmatpush.msra.mxu0 %v88
    %3617 = vmatpush.msra.mxu0 %v80
    %3618 = vmatpush.msra.mxu0 %v72
    %3619 = vmatpush.msra.mxu0 %v64
    %3620 = vmatpush.msra.mxu0 %v56
    %3621 = vmatpush.msra.mxu0 %v48
    %3622 = vmatpush.msra.mxu0 %v40
    %3623 = vmatmul.f32.gmra.mxu0 %v3249
    %v3624 = vpop.f32.mrf.mxu0
    %v3625 = vadd.f32 0.0, %v3624
    %3626 = vdwg.mxu0
    %3627 = vmatpush.msra.mxu0 %v288
    %3628 = vmatpush.msra.mxu0 %v280
    %3629 = vmatpush.msra.mxu0 %v272
    %3630 = vmatpush.msra.mxu0 %v264
    %3631 = vmatpush.msra.mxu0 %v256
    %3632 = vmatpush.msra.mxu0 %v248
    %3633 = vmatpush.msra.mxu0 %v240
    %3634 = vmatpush.msra.mxu0 %v232
    %3635 = vmatpush.msra.mxu0 %v224
    %3636 = vmatpush.msra.mxu0 %v216
    %3637 = vmatpush.msra.mxu0 %v208
    %3638 = vmatpush.msra.mxu0 %v200
    %3639 = vmatpush.msra.mxu0 %v192
    %3640 = vmatpush.msra.mxu0 %v184
    %3641 = vmatpush.msra.mxu0 %v176
    %3642 = vmatpush.msra.mxu0 %v168
    %3643 = vmatmul.f32.gmra.mxu0 %v3250
    %v3644 = vpop.f32.mrf.mxu0
    %v3645 = vadd.f32 %v3625, %v3644
    %3646 = vdwg.mxu0
    %3647 = vmatpush.msra.mxu0 %v161
    %3648 = vmatpush.msra.mxu0 %v153
    %3649 = vmatpush.msra.mxu0 %v145
    %3650 = vmatpush.msra.mxu0 %v137
    %3651 = vmatpush.msra.mxu0 %v129
    %3652 = vmatpush.msra.mxu0 %v121
    %3653 = vmatpush.msra.mxu0 %v113
    %3654 = vmatpush.msra.mxu0 %v105
    %3655 = vmatpush.msra.mxu0 %v97
    %3656 = vmatpush.msra.mxu0 %v89
    %3657 = vmatpush.msra.mxu0 %v81
    %3658 = vmatpush.msra.mxu0 %v73
    %3659 = vmatpush.msra.mxu0 %v65
    %3660 = vmatpush.msra.mxu0 %v57
    %3661 = vmatpush.msra.mxu0 %v49
    %3662 = vmatpush.msra.mxu0 %v41
    %3663 = vmatmul.f32.gmra.mxu0 %v3249
    %v3664 = vpop.f32.mrf.mxu0
    %v3665 = vadd.f32 0.0, %v3664
    %3666 = vdwg.mxu0
    %3667 = vmatpush.msra.mxu0 %v289
    %3668 = vmatpush.msra.mxu0 %v281
    %3669 = vmatpush.msra.mxu0 %v273
    %3670 = vmatpush.msra.mxu0 %v265
    %3671 = vmatpush.msra.mxu0 %v257
    %3672 = vmatpush.msra.mxu0 %v249
    %3673 = vmatpush.msra.mxu0 %v241
    %3674 = vmatpush.msra.mxu0 %v233
    %3675 = vmatpush.msra.mxu0 %v225
    %3676 = vmatpush.msra.mxu0 %v217
    %3677 = vmatpush.msra.mxu0 %v209
    %3678 = vmatpush.msra.mxu0 %v201
    %3679 = vmatpush.msra.mxu0 %v193
    %3680 = vmatpush.msra.mxu0 %v185
    %3681 = vmatpush.msra.mxu0 %v177
    %3682 = vmatpush.msra.mxu0 %v169
    %3683 = vmatmul.f32.gmra.mxu0 %v3250
    %v3684 = vpop.f32.mrf.mxu0
    %v3685 = vadd.f32 %v3665, %v3684
    %3686 = vdwg.mxu0
    %3687 = vmatpush.msra.mxu0 %v162
    %3688 = vmatpush.msra.mxu0 %v154
    %3689 = vmatpush.msra.mxu0 %v146
    %3690 = vmatpush.msra.mxu0 %v138
    %3691 = vmatpush.msra.mxu0 %v130
    %3692 = vmatpush.msra.mxu0 %v122
    %3693 = vmatpush.msra.mxu0 %v114
    %3694 = vmatpush.msra.mxu0 %v106
    %3695 = vmatpush.msra.mxu0 %v98
    %3696 = vmatpush.msra.mxu0 %v90
    %3697 = vmatpush.msra.mxu0 %v82
    %3698 = vmatpush.msra.mxu0 %v74
    %3699 = vmatpush.msra.mxu0 %v66
    %3700 = vmatpush.msra.mxu0 %v58
    %3701 = vmatpush.msra.mxu0 %v50
    %3702 = vmatpush.msra.mxu0 %v42
    %3703 = vmatmul.f32.gmra.mxu0 %v3249
    %v3704 = vpop.f32.mrf.mxu0
    %v3705 = vadd.f32 0.0, %v3704
    %3706 = vdwg.mxu0
    %3707 = vmatpush.msra.mxu0 %v290
    %3708 = vmatpush.msra.mxu0 %v282
    %3709 = vmatpush.msra.mxu0 %v274
    %3710 = vmatpush.msra.mxu0 %v266
    %3711 = vmatpush.msra.mxu0 %v258
    %3712 = vmatpush.msra.mxu0 %v250
    %3713 = vmatpush.msra.mxu0 %v242
    %3714 = vmatpush.msra.mxu0 %v234
    %3715 = vmatpush.msra.mxu0 %v226
    %3716 = vmatpush.msra.mxu0 %v218
    %3717 = vmatpush.msra.mxu0 %v210
    %3718 = vmatpush.msra.mxu0 %v202
    %3719 = vmatpush.msra.mxu0 %v194
    %3720 = vmatpush.msra.mxu0 %v186
    %3721 = vmatpush.msra.mxu0 %v178
    %3722 = vmatpush.msra.mxu0 %v170
    %3723 = vmatmul.f32.gmra.mxu0 %v3250
    %v3724 = vpop.f32.mrf.mxu0
    %v3725 = vadd.f32 %v3705, %v3724
    %3726 = vdwg.mxu0
    %3727 = vmatpush.msra.mxu0 %v163
    %3728 = vmatpush.msra.mxu0 %v155
    %3729 = vmatpush.msra.mxu0 %v147
    %3730 = vmatpush.msra.mxu0 %v139
    %3731 = vmatpush.msra.mxu0 %v131
    %3732 = vmatpush.msra.mxu0 %v123
    %3733 = vmatpush.msra.mxu0 %v115
    %3734 = vmatpush.msra.mxu0 %v107
    %3735 = vmatpush.msra.mxu0 %v99
    %3736 = vmatpush.msra.mxu0 %v91
    %3737 = vmatpush.msra.mxu0 %v83
    %3738 = vmatpush.msra.mxu0 %v75
    %3739 = vmatpush.msra.mxu0 %v67
    %3740 = vmatpush.msra.mxu0 %v59
    %3741 = vmatpush.msra.mxu0 %v51
    %3742 = vmatpush.msra.mxu0 %v43
    %3743 = vmatmul.f32.gmra.mxu0 %v3249
    %v3744 = vpop.f32.mrf.mxu0
    %v3745 = vadd.f32 0.0, %v3744
    %3746 = vdwg.mxu0
    %3747 = vmatpush.msra.mxu0 %v291
    %3748 = vmatpush.msra.mxu0 %v283
    %3749 = vmatpush.msra.mxu0 %v275
    %3750 = vmatpush.msra.mxu0 %v267
    %3751 = vmatpush.msra.mxu0 %v259
    %3752 = vmatpush.msra.mxu0 %v251
    %3753 = vmatpush.msra.mxu0 %v243
    %3754 = vmatpush.msra.mxu0 %v235
    %3755 = vmatpush.msra.mxu0 %v227
    %3756 = vmatpush.msra.mxu0 %v219
    %3757 = vmatpush.msra.mxu0 %v211
    %3758 = vmatpush.msra.mxu0 %v203
    %3759 = vmatpush.msra.mxu0 %v195
    %3760 = vmatpush.msra.mxu0 %v187
    %3761 = vmatpush.msra.mxu0 %v179
    %3762 = vmatpush.msra.mxu0 %v171
    %3763 = vmatmul.f32.gmra.mxu0 %v3250
    %v3764 = vpop.f32.mrf.mxu0
    %v3765 = vadd.f32 %v3745, %v3764
    %3766 = vdwg.mxu0
    %3767 = vmatpush.msra.mxu0 %v164
    %3768 = vmatpush.msra.mxu0 %v156
    %3769 = vmatpush.msra.mxu0 %v148
    %3770 = vmatpush.msra.mxu0 %v140
    %3771 = vmatpush.msra.mxu0 %v132
    %3772 = vmatpush.msra.mxu0 %v124
    %3773 = vmatpush.msra.mxu0 %v116
    %3774 = vmatpush.msra.mxu0 %v108
    %3775 = vmatpush.msra.mxu0 %v100
    %3776 = vmatpush.msra.mxu0 %v92
    %3777 = vmatpush.msra.mxu0 %v84
    %3778 = vmatpush.msra.mxu0 %v76
    %3779 = vmatpush.msra.mxu0 %v68
    %3780 = vmatpush.msra.mxu0 %v60
    %3781 = vmatpush.msra.mxu0 %v52
    %3782 = vmatpush.msra.mxu0 %v44
    %3783 = vmatmul.f32.gmra.mxu0 %v3249
    %v3784 = vpop.f32.mrf.mxu0
    %v3785 = vadd.f32 0.0, %v3784
    %3786 = vdwg.mxu0
    %3787 = vmatpush.msra.mxu0 %v292
    %3788 = vmatpush.msra.mxu0 %v284
    %3789 = vmatpush.msra.mxu0 %v276
    %3790 = vmatpush.msra.mxu0 %v268
    %3791 = vmatpush.msra.mxu0 %v260
    %3792 = vmatpush.msra.mxu0 %v252
    %3793 = vmatpush.msra.mxu0 %v244
    %3794 = vmatpush.msra.mxu0 %v236
    %3795 = vmatpush.msra.mxu0 %v228
    %3796 = vmatpush.msra.mxu0 %v220
    %3797 = vmatpush.msra.mxu0 %v212
    %3798 = vmatpush.msra.mxu0 %v204
    %3799 = vmatpush.msra.mxu0 %v196
    %3800 = vmatpush.msra.mxu0 %v188
    %3801 = vmatpush.msra.mxu0 %v180
    %3802 = vmatpush.msra.mxu0 %v172
    %3803 = vmatmul.f32.gmra.mxu0 %v3250
    %v3804 = vpop.f32.mrf.mxu0
    %v3805 = vadd.f32 %v3785, %v3804
    %3806 = vdwg.mxu0
    %3807 = vmatpush.msra.mxu0 %v165
    %3808 = vmatpush.msra.mxu0 %v157
    %3809 = vmatpush.msra.mxu0 %v149
    %3810 = vmatpush.msra.mxu0 %v141
    %3811 = vmatpush.msra.mxu0 %v133
    %3812 = vmatpush.msra.mxu0 %v125
    %3813 = vmatpush.msra.mxu0 %v117
    %3814 = vmatpush.msra.mxu0 %v109
    %3815 = vmatpush.msra.mxu0 %v101
    %3816 = vmatpush.msra.mxu0 %v93
    %3817 = vmatpush.msra.mxu0 %v85
    %3818 = vmatpush.msra.mxu0 %v77
    %3819 = vmatpush.msra.mxu0 %v69
    %3820 = vmatpush.msra.mxu0 %v61
    %3821 = vmatpush.msra.mxu0 %v53
    %3822 = vmatpush.msra.mxu0 %v45
    %3823 = vmatmul.f32.gmra.mxu0 %v3249
    %v3824 = vpop.f32.mrf.mxu0
    %v3825 = vadd.f32 0.0, %v3824
    %3826 = vdwg.mxu0
    %3827 = vmatpush.msra.mxu0 %v293
    %3828 = vmatpush.msra.mxu0 %v285
    %3829 = vmatpush.msra.mxu0 %v277
    %3830 = vmatpush.msra.mxu0 %v269
    %3831 = vmatpush.msra.mxu0 %v261
    %3832 = vmatpush.msra.mxu0 %v253
    %3833 = vmatpush.msra.mxu0 %v245
    %3834 = vmatpush.msra.mxu0 %v237
    %3835 = vmatpush.msra.mxu0 %v229
    %3836 = vmatpush.msra.mxu0 %v221
    %3837 = vmatpush.msra.mxu0 %v213
    %3838 = vmatpush.msra.mxu0 %v205
    %3839 = vmatpush.msra.mxu0 %v197
    %3840 = vmatpush.msra.mxu0 %v189
    %3841 = vmatpush.msra.mxu0 %v181
    %3842 = vmatpush.msra.mxu0 %v173
    %3843 = vmatmul.f32.gmra.mxu0 %v3250
    %v3844 = vpop.f32.mrf.mxu0
    %v3845 = vadd.f32 %v3825, %v3844
    %3846 = vdwg.mxu0
    %3847 = vmatpush.msra.mxu0 %v166
    %3848 = vmatpush.msra.mxu0 %v158
    %3849 = vmatpush.msra.mxu0 %v150
    %3850 = vmatpush.msra.mxu0 %v142
    %3851 = vmatpush.msra.mxu0 %v134
    %3852 = vmatpush.msra.mxu0 %v126
    %3853 = vmatpush.msra.mxu0 %v118
    %3854 = vmatpush.msra.mxu0 %v110
    %3855 = vmatpush.msra.mxu0 %v102
    %3856 = vmatpush.msra.mxu0 %v94
    %3857 = vmatpush.msra.mxu0 %v86
    %3858 = vmatpush.msra.mxu0 %v78
    %3859 = vmatpush.msra.mxu0 %v70
    %3860 = vmatpush.msra.mxu0 %v62
    %3861 = vmatpush.msra.mxu0 %v54
    %3862 = vmatpush.msra.mxu0 %v46
    %3863 = vmatmul.f32.gmra.mxu0 %v3249
    %v3864 = vpop.f32.mrf.mxu0
    %v3865 = vadd.f32 0.0, %v3864
    %3866 = vdwg.mxu0
    %3867 = vmatpush.msra.mxu0 %v294
    %3868 = vmatpush.msra.mxu0 %v286
    %3869 = vmatpush.msra.mxu0 %v278
    %3870 = vmatpush.msra.mxu0 %v270
    %3871 = vmatpush.msra.mxu0 %v262
    %3872 = vmatpush.msra.mxu0 %v254
    %3873 = vmatpush.msra.mxu0 %v246
    %3874 = vmatpush.msra.mxu0 %v238
    %3875 = vmatpush.msra.mxu0 %v230
    %3876 = vmatpush.msra.mxu0 %v222
    %3877 = vmatpush.msra.mxu0 %v214
    %3878 = vmatpush.msra.mxu0 %v206
    %3879 = vmatpush.msra.mxu0 %v198
    %3880 = vmatpush.msra.mxu0 %v190
    %3881 = vmatpush.msra.mxu0 %v182
    %3882 = vmatpush.msra.mxu0 %v174
    %3883 = vmatmul.f32.gmra.mxu0 %v3250
    %v3884 = vpop.f32.mrf.mxu0
    %v3885 = vadd.f32 %v3865, %v3884
    %3886 = vdwg.mxu0
    %v3887 = vadd.f32 %v3559, %v3605
    %v3888 = vadd.f32 %v3560, %v3645
    %v3889 = vadd.f32 %v3561, %v3685
    %v3890 = vadd.f32 %v3562, %v3725
    %v3891 = vadd.f32 %v3563, %v3765
    %v3892 = vadd.f32 %v3564, %v3805
    %v3893 = vadd.f32 %v3565, %v3845
    %v3894 = vadd.f32 %v3566, %v3885
    %v3895 = vxor.u32 %v3887, 2147483648
    %v3896 = vxor.u32 %v3888, 2147483648
    %v3897 = vmul.f32 %v3895, 1.442695
    %v3898 = vpow.pop %v3897
    %v3899 = vmul.f32 %v3896, 1.442695
    %v3900 = vpow.pop %v3899
    %v3901 = vadd.f32 %v3898, 1.0
    %v3902 = vadd.f32 %v3900, 1.0
    %v3903 = vrcp.pop %v3901
    %v3904 = vmul.f32 %v3901, %v3903
    %v3905 = vsub.f32 1.0, %v3904
    %v3906 = vmul.f32 %v3903, %v3905
    %v3907 = vadd.f32 %v3903, %v3906
    %vm3908 = vweird.f32 %v3901
    %vm3909 = vweird.f32 %v3903
    %vm3910 = vmor %vm3908, %vm3909
    %v3911 = vsel %vm3910, %v3903, %v3907
    %v3912 = vand.u32 2147483647, %v3901
    %vm3913 = vcmp.eq.f32.partialorder %v3912, 8.507059e+37
    %v3914 = vand.u32 %v3901, 2147483648
    %v3915 = vor.u32 1.1754944e-38, %v3914
    %v3916 = vsel %vm3913, %v3915, %v3911
    %v3917 = vmul.f32 1.0, %v3916
    %v3918 = vrcp.pop %v3902
    %v3919 = vmul.f32 %v3902, %v3918
    %v3920 = vsub.f32 1.0, %v3919
    %v3921 = vmul.f32 %v3918, %v3920
    %v3922 = vadd.f32 %v3918, %v3921
    %vm3923 = vweird.f32 %v3902
    %vm3924 = vweird.f32 %v3918
    %vm3925 = vmor %vm3923, %vm3924
    %v3926 = vsel %vm3925, %v3918, %v3922
    %v3927 = vand.u32 2147483647, %v3902
    %vm3928 = vcmp.eq.f32.partialorder %v3927, 8.507059e+37
    %v3929 = vand.u32 %v3902, 2147483648
    %v3930 = vor.u32 1.1754944e-38, %v3929
    %v3931 = vsel %vm3928, %v3930, %v3926
    %v3932 = vmul.f32 1.0, %v3931
    %v3933 = vxor.u32 %v3889, 2147483648
    %v3934 = vxor.u32 %v3890, 2147483648
    %v3935 = vmul.f32 %v3933, 1.442695
    %v3936 = vpow.pop %v3935
    %v3937 = vmul.f32 %v3934, 1.442695
    %v3938 = vpow.pop %v3937
    %v3939 = vadd.f32 %v3936, 1.0
    %v3940 = vadd.f32 %v3938, 1.0
    %v3941 = vrcp.pop %v3939
    %v3942 = vmul.f32 %v3939, %v3941
    %v3943 = vsub.f32 1.0, %v3942
    %v3944 = vmul.f32 %v3941, %v3943
    %v3945 = vadd.f32 %v3941, %v3944
    %vm3946 = vweird.f32 %v3939
    %vm3947 = vweird.f32 %v3941
    %vm3948 = vmor %vm3946, %vm3947
    %v3949 = vsel %vm3948, %v3941, %v3945
    %v3950 = vand.u32 2147483647, %v3939
    %vm3951 = vcmp.eq.f32.partialorder %v3950, 8.507059e+37
    %v3952 = vand.u32 %v3939, 2147483648
    %v3953 = vor.u32 1.1754944e-38, %v3952
    %v3954 = vsel %vm3951, %v3953, %v3949
    %v3955 = vmul.f32 1.0, %v3954
    %v3956 = vrcp.pop %v3940
    %v3957 = vmul.f32 %v3940, %v3956
    %v3958 = vsub.f32 1.0, %v3957
    %v3959 = vmul.f32 %v3956, %v3958
    %v3960 = vadd.f32 %v3956, %v3959
    %vm3961 = vweird.f32 %v3940
    %vm3962 = vweird.f32 %v3956
    %vm3963 = vmor %vm3961, %vm3962
    %v3964 = vsel %vm3963, %v3956, %v3960
    %v3965 = vand.u32 2147483647, %v3940
    %vm3966 = vcmp.eq.f32.partialorder %v3965, 8.507059e+37
    %v3967 = vand.u32 %v3940, 2147483648
    %v3968 = vor.u32 1.1754944e-38, %v3967
    %v3969 = vsel %vm3966, %v3968, %v3964
    %v3970 = vmul.f32 1.0, %v3969
    %v3971 = vtanh.pop %v3891
    %v3972 = vtanh.pop %v3892
    %v3973 = vxor.u32 %v3893, 2147483648
    %v3974 = vxor.u32 %v3894, 2147483648
    %v3975 = vmul.f32 %v3973, 1.442695
    %v3976 = vpow.pop %v3975
    %v3977 = vmul.f32 %v3974, 1.442695
    %v3978 = vpow.pop %v3977
    %v3979 = vadd.f32 %v3976, 1.0
    %v3980 = vadd.f32 %v3978, 1.0
    %v3981 = vrcp.pop %v3979
    %v3982 = vmul.f32 %v3979, %v3981
    %v3983 = vsub.f32 1.0, %v3982
    %v3984 = vmul.f32 %v3981, %v3983
    %v3985 = vadd.f32 %v3981, %v3984
    %vm3986 = vweird.f32 %v3979
    %vm3987 = vweird.f32 %v3981
    %vm3988 = vmor %vm3986, %vm3987
    %v3989 = vsel %vm3988, %v3981, %v3985
    %v3990 = vand.u32 2147483647, %v3979
    %vm3991 = vcmp.eq.f32.partialorder %v3990, 8.507059e+37
    %v3992 = vand.u32 %v3979, 2147483648
    %v3993 = vor.u32 1.1754944e-38, %v3992
    %v3994 = vsel %vm3991, %v3993, %v3989
    %v3995 = vmul.f32 1.0, %v3994
    %v3996 = vrcp.pop %v3980
    %v3997 = vmul.f32 %v3980, %v3996
    %v3998 = vsub.f32 1.0, %v3997
    %v3999 = vmul.f32 %v3996, %v3998
    %v4000 = vadd.f32 %v3996, %v3999
    %vm4001 = vweird.f32 %v3980
    %vm4002 = vweird.f32 %v3996
    %vm4003 = vmor %vm4001, %vm4002
    %v4004 = vsel %vm4003, %v3996, %v4000
    %v4005 = vand.u32 2147483647, %v3980
    %vm4006 = vcmp.eq.f32.partialorder %v4005, 8.507059e+37
    %v4007 = vand.u32 %v3980, 2147483648
    %v4008 = vor.u32 1.1754944e-38, %v4007
    %v4009 = vsel %vm4006, %v4008, %v4004
    %v4010 = vmul.f32 1.0, %v4009
    %v4011 = vmul.f32 %v3955, %v3245
    %v4012 = vmul.f32 %v3970, %v3246
    %v4013 = vmul.f32 %v3917, %v3971
    %v4014 = vmul.f32 %v3932, %v3972
    %v4015 = vadd.f32 %v4011, %v4013
    %v4016 = vadd.f32 %v4012, %v4014
    %v4017 = vtanh.pop %v4015
    %v4018 = vtanh.pop %v4016
    %v4019 = vmul.f32 %v3995, %v4017
    %v4020 = vmul.f32 %v4010, %v4018
    %4021 = vmatpush.msra.mxu0 %v937
    %4022 = vmatpush.msra.mxu0 %v933
    %4023 = vmatpush.msra.mxu0 %v929
    %4024 = vmatpush.msra.mxu0 %v925
    %4025 = vmatpush.msra.mxu0 %v921
    %4026 = vmatpush.msra.mxu0 %v917
    %4027 = vmatpush.msra.mxu0 %v913
    %4028 = vmatpush.msra.mxu0 %v909
    %4029 = vmatpush.msra.mxu0 %v905
    %4030 = vmatpush.msra.mxu0 %v901
    %4031 = vmatpush.msra.mxu0 %v897
    %4032 = vmatpush.msra.mxu0 %v893
    %4033 = vmatpush.msra.mxu0 %v889
    %4034 = vmatpush.msra.mxu0 %v885
    %4035 = vmatpush.msra.mxu0 %v881
    %4036 = vmatpush.msra.mxu0 %v877
    %4037 = vmatmul.f32.gmra.mxu0 %v3557
    %v4038 = vpop.f32.mrf.mxu0
    %v4039 = vadd.f32 0.0, %v4038
    %4040 = vdwg.mxu0
    %4041 = vmatpush.msra.mxu0 %v938
    %4042 = vmatpush.msra.mxu0 %v934
    %4043 = vmatpush.msra.mxu0 %v930
    %4044 = vmatpush.msra.mxu0 %v926
    %4045 = vmatpush.msra.mxu0 %v922
    %4046 = vmatpush.msra.mxu0 %v918
    %4047 = vmatpush.msra.mxu0 %v914
    %4048 = vmatpush.msra.mxu0 %v910
    %4049 = vmatpush.msra.mxu0 %v906
    %4050 = vmatpush.msra.mxu0 %v902
    %4051 = vmatpush.msra.mxu0 %v898
    %4052 = vmatpush.msra.mxu0 %v894
    %4053 = vmatpush.msra.mxu0 %v890
    %4054 = vmatpush.msra.mxu0 %v886
    %4055 = vmatpush.msra.mxu0 %v882
    %4056 = vmatpush.msra.mxu0 %v878
    %4057 = vmatmul.f32.gmra.mxu0 %v3557
    %v4058 = vpop.f32.mrf.mxu0
    %v4059 = vadd.f32 0.0, %v4058
    %4060 = vdwg.mxu0
    %4061 = vmatpush.msra.mxu0 %v939
    %4062 = vmatpush.msra.mxu0 %v935
    %4063 = vmatpush.msra.mxu0 %v931
    %4064 = vmatpush.msra.mxu0 %v927
    %4065 = vmatpush.msra.mxu0 %v923
    %4066 = vmatpush.msra.mxu0 %v919
    %4067 = vmatpush.msra.mxu0 %v915
    %4068 = vmatpush.msra.mxu0 %v911
    %4069 = vmatpush.msra.mxu0 %v907
    %4070 = vmatpush.msra.mxu0 %v903
    %4071 = vmatpush.msra.mxu0 %v899
    %4072 = vmatpush.msra.mxu0 %v895
    %4073 = vmatpush.msra.mxu0 %v891
    %4074 = vmatpush.msra.mxu0 %v887
    %4075 = vmatpush.msra.mxu0 %v883
    %4076 = vmatpush.msra.mxu0 %v879
    %4077 = vmatmul.f32.gmra.mxu0 %v3557
    %v4078 = vpop.f32.mrf.mxu0
    %v4079 = vadd.f32 0.0, %v4078
    %4080 = vdwg.mxu0
    %4081 = vmatpush.msra.mxu0 %v940
    %4082 = vmatpush.msra.mxu0 %v936
    %4083 = vmatpush.msra.mxu0 %v932
    %4084 = vmatpush.msra.mxu0 %v928
    %4085 = vmatpush.msra.mxu0 %v924
    %4086 = vmatpush.msra.mxu0 %v920
    %4087 = vmatpush.msra.mxu0 %v916
    %4088 = vmatpush.msra.mxu0 %v912
    %4089 = vmatpush.msra.mxu0 %v908
    %4090 = vmatpush.msra.mxu0 %v904
    %4091 = vmatpush.msra.mxu0 %v900
    %4092 = vmatpush.msra.mxu0 %v896
    %4093 = vmatpush.msra.mxu0 %v892
    %4094 = vmatpush.msra.mxu0 %v888
    %4095 = vmatpush.msra.mxu0 %v884
    %4096 = vmatpush.msra.mxu0 %v880
    %4097 = vmatmul.f32.gmra.mxu0 %v3557
    %v4098 = vpop.f32.mrf.mxu0
    %v4099 = vadd.f32 0.0, %v4098
    %4100 = vdwg.mxu0
    %4101 = vmatpush.msra.mxu0 %v809
    %4102 = vmatpush.msra.mxu0 %v805
    %4103 = vmatpush.msra.mxu0 %v801
    %4104 = vmatpush.msra.mxu0 %v797
    %4105 = vmatpush.msra.mxu0 %v793
    %4106 = vmatpush.msra.mxu0 %v789
    %4107 = vmatpush.msra.mxu0 %v785
    %4108 = vmatpush.msra.mxu0 %v781
    %4109 = vmatpush.msra.mxu0 %v777
    %4110 = vmatpush.msra.mxu0 %v773
    %4111 = vmatpush.msra.mxu0 %v769
    %4112 = vmatpush.msra.mxu0 %v765
    %4113 = vmatpush.msra.mxu0 %v761
    %4114 = vmatpush.msra.mxu0 %v757
    %4115 = vmatpush.msra.mxu0 %v753
    %4116 = vmatpush.msra.mxu0 %v749
    %4117 = vmatmul.f32.gmra.mxu0 %v4019
    %v4118 = vpop.f32.mrf.mxu0
    %v4119 = vadd.f32 %v4039, %v4118
    %4120 = vdwg.mxu0
    %4121 = vmatpush.msra.mxu0 %v873
    %4122 = vmatpush.msra.mxu0 %v869
    %4123 = vmatpush.msra.mxu0 %v865
    %4124 = vmatpush.msra.mxu0 %v861
    %4125 = vmatpush.msra.mxu0 %v857
    %4126 = vmatpush.msra.mxu0 %v853
    %4127 = vmatpush.msra.mxu0 %v849
    %4128 = vmatpush.msra.mxu0 %v845
    %4129 = vmatpush.msra.mxu0 %v841
    %4130 = vmatpush.msra.mxu0 %v837
    %4131 = vmatpush.msra.mxu0 %v833
    %4132 = vmatpush.msra.mxu0 %v829
    %4133 = vmatpush.msra.mxu0 %v825
    %4134 = vmatpush.msra.mxu0 %v821
    %4135 = vmatpush.msra.mxu0 %v817
    %4136 = vmatpush.msra.mxu0 %v813
    %4137 = vmatmul.f32.gmra.mxu0 %v4020
    %v4138 = vpop.f32.mrf.mxu0
    %v4139 = vadd.f32 %v4119, %v4138
    %4140 = vdwg.mxu0
    %4141 = vmatpush.msra.mxu0 %v810
    %4142 = vmatpush.msra.mxu0 %v806
    %4143 = vmatpush.msra.mxu0 %v802
    %4144 = vmatpush.msra.mxu0 %v798
    %4145 = vmatpush.msra.mxu0 %v794
    %4146 = vmatpush.msra.mxu0 %v790
    %4147 = vmatpush.msra.mxu0 %v786
    %4148 = vmatpush.msra.mxu0 %v782
    %4149 = vmatpush.msra.mxu0 %v778
    %4150 = vmatpush.msra.mxu0 %v774
    %4151 = vmatpush.msra.mxu0 %v770
    %4152 = vmatpush.msra.mxu0 %v766
    %4153 = vmatpush.msra.mxu0 %v762
    %4154 = vmatpush.msra.mxu0 %v758
    %4155 = vmatpush.msra.mxu0 %v754
    %4156 = vmatpush.msra.mxu0 %v750
    %4157 = vmatmul.f32.gmra.mxu0 %v4019
    %v4158 = vpop.f32.mrf.mxu0
    %v4159 = vadd.f32 %v4059, %v4158
    %4160 = vdwg.mxu0
    %4161 = vmatpush.msra.mxu0 %v874
    %4162 = vmatpush.msra.mxu0 %v870
    %4163 = vmatpush.msra.mxu0 %v866
    %4164 = vmatpush.msra.mxu0 %v862
    %4165 = vmatpush.msra.mxu0 %v858
    %4166 = vmatpush.msra.mxu0 %v854
    %4167 = vmatpush.msra.mxu0 %v850
    %4168 = vmatpush.msra.mxu0 %v846
    %4169 = vmatpush.msra.mxu0 %v842
    %4170 = vmatpush.msra.mxu0 %v838
    %4171 = vmatpush.msra.mxu0 %v834
    %4172 = vmatpush.msra.mxu0 %v830
    %4173 = vmatpush.msra.mxu0 %v826
    %4174 = vmatpush.msra.mxu0 %v822
    %4175 = vmatpush.msra.mxu0 %v818
    %4176 = vmatpush.msra.mxu0 %v814
    %4177 = vmatmul.f32.gmra.mxu0 %v4020
    %v4178 = vpop.f32.mrf.mxu0
    %v4179 = vadd.f32 %v4159, %v4178
    %4180 = vdwg.mxu0
    %4181 = vmatpush.msra.mxu0 %v811
    %4182 = vmatpush.msra.mxu0 %v807
    %4183 = vmatpush.msra.mxu0 %v803
    %4184 = vmatpush.msra.mxu0 %v799
    %4185 = vmatpush.msra.mxu0 %v795
    %4186 = vmatpush.msra.mxu0 %v791
    %4187 = vmatpush.msra.mxu0 %v787
    %4188 = vmatpush.msra.mxu0 %v783
    %4189 = vmatpush.msra.mxu0 %v779
    %4190 = vmatpush.msra.mxu0 %v775
    %4191 = vmatpush.msra.mxu0 %v771
    %4192 = vmatpush.msra.mxu0 %v767
    %4193 = vmatpush.msra.mxu0 %v763
    %4194 = vmatpush.msra.mxu0 %v759
    %4195 = vmatpush.msra.mxu0 %v755
    %4196 = vmatpush.msra.mxu0 %v751
    %4197 = vmatmul.f32.gmra.mxu0 %v4019
    %v4198 = vpop.f32.mrf.mxu0
    %v4199 = vadd.f32 %v4079, %v4198
    %4200 = vdwg.mxu0
    %4201 = vmatpush.msra.mxu0 %v875
    %4202 = vmatpush.msra.mxu0 %v871
    %4203 = vmatpush.msra.mxu0 %v867
    %4204 = vmatpush.msra.mxu0 %v863
    %4205 = vmatpush.msra.mxu0 %v859
    %4206 = vmatpush.msra.mxu0 %v855
    %4207 = vmatpush.msra.mxu0 %v851
    %4208 = vmatpush.msra.mxu0 %v847
    %4209 = vmatpush.msra.mxu0 %v843
    %4210 = vmatpush.msra.mxu0 %v839
    %4211 = vmatpush.msra.mxu0 %v835
    %4212 = vmatpush.msra.mxu0 %v831
    %4213 = vmatpush.msra.mxu0 %v827
    %4214 = vmatpush.msra.mxu0 %v823
    %4215 = vmatpush.msra.mxu0 %v819
    %4216 = vmatpush.msra.mxu0 %v815
    %4217 = vmatmul.f32.gmra.mxu0 %v4020
    %v4218 = vpop.f32.mrf.mxu0
    %v4219 = vadd.f32 %v4199, %v4218
    %4220 = vdwg.mxu0
    %4221 = vmatpush.msra.mxu0 %v812
    %4222 = vmatpush.msra.mxu0 %v808
    %4223 = vmatpush.msra.mxu0 %v804
    %4224 = vmatpush.msra.mxu0 %v800
    %4225 = vmatpush.msra.mxu0 %v796
    %4226 = vmatpush.msra.mxu0 %v792
    %4227 = vmatpush.msra.mxu0 %v788
    %4228 = vmatpush.msra.mxu0 %v784
    %4229 = vmatpush.msra.mxu0 %v780
    %4230 = vmatpush.msra.mxu0 %v776
    %4231 = vmatpush.msra.mxu0 %v772
    %4232 = vmatpush.msra.mxu0 %v768
    %4233 = vmatpush.msra.mxu0 %v764
    %4234 = vmatpush.msra.mxu0 %v760
    %4235 = vmatpush.msra.mxu0 %v756
    %4236 = vmatpush.msra.mxu0 %v752
    %4237 = vmatmul.f32.gmra.mxu0 %v4019
    %v4238 = vpop.f32.mrf.mxu0
    %v4239 = vadd.f32 %v4099, %v4238
    %4240 = vdwg.mxu0
    %4241 = vmatpush.msra.mxu0 %v876
    %4242 = vmatpush.msra.mxu0 %v872
    %4243 = vmatpush.msra.mxu0 %v868
    %4244 = vmatpush.msra.mxu0 %v864
    %4245 = vmatpush.msra.mxu0 %v860
    %4246 = vmatpush.msra.mxu0 %v856
    %4247 = vmatpush.msra.mxu0 %v852
    %4248 = vmatpush.msra.mxu0 %v848
    %4249 = vmatpush.msra.mxu0 %v844
    %4250 = vmatpush.msra.mxu0 %v840
    %4251 = vmatpush.msra.mxu0 %v836
    %4252 = vmatpush.msra.mxu0 %v832
    %4253 = vmatpush.msra.mxu0 %v828
    %4254 = vmatpush.msra.mxu0 %v824
    %4255 = vmatpush.msra.mxu0 %v820
    %4256 = vmatpush.msra.mxu0 %v816
    %4257 = vmatmul.f32.gmra.mxu0 %v4020
    %v4258 = vpop.f32.mrf.mxu0
    %v4259 = vadd.f32 %v4239, %v4258
    %4260 = vdwg.mxu0
    %v4261 = vadd.f32 %v4139, %v23
    %v4262 = vadd.f32 %v4179, %v24
    %v4263 = vadd.f32 %v4219, %v25
    %v4264 = vadd.f32 %v4259, %v26
    %v4265 = vxor.u32 %v4261, 2147483648
    %v4266 = vmul.f32 %v4265, 1.442695
    %v4267 = vpow.pop %v4266
    %v4268 = vadd.f32 %v4267, 1.0
    %v4269 = vrcp.pop %v4268
    %v4270 = vmul.f32 %v4268, %v4269
    %v4271 = vsub.f32 1.0, %v4270
    %v4272 = vmul.f32 %v4269, %v4271
    %v4273 = vadd.f32 %v4269, %v4272
    %vm4274 = vweird.f32 %v4268
    %vm4275 = vweird.f32 %v4269
    %vm4276 = vmor %vm4274, %vm4275
    %v4277 = vsel %vm4276, %v4269, %v4273
    %v4278 = vand.u32 2147483647, %v4268
    %vm4279 = vcmp.eq.f32.partialorder %v4278, 8.507059e+37
    %v4280 = vand.u32 %v4268, 2147483648
    %v4281 = vor.u32 1.1754944e-38, %v4280
    %v4282 = vsel %vm4279, %v4281, %v4277
    %v4283 = vmul.f32 1.0, %v4282
    %v4284 = vxor.u32 %v4262, 2147483648
    %v4285 = vmul.f32 %v4284, 1.442695
    %v4286 = vpow.pop %v4285
    %v4287 = vadd.f32 %v4286, 1.0
    %v4288 = vrcp.pop %v4287
    %v4289 = vmul.f32 %v4287, %v4288
    %v4290 = vsub.f32 1.0, %v4289
    %v4291 = vmul.f32 %v4288, %v4290
    %v4292 = vadd.f32 %v4288, %v4291
    %vm4293 = vweird.f32 %v4287
    %vm4294 = vweird.f32 %v4288
    %vm4295 = vmor %vm4293, %vm4294
    %v4296 = vsel %vm4295, %v4288, %v4292
    %v4297 = vand.u32 2147483647, %v4287
    %vm4298 = vcmp.eq.f32.partialorder %v4297, 8.507059e+37
    %v4299 = vand.u32 %v4287, 2147483648
    %v4300 = vor.u32 1.1754944e-38, %v4299
    %v4301 = vsel %vm4298, %v4300, %v4296
    %v4302 = vmul.f32 1.0, %v4301
    %v4303 = vtanh.pop %v4263
    %v4304 = vxor.u32 %v4264, 2147483648
    %v4305 = vmul.f32 %v4304, 1.442695
    %v4306 = vpow.pop %v4305
    %v4307 = vadd.f32 %v4306, 1.0
    %v4308 = vrcp.pop %v4307
    %v4309 = vmul.f32 %v4307, %v4308
    %v4310 = vsub.f32 1.0, %v4309
    %v4311 = vmul.f32 %v4308, %v4310
    %v4312 = vadd.f32 %v4308, %v4311
    %vm4313 = vweird.f32 %v4307
    %vm4314 = vweird.f32 %v4308
    %vm4315 = vmor %vm4313, %vm4314
    %v4316 = vsel %vm4315, %v4308, %v4312
    %v4317 = vand.u32 2147483647, %v4307
    %vm4318 = vcmp.eq.f32.partialorder %v4317, 8.507059e+37
    %v4319 = vand.u32 %v4307, 2147483648
    %v4320 = vor.u32 1.1754944e-38, %v4319
    %v4321 = vsel %vm4318, %v4320, %v4316
    %v4322 = vmul.f32 1.0, %v4321
    %v4323 = vmul.f32 %v4302, %v3555
    %v4324 = vmul.f32 %v4283, %v4303
    %v4325 = vadd.f32 %v4323, %v4324
    %v4326 = vtanh.pop %v4325
    %v4327 = vmul.f32 %v4322, %v4326
    %4328 = vst [vmem:[#allocation2] sm:$0xff] %v4327
    // Predicated region
    $region22: #{lstm_encoder_pallas.1} parent=1 // pred_check
      _
    $region23: #{lstm_encoder_pallas.1} parent=1 // pred_check_branch
      %4330 = sbr.rel (0) target = $region25
    $region24: #{lstm_encoder_pallas.1} parent=1 // pred_region
      %4332 = vsyncadd [#allocation3], 0
      %s4334 = sshll.u32 [#allocation2], 4
      %s4335 = int_to_ptr.vmem [resolvable:$true] %s4334
      %s4336 = sshll.u32 %s5, 4
      %s4337 = int_to_ptr.hbm [resolvable:$true] %s4336
      %4339 = dma.vmem_to_hbm [thread:$0]  %s4335, 128, %s4337, [#allocation3]
    $region25: #{lstm_encoder_pallas.1} parent=1 // pred_fallthru
      _
    // Predicated region
    $region26: #{lstm_encoder_pallas.1} parent=1 // pred_check
      _
    $region27: #{lstm_encoder_pallas.1} parent=1 // pred_check_branch
      %4341 = sbr.rel (0) target = $region29
    $region28: #{lstm_encoder_pallas.1} parent=1 // pred_region
      %4343 = dma.done [#allocation3], 128
    $region29: #{lstm_encoder_pallas.1} parent=1 // pred_fallthru
      _
    %4344 = vsyncpa [#allocation3], 1

</llo_original>
